<compile_context>
chip_gen: v5e
topology: v5e:2x2
jax: 0.10.0
libtpu: 0.0.40
codegen_flags: <defaults>
</compile_context>

<pallas_src>
import functools

import jax
import jax.numpy as jnp
from jax.experimental import pallas as pl
from jax.experimental.pallas import tpu as pltpu


# ---------------------------------------------------------------------------
# In-kernel helpers (traced inside the Pallas kernel)
# ---------------------------------------------------------------------------
def _pool2x2(a, B, H, W, C):
    """a: (B*H*W, C), rows in (b, h, w) order -> (B, H//2, W//2, C) 2x2 max."""
    a = a.reshape(B * (H // 2), 2, W, C)           # tile-preserving regroup
    a = jnp.maximum(a[:, 0], a[:, 1])              # pool along H (vreg select)
    a = a.reshape(B * (H // 2), W // 2, 2, C)      # the one sublane regroup
    a = jnp.maximum(a[:, :, 0, :], a[:, :, 1, :])  # pool along W
    return a.reshape(B, H // 2, W // 2, C)


# ---------------------------------------------------------------------------
# The fused kernel: one grid step == B_blk batch elements
# ---------------------------------------------------------------------------
def _fused_kernel(B, H, W,
                  x_ref, w1_ref, s1_ref, b1_ref,
                  w2_ref, s2_ref, b2_ref,
                  w3_ref, s3_ref, b3_ref,
                  wc_ref, bc_ref,
                  o_ref,
                  pad2_ref, pad3_ref):
    H2, W2 = H // 2, W // 2
    H4, W4 = H // 4, W // 4
    f32 = jnp.float32

    def conv3x3(views, w_ref, hh, ww, cin):
        """9 accumulating per-tap MXU matmuls; views[dj]: (B, hh+2, ww, cin)."""
        acc = None
        for di in range(3):
            for dj in range(3):
                lhs = views[dj][:, di:di + hh].reshape(B * hh * ww, cin)
                t = jnp.dot(lhs, w_ref[di * 3 + dj],
                            preferred_element_type=f32)
                acc = t if acc is None else acc + t
        return acc

    # ---- conv1 + BN + ReLU + maxpool (input block arrives zero-padded, bf16) ----
    v1 = [x_ref[:, :, dj:dj + W, :] for dj in range(3)]
    a1 = conv3x3(v1, w1_ref, H, W, 3)                         # (B*H*W, 64) f32
    a1 = jnp.maximum(a1 * s1_ref[...] + b1_ref[...], 0.0)
    p1 = _pool2x2(a1, B, H, W, 64)                            # (B, H2, W2, 64)

    # Halo scratch: cleared every step (megacore-safe, see header note); the
    # interior is fully overwritten right after with the bf16 pooled act.
    pad2_ref[...] = jnp.zeros_like(pad2_ref)
    pad2_ref[:, 1:H2 + 1, 1:W2 + 1, :] = p1.astype(jnp.bfloat16)

    # ---- conv2 + BN + ReLU + maxpool (per-tap K=64 -> no misaligned concat) ----
    v2 = [pad2_ref[:, :, dj:dj + W2, :] for dj in range(3)]
    a2 = conv3x3(v2, w2_ref, H2, W2, 64)                      # (B*H2*W2, 128)
    a2 = jnp.maximum(a2 * s2_ref[...] + b2_ref[...], 0.0)
    p2 = _pool2x2(a2, B, H2, W2, 128)                         # (B, H4, W4, 128)

    pad3_ref[...] = jnp.zeros_like(pad3_ref)
    pad3_ref[:, 1:H4 + 1, 1:W4 + 1, :] = p2.astype(jnp.bfloat16)

    # ---- conv3 + BN + ReLU: single deep-K matmul, 128-wide lane-aligned pieces ----
    v3 = [pad3_ref[:, :, dj:dj + W4, :] for dj in range(3)]
    patch3 = jnp.concatenate(
        [v3[dj][:, di:di + H4].reshape(B * H4 * W4, 128)
         for di in range(3) for dj in range(3)], axis=-1)     # (B*H4*W4, 1152)
    a3 = jnp.dot(patch3, w3_ref[...], preferred_element_type=f32)
    a3 = jnp.maximum(a3 * s3_ref[...] + b3_ref[...], 0.0)     # (B*H4*W4, 256)

    # ---- AdaptiveAvgPool2d(1) + Linear(256, 10) ----
    pooled = jnp.sum(a3.reshape(B, H4 * W4, 256), axis=1) * (1.0 / (H4 * W4))
    logits = jnp.dot(pooled, wc_ref[...], preferred_element_type=f32) + bc_ref[...]
    o_ref[...] = logits.reshape(B, 1, 10)


# ---------------------------------------------------------------------------
# Wrapper: one pallas_call; NCHW->NHWC + bf16 cast + 1-px halo are the glue
# ---------------------------------------------------------------------------
def _pick_batch_block(n):
    """Largest block of <=8 images per grid step that keeps the grid >= 2."""
    for b in (8, 4, 2):
        if n % b == 0 and n // b >= 2:
            return b
    return 1


def _rep_spec(shape):
    nd = len(shape)
    return pl.BlockSpec(shape, lambda n: (0,) * nd)


@jax.jit
def student_forward(x_nchw, params):
    N, C, H, W = x_nchw.shape
    assert C == 3 and H % 4 == 0 and W % 4 == 0, (N, C, H, W)
    B = _pick_batch_block(N)
    H2, W2, H4, W4 = H // 2, W // 2, H // 4, W // 4

    x = jnp.transpose(x_nchw, (0, 2, 3, 1)).astype(jnp.bfloat16)   # NHWC bf16
    xp = jnp.pad(x, ((0, 0), (1, 1), (1, 1), (0, 0)))              # 1-px zero halo

    kernel = functools.partial(_fused_kernel, B, H, W)

    out = pl.pallas_call(
        kernel,
        grid=(N // B,),
        in_specs=[
            pl.BlockSpec((B, H + 2, W + 2, 3), lambda n: (n, 0, 0, 0)),
            _rep_spec(params['w1p'].shape), _rep_spec(params['s1'].shape),
            _rep_spec(params['b1'].shape),
            _rep_spec(params['w2p'].shape), _rep_spec(params['s2'].shape),
            _rep_spec(params['b2'].shape),
            _rep_spec(params['w3p'].shape), _rep_spec(params['s3'].shape),
            _rep_spec(params['b3'].shape),
            _rep_spec(params['wc'].shape), _rep_spec(params['bc'].shape),
        ],
        out_specs=pl.BlockSpec((B, 1, 10), lambda n: (n, 0, 0)),
        out_shape=jax.ShapeDtypeStruct((N, 1, 10), jnp.float32),
        scratch_shapes=[
            pltpu.VMEM((B, H2 + 2, W2 + 2, 64), jnp.bfloat16),   # padded act 1
            pltpu.VMEM((B, H4 + 2, W4 + 2, 128), jnp.bfloat16),  # padded act 2
        ],
        compiler_params=pltpu.CompilerParams(
            dimension_semantics=("parallel",),
            vmem_limit_bytes=32 * 1024 * 1024),
    )(xp,
      params['w1p'], params['s1'], params['b1'],
      params['w2p'], params['s2'], params['b2'],
      params['w3p'], params['s3'], params['b3'],
      params['wc'], params['bc'])
    return out.reshape(N, 10)


# ---------------------------------------------------------------------------
# Deterministic parameter init (nn.Conv2d / nn.Linear style init; eval-mode
# BatchNorm with fresh running stats folded into per-channel scale/bias)
# ---------------------------------------------------------------------------
def init_params(key):
    ks = jax.random.split(key, 4)
    eps = 1e-5

    def conv_block(kk, cin, cout):
        kw, kb = jax.random.split(kk)
        bound = 1.0 / (cin * 9) ** 0.5
        w = jax.random.uniform(kw, (3, 3, cin, cout), jnp.float32, -bound, bound)
        conv_b = jax.random.uniform(kb, (cout,), jnp.float32, -bound, bound)
        gamma = jnp.ones((cout,), jnp.float32)
        beta = jnp.zeros((cout,), jnp.float32)
        run_mean = jnp.zeros((cout,), jnp.float32)
        run_var = jnp.ones((cout,), jnp.float32)
        scale = gamma / jnp.sqrt(run_var + eps)
        bias = beta + (conv_b - run_mean) * scale
        return w, scale.reshape(1, cout), bias.reshape(1, cout)

    w1, s1, b1 = conv_block(ks[0], 3, 64)
    w2, s2, b2 = conv_block(ks[1], 64, 128)
    w3, s3, b3 = conv_block(ks[2], 128, 256)

    kw, kb = jax.random.split(ks[3])
    bound = 1.0 / 256 ** 0.5
    wc = jax.random.uniform(kw, (256, 10), jnp.float32, -bound, bound)
    bc = jax.random.uniform(kb, (1, 10), jnp.float32, -bound, bound)

    return dict(
        # full HWIO weights (reference path)
        w1=w1, w2=w2, w3=w3,
        # MXU-packed bf16 weights (kernel path), tap order t = di*3 + dj
        w1p=w1.reshape(9, 3, 64).astype(jnp.bfloat16),       # per-tap, K=3
        w2p=w2.reshape(9, 64, 128).astype(jnp.bfloat16),     # per-tap, K=64
        w3p=w3.reshape(9 * 128, 256).astype(jnp.bfloat16),   # deep-K, K=1152
        s1=s1, b1=b1, s2=s2, b2=b2, s3=s3, b3=b3,
        wc=wc, bc=bc)


# ---------------------------------------------------------------------------
# Pure-JAX f32 reference for the correctness check
# ---------------------------------------------------------------------------
def ref_forward(x_nchw, params):
    x = jnp.transpose(x_nchw, (0, 2, 3, 1))

    def conv(x, w, s, b):
        y = jax.lax.conv_general_dilated(
            x, w, window_strides=(1, 1), padding=((1, 1), (1, 1)),
            dimension_numbers=('NHWC', 'HWIO', 'NHWC'))
        return jnp.maximum(y * s + b, 0.0)

    def pool(x):
        return jax.lax.reduce_window(x, -jnp.inf, jax.lax.max,
                                     (1, 2, 2, 1), (1, 2, 2, 1), 'VALID')

    x = pool(conv(x, params['w1'], params['s1'], params['b1']))
    x = pool(conv(x, params['w2'], params['s2'], params['b2']))
    x = conv(x, params['w3'], params['s3'], params['b3'])
    x = jnp.mean(x, axis=(1, 2))
    return x @ params['wc'] + params['bc']


if __name__ == "__main__":
    key = jax.random.PRNGKey(0)
    pkey, xkey = jax.random.split(key)
    params = init_params(pkey)

    # small shapes consistent with the module: batch=2, C=3, 16x16 images
    x = jax.random.normal(xkey, (2, 3, 16, 16), jnp.float32)

    out = jax.block_until_ready(student_forward(x, params))
    assert out.shape == (2, 10), out.shape

    ref = ref_forward(x, params)
    max_err = float(jnp.max(jnp.abs(out - ref)))
    # bf16 MXU inputs (f32 accumulation) vs f32 reference -> relaxed tolerance
    assert jnp.allclose(out, ref, rtol=2e-2, atol=2e-2), max_err

    print("KERNEL_OK")
</pallas_src>

<mosaic_0001>
module attributes {stable_mosaic.version = 11 : i64} {
  func.func @_fused_kernel(%arg0: i32, %arg1: memref<1x18x18x3xbf16, #tpu.memory_space<vmem>>, %arg2: memref<9x3x64xbf16, #tpu.memory_space<vmem>>, %arg3: memref<1x64xf32, #tpu.memory_space<vmem>>, %arg4: memref<1x64xf32, #tpu.memory_space<vmem>>, %arg5: memref<9x64x128xbf16, #tpu.memory_space<vmem>>, %arg6: memref<1x128xf32, #tpu.memory_space<vmem>>, %arg7: memref<1x128xf32, #tpu.memory_space<vmem>>, %arg8: memref<1152x256xbf16, #tpu.memory_space<vmem>>, %arg9: memref<1x256xf32, #tpu.memory_space<vmem>>, %arg10: memref<1x256xf32, #tpu.memory_space<vmem>>, %arg11: memref<256x10xf32, #tpu.memory_space<vmem>>, %arg12: memref<1x10xf32, #tpu.memory_space<vmem>>, %arg13: memref<1x1x10xf32, #tpu.memory_space<vmem>>, %arg14: memref<1x10x10x64xbf16, #tpu.memory_space<vmem>>, %arg15: memref<1x6x6x128xbf16, #tpu.memory_space<vmem>>) attributes {dimension_semantics = [#tpu.dimension_semantics<parallel>], iteration_bounds = array<i64: 2>, scalar_prefetch = 0 : i64, scratch_operands = 2 : i64, tpu.core_type = #tpu.core_type<tc>, window_params = [{transform_indices = @transform_0, window_bounds = array<i64: 1, 18, 18, 3>}, {pipeline_mode = #tpu.pipeline_mode<synchronous>, transform_indices = @transform_1, window_bounds = array<i64: 9, 3, 64>}, {pipeline_mode = #tpu.pipeline_mode<synchronous>, transform_indices = @transform_2, window_bounds = array<i64: 1, 64>}, {pipeline_mode = #tpu.pipeline_mode<synchronous>, transform_indices = @transform_3, window_bounds = array<i64: 1, 64>}, {pipeline_mode = #tpu.pipeline_mode<synchronous>, transform_indices = @transform_4, window_bounds = array<i64: 9, 64, 128>}, {pipeline_mode = #tpu.pipeline_mode<synchronous>, transform_indices = @transform_5, window_bounds = array<i64: 1, 128>}, {pipeline_mode = #tpu.pipeline_mode<synchronous>, transform_indices = @transform_6, window_bounds = array<i64: 1, 128>}, {pipeline_mode = #tpu.pipeline_mode<synchronous>, transform_indices = @transform_7, window_bounds = array<i64: 1152, 256>}, {pipeline_mode = #tpu.pipeline_mode<synchronous>, transform_indices = @transform_8, window_bounds = array<i64: 1, 256>}, {pipeline_mode = #tpu.pipeline_mode<synchronous>, transform_indices = @transform_9, window_bounds = array<i64: 1, 256>}, {pipeline_mode = #tpu.pipeline_mode<synchronous>, transform_indices = @transform_10, window_bounds = array<i64: 256, 10>}, {pipeline_mode = #tpu.pipeline_mode<synchronous>, transform_indices = @transform_11, window_bounds = array<i64: 1, 10>}, {transform_indices = @transform_12, window_bounds = array<i64: 1, 1, 10>}]} {
    %c0 = arith.constant 0 : index
    %c0_0 = arith.constant 0 : index
    %c0_1 = arith.constant 0 : index
    %c0_2 = arith.constant 0 : index
    %0 = vector.load %arg1[%c0, %c0_0, %c0_1, %c0_2] : memref<1x18x18x3xbf16, #tpu.memory_space<vmem>>, vector<1x18x16x3xbf16>
    %c0_3 = arith.constant 0 : index
    %c0_4 = arith.constant 0 : index
    %c1 = arith.constant 1 : index
    %c0_5 = arith.constant 0 : index
    %1 = vector.load %arg1[%c0_3, %c0_4, %c1, %c0_5] : memref<1x18x18x3xbf16, #tpu.memory_space<vmem>>, vector<1x18x16x3xbf16>
    %c0_6 = arith.constant 0 : index
    %c0_7 = arith.constant 0 : index
    %c2 = arith.constant 2 : index
    %c0_8 = arith.constant 0 : index
    %2 = vector.load %arg1[%c0_6, %c0_7, %c2, %c0_8] : memref<1x18x18x3xbf16, #tpu.memory_space<vmem>>, vector<1x18x16x3xbf16>
    %3 = vector.extract_strided_slice %0 {offsets = [0, 0, 0, 0], sizes = [1, 16, 16, 3], strides = [1, 1, 1, 1]} : vector<1x18x16x3xbf16> to vector<1x16x16x3xbf16>
    %4 = vector.shape_cast %3 : vector<1x16x16x3xbf16> to vector<256x3xbf16>
    %c0_9 = arith.constant 0 : index
    %c0_10 = arith.constant 0 : index
    %c0_11 = arith.constant 0 : index
    %5 = vector.load %arg2[%c0_9, %c0_10, %c0_11] : memref<9x3x64xbf16, #tpu.memory_space<vmem>>, vector<1x3x64xbf16>
    %6 = vector.shape_cast %5 : vector<1x3x64xbf16> to vector<3x64xbf16>
    %cst = arith.constant dense<0.000000e+00> : vector<256x64xf32>
    %7 = tpu.matmul %4, %6, %cst {dimension_numbers = #tpu.dot_dimension_numbers<[1], [0], [0], [1], [0, 0, 1, 1], [], []>} : vector<256x3xbf16>, vector<3x64xbf16>, vector<256x64xf32> -> vector<256x64xf32>
    %8 = vector.extract_strided_slice %1 {offsets = [0, 0, 0, 0], sizes = [1, 16, 16, 3], strides = [1, 1, 1, 1]} : vector<1x18x16x3xbf16> to vector<1x16x16x3xbf16>
    %9 = vector.shape_cast %8 : vector<1x16x16x3xbf16> to vector<256x3xbf16>
    %c1_12 = arith.constant 1 : index
    %c0_13 = arith.constant 0 : index
    %c0_14 = arith.constant 0 : index
    %10 = vector.load %arg2[%c1_12, %c0_13, %c0_14] : memref<9x3x64xbf16, #tpu.memory_space<vmem>>, vector<1x3x64xbf16>
    %11 = vector.shape_cast %10 : vector<1x3x64xbf16> to vector<3x64xbf16>
    %cst_15 = arith.constant dense<0.000000e+00> : vector<256x64xf32>
    %12 = tpu.matmul %9, %11, %cst_15 {dimension_numbers = #tpu.dot_dimension_numbers<[1], [0], [0], [1], [0, 0, 1, 1], [], []>} : vector<256x3xbf16>, vector<3x64xbf16>, vector<256x64xf32> -> vector<256x64xf32>
    %13 = arith.addf %7, %12 : vector<256x64xf32>
    %14 = vector.extract_strided_slice %2 {offsets = [0, 0, 0, 0], sizes = [1, 16, 16, 3], strides = [1, 1, 1, 1]} : vector<1x18x16x3xbf16> to vector<1x16x16x3xbf16>
    %15 = vector.shape_cast %14 : vector<1x16x16x3xbf16> to vector<256x3xbf16>
    %c2_16 = arith.constant 2 : index
    %c0_17 = arith.constant 0 : index
    %c0_18 = arith.constant 0 : index
    %16 = vector.load %arg2[%c2_16, %c0_17, %c0_18] : memref<9x3x64xbf16, #tpu.memory_space<vmem>>, vector<1x3x64xbf16>
    %17 = vector.shape_cast %16 : vector<1x3x64xbf16> to vector<3x64xbf16>
    %cst_19 = arith.constant dense<0.000000e+00> : vector<256x64xf32>
    %18 = tpu.matmul %15, %17, %cst_19 {dimension_numbers = #tpu.dot_dimension_numbers<[1], [0], [0], [1], [0, 0, 1, 1], [], []>} : vector<256x3xbf16>, vector<3x64xbf16>, vector<256x64xf32> -> vector<256x64xf32>
    %19 = arith.addf %13, %18 : vector<256x64xf32>
    %20 = vector.extract_strided_slice %0 {offsets = [0, 1, 0, 0], sizes = [1, 16, 16, 3], strides = [1, 1, 1, 1]} : vector<1x18x16x3xbf16> to vector<1x16x16x3xbf16>
    %21 = vector.shape_cast %20 : vector<1x16x16x3xbf16> to vector<256x3xbf16>
    %c3 = arith.constant 3 : index
    %c0_20 = arith.constant 0 : index
    %c0_21 = arith.constant 0 : index
    %22 = vector.load %arg2[%c3, %c0_20, %c0_21] : memref<9x3x64xbf16, #tpu.memory_space<vmem>>, vector<1x3x64xbf16>
    %23 = vector.shape_cast %22 : vector<1x3x64xbf16> to vector<3x64xbf16>
    %cst_22 = arith.constant dense<0.000000e+00> : vector<256x64xf32>
    %24 = tpu.matmul %21, %23, %cst_22 {dimension_numbers = #tpu.dot_dimension_numbers<[1], [0], [0], [1], [0, 0, 1, 1], [], []>} : vector<256x3xbf16>, vector<3x64xbf16>, vector<256x64xf32> -> vector<256x64xf32>
    %25 = arith.addf %19, %24 : vector<256x64xf32>
    %26 = vector.extract_strided_slice %1 {offsets = [0, 1, 0, 0], sizes = [1, 16, 16, 3], strides = [1, 1, 1, 1]} : vector<1x18x16x3xbf16> to vector<1x16x16x3xbf16>
    %27 = vector.shape_cast %26 : vector<1x16x16x3xbf16> to vector<256x3xbf16>
    %c4 = arith.constant 4 : index
    %c0_23 = arith.constant 0 : index
    %c0_24 = arith.constant 0 : index
    %28 = vector.load %arg2[%c4, %c0_23, %c0_24] : memref<9x3x64xbf16, #tpu.memory_space<vmem>>, vector<1x3x64xbf16>
    %29 = vector.shape_cast %28 : vector<1x3x64xbf16> to vector<3x64xbf16>
    %cst_25 = arith.constant dense<0.000000e+00> : vector<256x64xf32>
    %30 = tpu.matmul %27, %29, %cst_25 {dimension_numbers = #tpu.dot_dimension_numbers<[1], [0], [0], [1], [0, 0, 1, 1], [], []>} : vector<256x3xbf16>, vector<3x64xbf16>, vector<256x64xf32> -> vector<256x64xf32>
    %31 = arith.addf %25, %30 : vector<256x64xf32>
    %32 = vector.extract_strided_slice %2 {offsets = [0, 1, 0, 0], sizes = [1, 16, 16, 3], strides = [1, 1, 1, 1]} : vector<1x18x16x3xbf16> to vector<1x16x16x3xbf16>
    %33 = vector.shape_cast %32 : vector<1x16x16x3xbf16> to vector<256x3xbf16>
    %c5 = arith.constant 5 : index
    %c0_26 = arith.constant 0 : index
    %c0_27 = arith.constant 0 : index
    %34 = vector.load %arg2[%c5, %c0_26, %c0_27] : memref<9x3x64xbf16, #tpu.memory_space<vmem>>, vector<1x3x64xbf16>
    %35 = vector.shape_cast %34 : vector<1x3x64xbf16> to vector<3x64xbf16>
    %cst_28 = arith.constant dense<0.000000e+00> : vector<256x64xf32>
    %36 = tpu.matmul %33, %35, %cst_28 {dimension_numbers = #tpu.dot_dimension_numbers<[1], [0], [0], [1], [0, 0, 1, 1], [], []>} : vector<256x3xbf16>, vector<3x64xbf16>, vector<256x64xf32> -> vector<256x64xf32>
    %37 = arith.addf %31, %36 : vector<256x64xf32>
    %38 = vector.extract_strided_slice %0 {offsets = [0, 2, 0, 0], sizes = [1, 16, 16, 3], strides = [1, 1, 1, 1]} : vector<1x18x16x3xbf16> to vector<1x16x16x3xbf16>
    %39 = vector.shape_cast %38 : vector<1x16x16x3xbf16> to vector<256x3xbf16>
    %c6 = arith.constant 6 : index
    %c0_29 = arith.constant 0 : index
    %c0_30 = arith.constant 0 : index
    %40 = vector.load %arg2[%c6, %c0_29, %c0_30] : memref<9x3x64xbf16, #tpu.memory_space<vmem>>, vector<1x3x64xbf16>
    %41 = vector.shape_cast %40 : vector<1x3x64xbf16> to vector<3x64xbf16>
    %cst_31 = arith.constant dense<0.000000e+00> : vector<256x64xf32>
    %42 = tpu.matmul %39, %41, %cst_31 {dimension_numbers = #tpu.dot_dimension_numbers<[1], [0], [0], [1], [0, 0, 1, 1], [], []>} : vector<256x3xbf16>, vector<3x64xbf16>, vector<256x64xf32> -> vector<256x64xf32>
    %43 = arith.addf %37, %42 : vector<256x64xf32>
    %44 = vector.extract_strided_slice %1 {offsets = [0, 2, 0, 0], sizes = [1, 16, 16, 3], strides = [1, 1, 1, 1]} : vector<1x18x16x3xbf16> to vector<1x16x16x3xbf16>
    %45 = vector.shape_cast %44 : vector<1x16x16x3xbf16> to vector<256x3xbf16>
    %c7 = arith.constant 7 : index
    %c0_32 = arith.constant 0 : index
    %c0_33 = arith.constant 0 : index
    %46 = vector.load %arg2[%c7, %c0_32, %c0_33] : memref<9x3x64xbf16, #tpu.memory_space<vmem>>, vector<1x3x64xbf16>
    %47 = vector.shape_cast %46 : vector<1x3x64xbf16> to vector<3x64xbf16>
    %cst_34 = arith.constant dense<0.000000e+00> : vector<256x64xf32>
    %48 = tpu.matmul %45, %47, %cst_34 {dimension_numbers = #tpu.dot_dimension_numbers<[1], [0], [0], [1], [0, 0, 1, 1], [], []>} : vector<256x3xbf16>, vector<3x64xbf16>, vector<256x64xf32> -> vector<256x64xf32>
    %49 = arith.addf %43, %48 : vector<256x64xf32>
    %50 = vector.extract_strided_slice %2 {offsets = [0, 2, 0, 0], sizes = [1, 16, 16, 3], strides = [1, 1, 1, 1]} : vector<1x18x16x3xbf16> to vector<1x16x16x3xbf16>
    %51 = vector.shape_cast %50 : vector<1x16x16x3xbf16> to vector<256x3xbf16>
    %c8 = arith.constant 8 : index
    %c0_35 = arith.constant 0 : index
    %c0_36 = arith.constant 0 : index
    %52 = vector.load %arg2[%c8, %c0_35, %c0_36] : memref<9x3x64xbf16, #tpu.memory_space<vmem>>, vector<1x3x64xbf16>
    %53 = vector.shape_cast %52 : vector<1x3x64xbf16> to vector<3x64xbf16>
    %cst_37 = arith.constant dense<0.000000e+00> : vector<256x64xf32>
    %54 = tpu.matmul %51, %53, %cst_37 {dimension_numbers = #tpu.dot_dimension_numbers<[1], [0], [0], [1], [0, 0, 1, 1], [], []>} : vector<256x3xbf16>, vector<3x64xbf16>, vector<256x64xf32> -> vector<256x64xf32>
    %55 = arith.addf %49, %54 : vector<256x64xf32>
    %c0_38 = arith.constant 0 : index
    %c0_39 = arith.constant 0 : index
    %56 = vector.load %arg3[%c0_38, %c0_39] : memref<1x64xf32, #tpu.memory_space<vmem>>, vector<1x64xf32>
    %57 = vector.broadcast %56 : vector<1x64xf32> to vector<256x64xf32>
    %58 = arith.mulf %55, %57 : vector<256x64xf32>
    %c0_40 = arith.constant 0 : index
    %c0_41 = arith.constant 0 : index
    %59 = vector.load %arg4[%c0_40, %c0_41] : memref<1x64xf32, #tpu.memory_space<vmem>>, vector<1x64xf32>
    %60 = vector.broadcast %59 : vector<1x64xf32> to vector<256x64xf32>
    %61 = arith.addf %58, %60 : vector<256x64xf32>
    %cst_42 = arith.constant 0.000000e+00 : f32
    %62 = vector.broadcast %cst_42 : f32 to vector<256x64xf32>
    %63 = arith.maximumf %61, %62 : vector<256x64xf32>
    %64 = vector.shape_cast %63 : vector<256x64xf32> to vector<8x2x16x64xf32>
    %65 = vector.extract_strided_slice %64 {offsets = [0, 0, 0, 0], sizes = [8, 1, 16, 64], strides = [1, 1, 1, 1]} : vector<8x2x16x64xf32> to vector<8x1x16x64xf32>
    %66 = vector.shape_cast %65 : vector<8x1x16x64xf32> to vector<8x16x64xf32>
    %67 = vector.extract_strided_slice %64 {offsets = [0, 1, 0, 0], sizes = [8, 1, 16, 64], strides = [1, 1, 1, 1]} : vector<8x2x16x64xf32> to vector<8x1x16x64xf32>
    %68 = vector.shape_cast %67 : vector<8x1x16x64xf32> to vector<8x16x64xf32>
    %69 = arith.maximumf %66, %68 : vector<8x16x64xf32>
    %70 = vector.shape_cast %69 : vector<8x16x64xf32> to vector<8x8x2x64xf32>
    %71 = vector.extract_strided_slice %70 {offsets = [0, 0, 0, 0], sizes = [8, 8, 1, 64], strides = [1, 1, 1, 1]} : vector<8x8x2x64xf32> to vector<8x8x1x64xf32>
    %72 = vector.shape_cast %71 : vector<8x8x1x64xf32> to vector<8x8x64xf32>
    %73 = vector.extract_strided_slice %70 {offsets = [0, 0, 1, 0], sizes = [8, 8, 1, 64], strides = [1, 1, 1, 1]} : vector<8x8x2x64xf32> to vector<8x8x1x64xf32>
    %74 = vector.shape_cast %73 : vector<8x8x1x64xf32> to vector<8x8x64xf32>
    %75 = arith.maximumf %72, %74 : vector<8x8x64xf32>
    %76 = vector.shape_cast %75 : vector<8x8x64xf32> to vector<1x8x8x64xf32>
    %cst_43 = arith.constant 0.000000e+00 : bf16
    %77 = vector.broadcast %cst_43 : bf16 to vector<1x10x10x64xbf16>
    %c0_44 = arith.constant 0 : index
    %c0_45 = arith.constant 0 : index
    %c0_46 = arith.constant 0 : index
    %c0_47 = arith.constant 0 : index
    %78 = vector.load %arg14[%c0_44, %c0_45, %c0_46, %c0_47] : memref<1x10x10x64xbf16, #tpu.memory_space<vmem>>, vector<1x10x10x64xbf16>
    tpu.vector_store %arg14[%c0_44, %c0_45, %c0_46, %c0_47], %77 {strides = array<i32>} : memref<1x10x10x64xbf16, #tpu.memory_space<vmem>>, vector<1x10x10x64xbf16>,
    %79 = arith.truncf %76 : vector<1x8x8x64xf32> to vector<1x8x8x64xbf16>
    %c0_48 = arith.constant 0 : index
    %c1_49 = arith.constant 1 : index
    %c1_50 = arith.constant 1 : index
    %c0_51 = arith.constant 0 : index
    %80 = vector.load %arg14[%c0_48, %c1_49, %c1_50, %c0_51] : memref<1x10x10x64xbf16, #tpu.memory_space<vmem>>, vector<1x8x8x64xbf16>
    tpu.vector_store %arg14[%c0_48, %c1_49, %c1_50, %c0_51], %79 {strides = array<i32>} : memref<1x10x10x64xbf16, #tpu.memory_space<vmem>>, vector<1x8x8x64xbf16>,
    %c0_52 = arith.constant 0 : index
    %c0_53 = arith.constant 0 : index
    %c0_54 = arith.constant 0 : index
    %c0_55 = arith.constant 0 : index
    %81 = vector.load %arg14[%c0_52, %c0_53, %c0_54, %c0_55] : memref<1x10x10x64xbf16, #tpu.memory_space<vmem>>, vector<1x10x8x64xbf16>
    %c0_56 = arith.constant 0 : index
    %c0_57 = arith.constant 0 : index
    %c1_58 = arith.constant 1 : index
    %c0_59 = arith.constant 0 : index
    %82 = vector.load %arg14[%c0_56, %c0_57, %c1_58, %c0_59] : memref<1x10x10x64xbf16, #tpu.memory_space<vmem>>, vector<1x10x8x64xbf16>
    %c0_60 = arith.constant 0 : index
    %c0_61 = arith.constant 0 : index
    %c2_62 = arith.constant 2 : index
    %c0_63 = arith.constant 0 : index
    %83 = vector.load %arg14[%c0_60, %c0_61, %c2_62, %c0_63] : memref<1x10x10x64xbf16, #tpu.memory_space<vmem>>, vector<1x10x8x64xbf16>
    %84 = vector.extract_strided_slice %81 {offsets = [0, 0, 0, 0], sizes = [1, 8, 8, 64], strides = [1, 1, 1, 1]} : vector<1x10x8x64xbf16> to vector<1x8x8x64xbf16>
    %85 = vector.shape_cast %84 : vector<1x8x8x64xbf16> to vector<64x64xbf16>
    %c0_64 = arith.constant 0 : index
    %c0_65 = arith.constant 0 : index
    %c0_66 = arith.constant 0 : index
    %86 = vector.load %arg5[%c0_64, %c0_65, %c0_66] : memref<9x64x128xbf16, #tpu.memory_space<vmem>>, vector<1x64x128xbf16>
    %87 = vector.shape_cast %86 : vector<1x64x128xbf16> to vector<64x128xbf16>
    %cst_67 = arith.constant dense<0.000000e+00> : vector<64x128xf32>
    %88 = tpu.matmul %85, %87, %cst_67 {dimension_numbers = #tpu.dot_dimension_numbers<[1], [0], [0], [1], [0, 0, 1, 1], [], []>} : vector<64x64xbf16>, vector<64x128xbf16>, vector<64x128xf32> -> vector<64x128xf32>
    %89 = vector.extract_strided_slice %82 {offsets = [0, 0, 0, 0], sizes = [1, 8, 8, 64], strides = [1, 1, 1, 1]} : vector<1x10x8x64xbf16> to vector<1x8x8x64xbf16>
    %90 = vector.shape_cast %89 : vector<1x8x8x64xbf16> to vector<64x64xbf16>
    %c1_68 = arith.constant 1 : index
    %c0_69 = arith.constant 0 : index
    %c0_70 = arith.constant 0 : index
    %91 = vector.load %arg5[%c1_68, %c0_69, %c0_70] : memref<9x64x128xbf16, #tpu.memory_space<vmem>>, vector<1x64x128xbf16>
    %92 = vector.shape_cast %91 : vector<1x64x128xbf16> to vector<64x128xbf16>
    %cst_71 = arith.constant dense<0.000000e+00> : vector<64x128xf32>
    %93 = tpu.matmul %90, %92, %cst_71 {dimension_numbers = #tpu.dot_dimension_numbers<[1], [0], [0], [1], [0, 0, 1, 1], [], []>} : vector<64x64xbf16>, vector<64x128xbf16>, vector<64x128xf32> -> vector<64x128xf32>
    %94 = arith.addf %88, %93 : vector<64x128xf32>
    %95 = vector.extract_strided_slice %83 {offsets = [0, 0, 0, 0], sizes = [1, 8, 8, 64], strides = [1, 1, 1, 1]} : vector<1x10x8x64xbf16> to vector<1x8x8x64xbf16>
    %96 = vector.shape_cast %95 : vector<1x8x8x64xbf16> to vector<64x64xbf16>
    %c2_72 = arith.constant 2 : index
    %c0_73 = arith.constant 0 : index
    %c0_74 = arith.constant 0 : index
    %97 = vector.load %arg5[%c2_72, %c0_73, %c0_74] : memref<9x64x128xbf16, #tpu.memory_space<vmem>>, vector<1x64x128xbf16>
    %98 = vector.shape_cast %97 : vector<1x64x128xbf16> to vector<64x128xbf16>
    %cst_75 = arith.constant dense<0.000000e+00> : vector<64x128xf32>
    %99 = tpu.matmul %96, %98, %cst_75 {dimension_numbers = #tpu.dot_dimension_numbers<[1], [0], [0], [1], [0, 0, 1, 1], [], []>} : vector<64x64xbf16>, vector<64x128xbf16>, vector<64x128xf32> -> vector<64x128xf32>
    %100 = arith.addf %94, %99 : vector<64x128xf32>
    %101 = vector.extract_strided_slice %81 {offsets = [0, 1, 0, 0], sizes = [1, 8, 8, 64], strides = [1, 1, 1, 1]} : vector<1x10x8x64xbf16> to vector<1x8x8x64xbf16>
    %102 = vector.shape_cast %101 : vector<1x8x8x64xbf16> to vector<64x64xbf16>
    %c3_76 = arith.constant 3 : index
    %c0_77 = arith.constant 0 : index
    %c0_78 = arith.constant 0 : index
    %103 = vector.load %arg5[%c3_76, %c0_77, %c0_78] : memref<9x64x128xbf16, #tpu.memory_space<vmem>>, vector<1x64x128xbf16>
    %104 = vector.shape_cast %103 : vector<1x64x128xbf16> to vector<64x128xbf16>
    %cst_79 = arith.constant dense<0.000000e+00> : vector<64x128xf32>
    %105 = tpu.matmul %102, %104, %cst_79 {dimension_numbers = #tpu.dot_dimension_numbers<[1], [0], [0], [1], [0, 0, 1, 1], [], []>} : vector<64x64xbf16>, vector<64x128xbf16>, vector<64x128xf32> -> vector<64x128xf32>
    %106 = arith.addf %100, %105 : vector<64x128xf32>
    %107 = vector.extract_strided_slice %82 {offsets = [0, 1, 0, 0], sizes = [1, 8, 8, 64], strides = [1, 1, 1, 1]} : vector<1x10x8x64xbf16> to vector<1x8x8x64xbf16>
    %108 = vector.shape_cast %107 : vector<1x8x8x64xbf16> to vector<64x64xbf16>
    %c4_80 = arith.constant 4 : index
    %c0_81 = arith.constant 0 : index
    %c0_82 = arith.constant 0 : index
    %109 = vector.load %arg5[%c4_80, %c0_81, %c0_82] : memref<9x64x128xbf16, #tpu.memory_space<vmem>>, vector<1x64x128xbf16>
    %110 = vector.shape_cast %109 : vector<1x64x128xbf16> to vector<64x128xbf16>
    %cst_83 = arith.constant dense<0.000000e+00> : vector<64x128xf32>
    %111 = tpu.matmul %108, %110, %cst_83 {dimension_numbers = #tpu.dot_dimension_numbers<[1], [0], [0], [1], [0, 0, 1, 1], [], []>} : vector<64x64xbf16>, vector<64x128xbf16>, vector<64x128xf32> -> vector<64x128xf32>
    %112 = arith.addf %106, %111 : vector<64x128xf32>
    %113 = vector.extract_strided_slice %83 {offsets = [0, 1, 0, 0], sizes = [1, 8, 8, 64], strides = [1, 1, 1, 1]} : vector<1x10x8x64xbf16> to vector<1x8x8x64xbf16>
    %114 = vector.shape_cast %113 : vector<1x8x8x64xbf16> to vector<64x64xbf16>
    %c5_84 = arith.constant 5 : index
    %c0_85 = arith.constant 0 : index
    %c0_86 = arith.constant 0 : index
    %115 = vector.load %arg5[%c5_84, %c0_85, %c0_86] : memref<9x64x128xbf16, #tpu.memory_space<vmem>>, vector<1x64x128xbf16>
    %116 = vector.shape_cast %115 : vector<1x64x128xbf16> to vector<64x128xbf16>
    %cst_87 = arith.constant dense<0.000000e+00> : vector<64x128xf32>
    %117 = tpu.matmul %114, %116, %cst_87 {dimension_numbers = #tpu.dot_dimension_numbers<[1], [0], [0], [1], [0, 0, 1, 1], [], []>} : vector<64x64xbf16>, vector<64x128xbf16>, vector<64x128xf32> -> vector<64x128xf32>
    %118 = arith.addf %112, %117 : vector<64x128xf32>
    %119 = vector.extract_strided_slice %81 {offsets = [0, 2, 0, 0], sizes = [1, 8, 8, 64], strides = [1, 1, 1, 1]} : vector<1x10x8x64xbf16> to vector<1x8x8x64xbf16>
    %120 = vector.shape_cast %119 : vector<1x8x8x64xbf16> to vector<64x64xbf16>
    %c6_88 = arith.constant 6 : index
    %c0_89 = arith.constant 0 : index
    %c0_90 = arith.constant 0 : index
    %121 = vector.load %arg5[%c6_88, %c0_89, %c0_90] : memref<9x64x128xbf16, #tpu.memory_space<vmem>>, vector<1x64x128xbf16>
    %122 = vector.shape_cast %121 : vector<1x64x128xbf16> to vector<64x128xbf16>
    %cst_91 = arith.constant dense<0.000000e+00> : vector<64x128xf32>
    %123 = tpu.matmul %120, %122, %cst_91 {dimension_numbers = #tpu.dot_dimension_numbers<[1], [0], [0], [1], [0, 0, 1, 1], [], []>} : vector<64x64xbf16>, vector<64x128xbf16>, vector<64x128xf32> -> vector<64x128xf32>
    %124 = arith.addf %118, %123 : vector<64x128xf32>
    %125 = vector.extract_strided_slice %82 {offsets = [0, 2, 0, 0], sizes = [1, 8, 8, 64], strides = [1, 1, 1, 1]} : vector<1x10x8x64xbf16> to vector<1x8x8x64xbf16>
    %126 = vector.shape_cast %125 : vector<1x8x8x64xbf16> to vector<64x64xbf16>
    %c7_92 = arith.constant 7 : index
    %c0_93 = arith.constant 0 : index
    %c0_94 = arith.constant 0 : index
    %127 = vector.load %arg5[%c7_92, %c0_93, %c0_94] : memref<9x64x128xbf16, #tpu.memory_space<vmem>>, vector<1x64x128xbf16>
    %128 = vector.shape_cast %127 : vector<1x64x128xbf16> to vector<64x128xbf16>
    %cst_95 = arith.constant dense<0.000000e+00> : vector<64x128xf32>
    %129 = tpu.matmul %126, %128, %cst_95 {dimension_numbers = #tpu.dot_dimension_numbers<[1], [0], [0], [1], [0, 0, 1, 1], [], []>} : vector<64x64xbf16>, vector<64x128xbf16>, vector<64x128xf32> -> vector<64x128xf32>
    %130 = arith.addf %124, %129 : vector<64x128xf32>
    %131 = vector.extract_strided_slice %83 {offsets = [0, 2, 0, 0], sizes = [1, 8, 8, 64], strides = [1, 1, 1, 1]} : vector<1x10x8x64xbf16> to vector<1x8x8x64xbf16>
    %132 = vector.shape_cast %131 : vector<1x8x8x64xbf16> to vector<64x64xbf16>
    %c8_96 = arith.constant 8 : index
    %c0_97 = arith.constant 0 : index
    %c0_98 = arith.constant 0 : index
    %133 = vector.load %arg5[%c8_96, %c0_97, %c0_98] : memref<9x64x128xbf16, #tpu.memory_space<vmem>>, vector<1x64x128xbf16>
    %134 = vector.shape_cast %133 : vector<1x64x128xbf16> to vector<64x128xbf16>
    %cst_99 = arith.constant dense<0.000000e+00> : vector<64x128xf32>
    %135 = tpu.matmul %132, %134, %cst_99 {dimension_numbers = #tpu.dot_dimension_numbers<[1], [0], [0], [1], [0, 0, 1, 1], [], []>} : vector<64x64xbf16>, vector<64x128xbf16>, vector<64x128xf32> -> vector<64x128xf32>
    %136 = arith.addf %130, %135 : vector<64x128xf32>
    %c0_100 = arith.constant 0 : index
    %c0_101 = arith.constant 0 : index
    %137 = vector.load %arg6[%c0_100, %c0_101] : memref<1x128xf32, #tpu.memory_space<vmem>>, vector<1x128xf32>
    %138 = vector.broadcast %137 : vector<1x128xf32> to vector<64x128xf32>
    %139 = arith.mulf %136, %138 : vector<64x128xf32>
    %c0_102 = arith.constant 0 : index
    %c0_103 = arith.constant 0 : index
    %140 = vector.load %arg7[%c0_102, %c0_103] : memref<1x128xf32, #tpu.memory_space<vmem>>, vector<1x128xf32>
    %141 = vector.broadcast %140 : vector<1x128xf32> to vector<64x128xf32>
    %142 = arith.addf %139, %141 : vector<64x128xf32>
    %cst_104 = arith.constant 0.000000e+00 : f32
    %143 = vector.broadcast %cst_104 : f32 to vector<64x128xf32>
    %144 = arith.maximumf %142, %143 : vector<64x128xf32>
    %145 = vector.shape_cast %144 : vector<64x128xf32> to vector<4x2x8x128xf32>
    %146 = vector.extract_strided_slice %145 {offsets = [0, 0, 0, 0], sizes = [4, 1, 8, 128], strides = [1, 1, 1, 1]} : vector<4x2x8x128xf32> to vector<4x1x8x128xf32>
    %147 = vector.shape_cast %146 : vector<4x1x8x128xf32> to vector<4x8x128xf32>
    %148 = vector.extract_strided_slice %145 {offsets = [0, 1, 0, 0], sizes = [4, 1, 8, 128], strides = [1, 1, 1, 1]} : vector<4x2x8x128xf32> to vector<4x1x8x128xf32>
    %149 = vector.shape_cast %148 : vector<4x1x8x128xf32> to vector<4x8x128xf32>
    %150 = arith.maximumf %147, %149 : vector<4x8x128xf32>
    %151 = vector.shape_cast %150 : vector<4x8x128xf32> to vector<4x4x2x128xf32>
    %152 = vector.extract_strided_slice %151 {offsets = [0, 0, 0, 0], sizes = [4, 4, 1, 128], strides = [1, 1, 1, 1]} : vector<4x4x2x128xf32> to vector<4x4x1x128xf32>
    %153 = vector.shape_cast %152 : vector<4x4x1x128xf32> to vector<4x4x128xf32>
    %154 = vector.extract_strided_slice %151 {offsets = [0, 0, 1, 0], sizes = [4, 4, 1, 128], strides = [1, 1, 1, 1]} : vector<4x4x2x128xf32> to vector<4x4x1x128xf32>
    %155 = vector.shape_cast %154 : vector<4x4x1x128xf32> to vector<4x4x128xf32>
    %156 = arith.maximumf %153, %155 : vector<4x4x128xf32>
    %157 = vector.shape_cast %156 : vector<4x4x128xf32> to vector<1x4x4x128xf32>
    %cst_105 = arith.constant 0.000000e+00 : bf16
    %158 = vector.broadcast %cst_105 : bf16 to vector<1x6x6x128xbf16>
    %c0_106 = arith.constant 0 : index
    %c0_107 = arith.constant 0 : index
    %c0_108 = arith.constant 0 : index
    %c0_109 = arith.constant 0 : index
    %159 = vector.load %arg15[%c0_106, %c0_107, %c0_108, %c0_109] : memref<1x6x6x128xbf16, #tpu.memory_space<vmem>>, vector<1x6x6x128xbf16>
    tpu.vector_store %arg15[%c0_106, %c0_107, %c0_108, %c0_109], %158 {strides = array<i32>} : memref<1x6x6x128xbf16, #tpu.memory_space<vmem>>, vector<1x6x6x128xbf16>,
    %160 = arith.truncf %157 : vector<1x4x4x128xf32> to vector<1x4x4x128xbf16>
    %c0_110 = arith.constant 0 : index
    %c1_111 = arith.constant 1 : index
    %c1_112 = arith.constant 1 : index
    %c0_113 = arith.constant 0 : index
    %161 = vector.load %arg15[%c0_110, %c1_111, %c1_112, %c0_113] : memref<1x6x6x128xbf16, #tpu.memory_space<vmem>>, vector<1x4x4x128xbf16>
    tpu.vector_store %arg15[%c0_110, %c1_111, %c1_112, %c0_113], %160 {strides = array<i32>} : memref<1x6x6x128xbf16, #tpu.memory_space<vmem>>, vector<1x4x4x128xbf16>,
    %c0_114 = arith.constant 0 : index
    %c0_115 = arith.constant 0 : index
    %c0_116 = arith.constant 0 : index
    %c0_117 = arith.constant 0 : index
    %162 = vector.load %arg15[%c0_114, %c0_115, %c0_116, %c0_117] : memref<1x6x6x128xbf16, #tpu.memory_space<vmem>>, vector<1x6x4x128xbf16>
    %c0_118 = arith.constant 0 : index
    %c0_119 = arith.constant 0 : index
    %c1_120 = arith.constant 1 : index
    %c0_121 = arith.constant 0 : index
    %163 = vector.load %arg15[%c0_118, %c0_119, %c1_120, %c0_121] : memref<1x6x6x128xbf16, #tpu.memory_space<vmem>>, vector<1x6x4x128xbf16>
    %c0_122 = arith.constant 0 : index
    %c0_123 = arith.constant 0 : index
    %c2_124 = arith.constant 2 : index
    %c0_125 = arith.constant 0 : index
    %164 = vector.load %arg15[%c0_122, %c0_123, %c2_124, %c0_125] : memref<1x6x6x128xbf16, #tpu.memory_space<vmem>>, vector<1x6x4x128xbf16>
    %165 = vector.extract_strided_slice %162 {offsets = [0, 0, 0, 0], sizes = [1, 4, 4, 128], strides = [1, 1, 1, 1]} : vector<1x6x4x128xbf16> to vector<1x4x4x128xbf16>
    %166 = vector.shape_cast %165 : vector<1x4x4x128xbf16> to vector<16x128xbf16>
    %167 = vector.extract_strided_slice %163 {offsets = [0, 0, 0, 0], sizes = [1, 4, 4, 128], strides = [1, 1, 1, 1]} : vector<1x6x4x128xbf16> to vector<1x4x4x128xbf16>
    %168 = vector.shape_cast %167 : vector<1x4x4x128xbf16> to vector<16x128xbf16>
    %169 = vector.extract_strided_slice %164 {offsets = [0, 0, 0, 0], sizes = [1, 4, 4, 128], strides = [1, 1, 1, 1]} : vector<1x6x4x128xbf16> to vector<1x4x4x128xbf16>
    %170 = vector.shape_cast %169 : vector<1x4x4x128xbf16> to vector<16x128xbf16>
    %171 = vector.extract_strided_slice %162 {offsets = [0, 1, 0, 0], sizes = [1, 4, 4, 128], strides = [1, 1, 1, 1]} : vector<1x6x4x128xbf16> to vector<1x4x4x128xbf16>
    %172 = vector.shape_cast %171 : vector<1x4x4x128xbf16> to vector<16x128xbf16>
    %173 = vector.extract_strided_slice %163 {offsets = [0, 1, 0, 0], sizes = [1, 4, 4, 128], strides = [1, 1, 1, 1]} : vector<1x6x4x128xbf16> to vector<1x4x4x128xbf16>
    %174 = vector.shape_cast %173 : vector<1x4x4x128xbf16> to vector<16x128xbf16>
    %175 = vector.extract_strided_slice %164 {offsets = [0, 1, 0, 0], sizes = [1, 4, 4, 128], strides = [1, 1, 1, 1]} : vector<1x6x4x128xbf16> to vector<1x4x4x128xbf16>
    %176 = vector.shape_cast %175 : vector<1x4x4x128xbf16> to vector<16x128xbf16>
    %177 = vector.extract_strided_slice %162 {offsets = [0, 2, 0, 0], sizes = [1, 4, 4, 128], strides = [1, 1, 1, 1]} : vector<1x6x4x128xbf16> to vector<1x4x4x128xbf16>
    %178 = vector.shape_cast %177 : vector<1x4x4x128xbf16> to vector<16x128xbf16>
    %179 = vector.extract_strided_slice %163 {offsets = [0, 2, 0, 0], sizes = [1, 4, 4, 128], strides = [1, 1, 1, 1]} : vector<1x6x4x128xbf16> to vector<1x4x4x128xbf16>
    %180 = vector.shape_cast %179 : vector<1x4x4x128xbf16> to vector<16x128xbf16>
    %181 = vector.extract_strided_slice %164 {offsets = [0, 2, 0, 0], sizes = [1, 4, 4, 128], strides = [1, 1, 1, 1]} : vector<1x6x4x128xbf16> to vector<1x4x4x128xbf16>
    %182 = vector.shape_cast %181 : vector<1x4x4x128xbf16> to vector<16x128xbf16>
    %183 = tpu.concatenate %166, %168, %170, %172, %174, %176, %178, %180, %182 in 1 : vector<16x128xbf16>, vector<16x128xbf16>, vector<16x128xbf16>, vector<16x128xbf16>, vector<16x128xbf16>, vector<16x128xbf16>, vector<16x128xbf16>, vector<16x128xbf16>, vector<16x128xbf16> -> vector<16x1152xbf16>
    %c0_126 = arith.constant 0 : index
    %c0_127 = arith.constant 0 : index
    %184 = vector.load %arg8[%c0_126, %c0_127] : memref<1152x256xbf16, #tpu.memory_space<vmem>>, vector<1152x256xbf16>
    %cst_128 = arith.constant dense<0.000000e+00> : vector<16x256xf32>
    %185 = tpu.matmul %183, %184, %cst_128 {dimension_numbers = #tpu.dot_dimension_numbers<[1], [0], [0], [1], [0, 0, 1, 1], [], []>} : vector<16x1152xbf16>, vector<1152x256xbf16>, vector<16x256xf32> -> vector<16x256xf32>
    %c0_129 = arith.constant 0 : index
    %c0_130 = arith.constant 0 : index
    %186 = vector.load %arg9[%c0_129, %c0_130] : memref<1x256xf32, #tpu.memory_space<vmem>>, vector<1x256xf32>
    %187 = vector.broadcast %186 : vector<1x256xf32> to vector<16x256xf32>
    %188 = arith.mulf %185, %187 : vector<16x256xf32>
    %c0_131 = arith.constant 0 : index
    %c0_132 = arith.constant 0 : index
    %189 = vector.load %arg10[%c0_131, %c0_132] : memref<1x256xf32, #tpu.memory_space<vmem>>, vector<1x256xf32>
    %190 = vector.broadcast %189 : vector<1x256xf32> to vector<16x256xf32>
    %191 = arith.addf %188, %190 : vector<16x256xf32>
    %cst_133 = arith.constant 0.000000e+00 : f32
    %192 = vector.broadcast %cst_133 : f32 to vector<16x256xf32>
    %193 = arith.maximumf %191, %192 : vector<16x256xf32>
    %194 = vector.shape_cast %193 : vector<16x256xf32> to vector<1x16x256xf32>
    %cst_134 = arith.constant dense<0.000000e+00> : vector<1x256xf32>
    %195 = vector.multi_reduction <add>, %194, %cst_134 [1] : vector<1x16x256xf32> to vector<1x256xf32>
    %cst_135 = arith.constant 6.250000e-02 : f32
    %196 = vector.broadcast %cst_135 : f32 to vector<1x256xf32>
    %197 = arith.mulf %195, %196 : vector<1x256xf32>
    %c0_136 = arith.constant 0 : index
    %c0_137 = arith.constant 0 : index
    %198 = vector.load %arg11[%c0_136, %c0_137] : memref<256x10xf32, #tpu.memory_space<vmem>>, vector<256x10xf32>
    %cst_138 = arith.constant dense<0.000000e+00> : vector<1x10xf32>
    %199 = tpu.matmul %197, %198, %cst_138 {dimension_numbers = #tpu.dot_dimension_numbers<[1], [0], [0], [1], [0, 0, 1, 1], [], []>} : vector<1x256xf32>, vector<256x10xf32>, vector<1x10xf32> -> vector<1x10xf32>
    %c0_139 = arith.constant 0 : index
    %c0_140 = arith.constant 0 : index
    %200 = vector.load %arg12[%c0_139, %c0_140] : memref<1x10xf32, #tpu.memory_space<vmem>>, vector<1x10xf32>
    %201 = arith.addf %199, %200 : vector<1x10xf32>
    %202 = vector.shape_cast %201 : vector<1x10xf32> to vector<1x1x10xf32>
    %c0_141 = arith.constant 0 : index
    %c0_142 = arith.constant 0 : index
    %c0_143 = arith.constant 0 : index
    %203 = vector.load %arg13[%c0_141, %c0_142, %c0_143] : memref<1x1x10xf32, #tpu.memory_space<vmem>>, vector<1x1x10xf32>
    tpu.vector_store %arg13[%c0_141, %c0_142, %c0_143], %202 {strides = array<i32>} : memref<1x1x10xf32, #tpu.memory_space<vmem>>, vector<1x1x10xf32>,
    return
  }
  func.func @transform_0(%arg0: i32) -> (i32, i32, i32, i32) {
    %c0_i32 = arith.constant 0 : i32
    %c0_i32_0 = arith.constant 0 : i32
    %c0_i32_1 = arith.constant 0 : i32
    %c0_i32_2 = arith.constant 0 : i32
    return %arg0, %c0_i32, %c0_i32_0, %c0_i32_1 : i32, i32, i32, i32
  }
  func.func @transform_1(%arg0: i32) -> (i32, i32, i32) {
    %c0_i32 = arith.constant 0 : i32
    %c0_i32_0 = arith.constant 0 : i32
    %c0_i32_1 = arith.constant 0 : i32
    %c0_i32_2 = arith.constant 0 : i32
    return %c0_i32, %c0_i32_0, %c0_i32_1 : i32, i32, i32
  }
  func.func @transform_2(%arg0: i32) -> (i32, i32) {
    %c0_i32 = arith.constant 0 : i32
    %c0_i32_0 = arith.constant 0 : i32
    %c0_i32_1 = arith.constant 0 : i32
    return %c0_i32, %c0_i32_0 : i32, i32
  }
  func.func @transform_3(%arg0: i32) -> (i32, i32) {
    %c0_i32 = arith.constant 0 : i32
    %c0_i32_0 = arith.constant 0 : i32
    %c0_i32_1 = arith.constant 0 : i32
    return %c0_i32, %c0_i32_0 : i32, i32
  }
  func.func @transform_4(%arg0: i32) -> (i32, i32, i32) {
    %c0_i32 = arith.constant 0 : i32
    %c0_i32_0 = arith.constant 0 : i32
    %c0_i32_1 = arith.constant 0 : i32
    %c0_i32_2 = arith.constant 0 : i32
    return %c0_i32, %c0_i32_0, %c0_i32_1 : i32, i32, i32
  }
  func.func @transform_5(%arg0: i32) -> (i32, i32) {
    %c0_i32 = arith.constant 0 : i32
    %c0_i32_0 = arith.constant 0 : i32
    %c0_i32_1 = arith.constant 0 : i32
    return %c0_i32, %c0_i32_0 : i32, i32
  }
  func.func @transform_6(%arg0: i32) -> (i32, i32) {
    %c0_i32 = arith.constant 0 : i32
    %c0_i32_0 = arith.constant 0 : i32
    %c0_i32_1 = arith.constant 0 : i32
    return %c0_i32, %c0_i32_0 : i32, i32
  }
  func.func @transform_7(%arg0: i32) -> (i32, i32) {
    %c0_i32 = arith.constant 0 : i32
    %c0_i32_0 = arith.constant 0 : i32
    %c0_i32_1 = arith.constant 0 : i32
    return %c0_i32, %c0_i32_0 : i32, i32
  }
  func.func @transform_8(%arg0: i32) -> (i32, i32) {
    %c0_i32 = arith.constant 0 : i32
    %c0_i32_0 = arith.constant 0 : i32
    %c0_i32_1 = arith.constant 0 : i32
    return %c0_i32, %c0_i32_0 : i32, i32
  }
  func.func @transform_9(%arg0: i32) -> (i32, i32) {
    %c0_i32 = arith.constant 0 : i32
    %c0_i32_0 = arith.constant 0 : i32
    %c0_i32_1 = arith.constant 0 : i32
    return %c0_i32, %c0_i32_0 : i32, i32
  }
  func.func @transform_10(%arg0: i32) -> (i32, i32) {
    %c0_i32 = arith.constant 0 : i32
    %c0_i32_0 = arith.constant 0 : i32
    %c0_i32_1 = arith.constant 0 : i32
    return %c0_i32, %c0_i32_0 : i32, i32
  }
  func.func @transform_11(%arg0: i32) -> (i32, i32) {
    %c0_i32 = arith.constant 0 : i32
    %c0_i32_0 = arith.constant 0 : i32
    %c0_i32_1 = arith.constant 0 : i32
    return %c0_i32, %c0_i32_0 : i32, i32
  }
  func.func @transform_12(%arg0: i32) -> (i32, i32, i32) {
    %c0_i32 = arith.constant 0 : i32
    %c0_i32_0 = arith.constant 0 : i32
    %c0_i32_1 = arith.constant 0 : i32
    return %arg0, %c0_i32, %c0_i32_0 : i32, i32, i32
  }
}

</mosaic_0001>

<llo_original>
// kernel: student_forward.1
$region0: #{student_forward.1}
  #allocation0 [shape = 'u32[]', space=smem, size = 0x4, offset = 0x4, fixed_abs, tag = 'smem constant byte address 0x4 - core index']
  #allocation1 [shape = 'u32[72,128]{1,0:T(1,128)}', space=vmem, size = 0x9000, scoped, tag = 'internal scratch']
  #allocation2 [shape = 'bf16[1,10,10,64]{3,2,1,0:T(8,128)(2,1)}', space=vmem, size = 0xa000, scoped, tag = 'scratch operand']
  #allocation3 [shape = 'bf16[1,6,6,128]{3,2,1,0:T(8,128)(2,1)}', space=vmem, size = 0x3000, scoped, tag = 'scratch operand']
  %s0 = inlined_call_operand.vmem [shape: bf16[2,18,18,3], index: 0, kind: input, shape index: {}]
  %s1 = inlined_call_operand.vmem [shape: bf16[9,3,64], index: 1, kind: input, shape index: {}]
  %s2 = inlined_call_operand.vmem [shape: f32[1,64], index: 2, kind: input, shape index: {}]
  %s3 = inlined_call_operand.vmem [shape: f32[1,64], index: 3, kind: input, shape index: {}]
  %s4 = inlined_call_operand.vmem [shape: bf16[9,64,128], index: 4, kind: input, shape index: {}]
  %s5 = inlined_call_operand.vmem [shape: f32[1,128], index: 5, kind: input, shape index: {}]
  %s6 = inlined_call_operand.vmem [shape: f32[1,128], index: 6, kind: input, shape index: {}]
  %s7 = inlined_call_operand.hbm [shape: bf16[1152,256], index: 7, kind: input, shape index: {}]
  %s8 = inlined_call_operand.vmem [shape: f32[1,256], index: 8, kind: input, shape index: {}]
  %s9 = inlined_call_operand.vmem [shape: f32[1,256], index: 9, kind: input, shape index: {}]
  %s10 = inlined_call_operand.vmem [shape: f32[256,10], index: 10, kind: input, shape index: {}]
  %s11 = inlined_call_operand.vmem [shape: f32[1,10], index: 11, kind: input, shape index: {}]
  %s12 = inlined_call_operand.hbm [shape: f32[2,1,10], index: 12, kind: output, shape index: {}]
  %s13 = sld [smem:[#allocation0]]
  $region85: #{student_forward.1} parent=0
    _
  %s15 = ssub.s32 1, %s13
  %s16 = scalar_select 0, %s15, %s13
  $region1: #{student_forward.1} parent=0
    #allocation4 [shape = 'u8[589824]{0}', space=vmem, size = 0x90000, scoped, tag = 'input window, operand 7, single buffered']
    #allocation5 [shape = 's32[2]{0}', space=sflag, size = 0x8, scoped, tag = 'scoped memory for student_forward.1']
    #allocation6 [shape = 's32[2]{0}', space=sflag, size = 0x8, scoped, tag = 'scoped memory for student_forward.1']
    #allocation7 [shape = 'u8[1024]{0}', space=vmem, size = 0x400, scoped, tag = 'output window, operand 0']
    %17 = vsyncpa [#allocation5], 0
    %18 = vsyncpa [#allocation6], 0
    %s19 = scalar_lea.sflag [#allocation6], 1
    %20 = vsyncpa %s19, 0
    loop: start=0, step=1, limit=4
    $region2: #{student_forward.1} parent=1 // loop_pre_header
      _
    $region3: #{student_forward.1} parent=1 // loop_header
      %s22 = sphi 0, %s26
      %p23 = scmp.ge.s32.totalorder %s22, 4
      %s32 = sphi 0, %s34
      %s35 = sphi 0, %s32
      %s36 = sphi 0, %s35
      %s52 = sphi 0, %s36
      %s56 = sphi 0, %s56
      %s58 = sphi 0, %s56
      %s59 = sphi 0, %s58
      %s73 = sphi 0, %s59
      %s77 = sphi 0, %s77
      %s79 = sphi 0, %s77
      %s80 = sphi 0, %s79
      %s94 = sphi 0, %s80
      %s98 = sphi 0, %s98
      %s100 = sphi 0, %s98
      %s101 = sphi 0, %s100
      %s115 = sphi 0, %s101
      %s119 = sphi 0, %s119
      %s121 = sphi 0, %s119
      %s122 = sphi 0, %s121
      %s136 = sphi 0, %s122
      %s140 = sphi 0, %s140
      %s142 = sphi 0, %s140
      %s143 = sphi 0, %s142
      %s157 = sphi 0, %s143
      %s161 = sphi 0, %s161
      %s163 = sphi 0, %s161
      %s164 = sphi 0, %s163
      %s178 = sphi 0, %s164
      %s182 = sphi 0, %s182
      %s184 = sphi 0, %s182
      %s185 = sphi 0, %s184
      %s199 = sphi 0, %s185
      %s203 = sphi 0, %s203
      %s205 = sphi 0, %s203
      %s206 = sphi 0, %s205
      %s220 = sphi 0, %s206
      %s224 = sphi 0, %s224
      %s226 = sphi 0, %s224
      %s227 = sphi 0, %s226
      %s241 = sphi 0, %s227
      %s245 = sphi 0, %s245
      %s247 = sphi 0, %s245
      %s248 = sphi 0, %s247
      %s262 = sphi 0, %s248
      %s266 = sphi 0, %s266
      %s268 = sphi 0, %s266
      %s269 = sphi 0, %s268
      %s283 = sphi 0, %s269
      %s289 = sphi 0, %s291
      %s292 = sphi 0, %s289
      %s293 = sphi 0, %s292
      %s309 = sphi 0, %s293
    $region4: #{student_forward.1} parent=1 // loop_header_branch
      %25 = sbr.rel (%p23) target = $region8
    $region5: #{student_forward.1} parent=1 // loop_body
      %s27 = ssub.s32 %s22, 1
      %s28 = ssub.s32 %s22, 2
      %s29 = sadd.s32 %s22, 1
      %s30 = ssub.s32 %s22, %s29
      %p31 = scmp.eq.s32.totalorder %s30, 0
      %s33 = sadd.s32 %s32, 1
      %s34 = scalar_select %p31, %s32, %s33
      %p37 = pneg %p31
      %p38 = scmp.eq.s32.totalorder %s22, 1
      %p39 = por %p37, %p38
      %p40 = scmp.ne.s32.totalorder %s32, %s35
      %p41 = scmp.eq.s32.totalorder %s22, 0
      %p42 = por %p40, %p41
      %p43 = scmp.ne.s32.totalorder %s32, %s35
      %p44 = scmp.eq.s32.totalorder %s27, 1
      %p45 = por %p43, %p44
      %p46 = scmp.ne.s32.totalorder %s35, %s36
      %p47 = scmp.eq.s32.totalorder %s27, 0
      %p48 = por %p46, %p47
      %p49 = scmp.ne.s32.totalorder %s35, %s36
      %p50 = scmp.eq.s32.totalorder %s28, 1
      %p51 = por %p49, %p50
      %p53 = scmp.ne.s32.totalorder %s36, %s52
      %p54 = scmp.eq.s32.totalorder %s28, 0
      %p55 = por %p53, %p54
      %s57 = sadd.s32 %s56, 1
      %p60 = scmp.eq.s32.totalorder %s22, 1
      %p61 = scmp.ne.s32.totalorder %s56, %s58
      %p62 = scmp.eq.s32.totalorder %s22, 0
      %p63 = por %p61, %p62
      %p64 = scmp.ne.s32.totalorder %s56, %s58
      %p65 = scmp.eq.s32.totalorder %s27, 1
      %p66 = por %p64, %p65
      %p67 = scmp.ne.s32.totalorder %s58, %s59
      %p68 = scmp.eq.s32.totalorder %s27, 0
      %p69 = por %p67, %p68
      %p70 = scmp.ne.s32.totalorder %s58, %s59
      %p71 = scmp.eq.s32.totalorder %s28, 1
      %p72 = por %p70, %p71
      %p74 = scmp.ne.s32.totalorder %s59, %s73
      %p75 = scmp.eq.s32.totalorder %s28, 0
      %p76 = por %p74, %p75
      %s78 = sadd.s32 %s77, 1
      %p81 = scmp.eq.s32.totalorder %s22, 1
      %p82 = scmp.ne.s32.totalorder %s77, %s79
      %p83 = scmp.eq.s32.totalorder %s22, 0
      %p84 = por %p82, %p83
      %p85 = scmp.ne.s32.totalorder %s77, %s79
      %p86 = scmp.eq.s32.totalorder %s27, 1
      %p87 = por %p85, %p86
      %p88 = scmp.ne.s32.totalorder %s79, %s80
      %p89 = scmp.eq.s32.totalorder %s27, 0
      %p90 = por %p88, %p89
      %p91 = scmp.ne.s32.totalorder %s79, %s80
      %p92 = scmp.eq.s32.totalorder %s28, 1
      %p93 = por %p91, %p92
      %p95 = scmp.ne.s32.totalorder %s80, %s94
      %p96 = scmp.eq.s32.totalorder %s28, 0
      %p97 = por %p95, %p96
      %s99 = sadd.s32 %s98, 1
      %p102 = scmp.eq.s32.totalorder %s22, 1
      %p103 = scmp.ne.s32.totalorder %s98, %s100
      %p104 = scmp.eq.s32.totalorder %s22, 0
      %p105 = por %p103, %p104
      %p106 = scmp.ne.s32.totalorder %s98, %s100
      %p107 = scmp.eq.s32.totalorder %s27, 1
      %p108 = por %p106, %p107
      %p109 = scmp.ne.s32.totalorder %s100, %s101
      %p110 = scmp.eq.s32.totalorder %s27, 0
      %p111 = por %p109, %p110
      %p112 = scmp.ne.s32.totalorder %s100, %s101
      %p113 = scmp.eq.s32.totalorder %s28, 1
      %p114 = por %p112, %p113
      %p116 = scmp.ne.s32.totalorder %s101, %s115
      %p117 = scmp.eq.s32.totalorder %s28, 0
      %p118 = por %p116, %p117
      %s120 = sadd.s32 %s119, 1
      %p123 = scmp.eq.s32.totalorder %s22, 1
      %p124 = scmp.ne.s32.totalorder %s119, %s121
      %p125 = scmp.eq.s32.totalorder %s22, 0
      %p126 = por %p124, %p125
      %p127 = scmp.ne.s32.totalorder %s119, %s121
      %p128 = scmp.eq.s32.totalorder %s27, 1
      %p129 = por %p127, %p128
      %p130 = scmp.ne.s32.totalorder %s121, %s122
      %p131 = scmp.eq.s32.totalorder %s27, 0
      %p132 = por %p130, %p131
      %p133 = scmp.ne.s32.totalorder %s121, %s122
      %p134 = scmp.eq.s32.totalorder %s28, 1
      %p135 = por %p133, %p134
      %p137 = scmp.ne.s32.totalorder %s122, %s136
      %p138 = scmp.eq.s32.totalorder %s28, 0
      %p139 = por %p137, %p138
      %s141 = sadd.s32 %s140, 1
      %p144 = scmp.eq.s32.totalorder %s22, 1
      %p145 = scmp.ne.s32.totalorder %s140, %s142
      %p146 = scmp.eq.s32.totalorder %s22, 0
      %p147 = por %p145, %p146
      %p148 = scmp.ne.s32.totalorder %s140, %s142
      %p149 = scmp.eq.s32.totalorder %s27, 1
      %p150 = por %p148, %p149
      %p151 = scmp.ne.s32.totalorder %s142, %s143
      %p152 = scmp.eq.s32.totalorder %s27, 0
      %p153 = por %p151, %p152
      %p154 = scmp.ne.s32.totalorder %s142, %s143
      %p155 = scmp.eq.s32.totalorder %s28, 1
      %p156 = por %p154, %p155
      %p158 = scmp.ne.s32.totalorder %s143, %s157
      %p159 = scmp.eq.s32.totalorder %s28, 0
      %p160 = por %p158, %p159
      %s162 = sadd.s32 %s161, 1
      %p165 = scmp.eq.s32.totalorder %s22, 1
      %p166 = scmp.ne.s32.totalorder %s161, %s163
      %p167 = scmp.eq.s32.totalorder %s22, 0
      %p168 = por %p166, %p167
      %p169 = scmp.ne.s32.totalorder %s161, %s163
      %p170 = scmp.eq.s32.totalorder %s27, 1
      %p171 = por %p169, %p170
      %p172 = scmp.ne.s32.totalorder %s163, %s164
      %p173 = scmp.eq.s32.totalorder %s27, 0
      %p174 = por %p172, %p173
      %p175 = scmp.ne.s32.totalorder %s163, %s164
      %p176 = scmp.eq.s32.totalorder %s28, 1
      %p177 = por %p175, %p176
      %p179 = scmp.ne.s32.totalorder %s164, %s178
      %p180 = scmp.eq.s32.totalorder %s28, 0
      %p181 = por %p179, %p180
      %s183 = sadd.s32 %s182, 1
      %p186 = scmp.eq.s32.totalorder %s22, 1
      %p187 = scmp.ne.s32.totalorder %s182, %s184
      %p188 = scmp.eq.s32.totalorder %s22, 0
      %p189 = por %p187, %p188
      %p190 = scmp.ne.s32.totalorder %s182, %s184
      %p191 = scmp.eq.s32.totalorder %s27, 1
      %p192 = por %p190, %p191
      %p193 = scmp.ne.s32.totalorder %s184, %s185
      %p194 = scmp.eq.s32.totalorder %s27, 0
      %p195 = por %p193, %p194
      %p196 = scmp.ne.s32.totalorder %s184, %s185
      %p197 = scmp.eq.s32.totalorder %s28, 1
      %p198 = por %p196, %p197
      %p200 = scmp.ne.s32.totalorder %s185, %s199
      %p201 = scmp.eq.s32.totalorder %s28, 0
      %p202 = por %p200, %p201
      %s204 = sadd.s32 %s203, 1
      %p207 = scmp.eq.s32.totalorder %s22, 1
      %p208 = scmp.ne.s32.totalorder %s203, %s205
      %p209 = scmp.eq.s32.totalorder %s22, 0
      %p210 = por %p208, %p209
      %p211 = scmp.ne.s32.totalorder %s203, %s205
      %p212 = scmp.eq.s32.totalorder %s27, 1
      %p213 = por %p211, %p212
      %p214 = scmp.ne.s32.totalorder %s205, %s206
      %p215 = scmp.eq.s32.totalorder %s27, 0
      %p216 = por %p214, %p215
      %p217 = scmp.ne.s32.totalorder %s205, %s206
      %p218 = scmp.eq.s32.totalorder %s28, 1
      %p219 = por %p217, %p218
      %p221 = scmp.ne.s32.totalorder %s206, %s220
      %p222 = scmp.eq.s32.totalorder %s28, 0
      %p223 = por %p221, %p222
      %s225 = sadd.s32 %s224, 1
      %p228 = scmp.eq.s32.totalorder %s22, 1
      %p229 = scmp.ne.s32.totalorder %s224, %s226
      %p230 = scmp.eq.s32.totalorder %s22, 0
      %p231 = por %p229, %p230
      %p232 = scmp.ne.s32.totalorder %s224, %s226
      %p233 = scmp.eq.s32.totalorder %s27, 1
      %p234 = por %p232, %p233
      %p235 = scmp.ne.s32.totalorder %s226, %s227
      %p236 = scmp.eq.s32.totalorder %s27, 0
      %p237 = por %p235, %p236
      %p238 = scmp.ne.s32.totalorder %s226, %s227
      %p239 = scmp.eq.s32.totalorder %s28, 1
      %p240 = por %p238, %p239
      %p242 = scmp.ne.s32.totalorder %s227, %s241
      %p243 = scmp.eq.s32.totalorder %s28, 0
      %p244 = por %p242, %p243
      %s246 = sadd.s32 %s245, 1
      %p249 = scmp.eq.s32.totalorder %s22, 1
      %p250 = scmp.ne.s32.totalorder %s245, %s247
      %p251 = scmp.eq.s32.totalorder %s22, 0
      %p252 = por %p250, %p251
      %p253 = scmp.ne.s32.totalorder %s245, %s247
      %p254 = scmp.eq.s32.totalorder %s27, 1
      %p255 = por %p253, %p254
      %p256 = scmp.ne.s32.totalorder %s247, %s248
      %p257 = scmp.eq.s32.totalorder %s27, 0
      %p258 = por %p256, %p257
      %p259 = scmp.ne.s32.totalorder %s247, %s248
      %p260 = scmp.eq.s32.totalorder %s28, 1
      %p261 = por %p259, %p260
      %p263 = scmp.ne.s32.totalorder %s248, %s262
      %p264 = scmp.eq.s32.totalorder %s28, 0
      %p265 = por %p263, %p264
      %s267 = sadd.s32 %s266, 1
      %p270 = scmp.eq.s32.totalorder %s22, 1
      %p271 = scmp.ne.s32.totalorder %s266, %s268
      %p272 = scmp.eq.s32.totalorder %s22, 0
      %p273 = por %p271, %p272
      %p274 = scmp.ne.s32.totalorder %s266, %s268
      %p275 = scmp.eq.s32.totalorder %s27, 1
      %p276 = por %p274, %p275
      %p277 = scmp.ne.s32.totalorder %s268, %s269
      %p278 = scmp.eq.s32.totalorder %s27, 0
      %p279 = por %p277, %p278
      %p280 = scmp.ne.s32.totalorder %s268, %s269
      %p281 = scmp.eq.s32.totalorder %s28, 1
      %p282 = por %p280, %p281
      %p284 = scmp.ne.s32.totalorder %s269, %s283
      %p285 = scmp.eq.s32.totalorder %s28, 0
      %p286 = por %p284, %p285
      %s287 = ssub.s32 %s22, %s29
      %p288 = scmp.eq.s32.totalorder %s287, 0
      %s290 = sadd.s32 %s289, 1
      %s291 = scalar_select %p288, %s289, %s290
      %p294 = pneg %p288
      %p295 = scmp.eq.s32.totalorder %s22, 1
      %p296 = por %p294, %p295
      %p297 = scmp.ne.s32.totalorder %s289, %s292
      %p298 = scmp.eq.s32.totalorder %s22, 0
      %p299 = por %p297, %p298
      %p300 = scmp.ne.s32.totalorder %s289, %s292
      %p301 = scmp.eq.s32.totalorder %s27, 1
      %p302 = por %p300, %p301
      %p303 = scmp.ne.s32.totalorder %s292, %s293
      %p304 = scmp.eq.s32.totalorder %s27, 0
      %p305 = por %p303, %p304
      %p306 = scmp.ne.s32.totalorder %s292, %s293
      %p307 = scmp.eq.s32.totalorder %s28, 1
      %p308 = por %p306, %p307
      %p310 = scmp.ne.s32.totalorder %s293, %s309
      %p311 = scmp.eq.s32.totalorder %s28, 0
      %p312 = por %p310, %p311
      %p313 = scmp.le.s32.totalorder 1, %s22
      %p314 = scmp.lt.s32.totalorder %s22, 3
      %p315 = pnand %p313, %p314
      %p316 = pneg %p315
      // Predicated region
      $region9: #{student_forward.1} parent=5 // pred_check
        _
      $region10: #{student_forward.1} parent=5 // pred_check_branch
        %318 = sbr.rel (%p315) target = $region12
      $region11: #{student_forward.1} parent=5 // pred_region
        %s319 = ssub.s32 %s22, 1
        // Predicated region
        $region13: #{student_forward.1} parent=11 // pred_check
          %p320 = pneg %p69
        $region14: #{student_forward.1} parent=11 // pred_check_branch
          %322 = sbr.rel (%p320) target = $region16
        $region15: #{student_forward.1} parent=11 // pred_region
          _
        $region16: #{student_forward.1} parent=11 // pred_fallthru
          _
        // Predicated region
        $region17: #{student_forward.1} parent=11 // pred_check
          %p323 = pneg %p90
        $region18: #{student_forward.1} parent=11 // pred_check_branch
          %325 = sbr.rel (%p323) target = $region20
        $region19: #{student_forward.1} parent=11 // pred_region
          _
        $region20: #{student_forward.1} parent=11 // pred_fallthru
          _
        // Predicated region
        $region21: #{student_forward.1} parent=11 // pred_check
          %p326 = pneg %p111
        $region22: #{student_forward.1} parent=11 // pred_check_branch
          %328 = sbr.rel (%p326) target = $region24
        $region23: #{student_forward.1} parent=11 // pred_region
          _
        $region24: #{student_forward.1} parent=11 // pred_fallthru
          _
        // Predicated region
        $region25: #{student_forward.1} parent=11 // pred_check
          %p329 = pneg %p132
        $region26: #{student_forward.1} parent=11 // pred_check_branch
          %331 = sbr.rel (%p329) target = $region28
        $region27: #{student_forward.1} parent=11 // pred_region
          _
        $region28: #{student_forward.1} parent=11 // pred_fallthru
          _
        // Predicated region
        $region29: #{student_forward.1} parent=11 // pred_check
          %p332 = pneg %p153
        $region30: #{student_forward.1} parent=11 // pred_check_branch
          %334 = sbr.rel (%p332) target = $region32
        $region31: #{student_forward.1} parent=11 // pred_region
          _
        $region32: #{student_forward.1} parent=11 // pred_fallthru
          _
        // Predicated region
        $region33: #{student_forward.1} parent=11 // pred_check
          %p335 = pneg %p174
        $region34: #{student_forward.1} parent=11 // pred_check_branch
          %337 = sbr.rel (%p335) target = $region36
        $region35: #{student_forward.1} parent=11 // pred_region
          _
        $region36: #{student_forward.1} parent=11 // pred_fallthru
          _
        // Predicated region
        $region37: #{student_forward.1} parent=11 // pred_check
          %p338 = pneg %p195
        $region38: #{student_forward.1} parent=11 // pred_check_branch
          %340 = sbr.rel (%p338) target = $region40
        $region39: #{student_forward.1} parent=11 // pred_region
          %342 = vsyncadd [#allocation5], 0
          %s343 = sshll.u32 %s7, 4
          %s344 = int_to_ptr.hbm [resolvable:$true] %s343
          %s345 = sshll.u32 [#allocation4], 4
          %s346 = int_to_ptr.vmem [resolvable:$true] %s345
          %351 = dma.hbm_to_vmem [thread:$0]  %s344, 18432, %s346, [#allocation5], 128, 128, 8
        $region40: #{student_forward.1} parent=11 // pred_fallthru
          _
        // Predicated region
        $region41: #{student_forward.1} parent=11 // pred_check
          %p352 = pneg %p216
        $region42: #{student_forward.1} parent=11 // pred_check_branch
          %354 = sbr.rel (%p352) target = $region44
        $region43: #{student_forward.1} parent=11 // pred_region
          _
        $region44: #{student_forward.1} parent=11 // pred_fallthru
          _
        // Predicated region
        $region45: #{student_forward.1} parent=11 // pred_check
          %p355 = pneg %p237
        $region46: #{student_forward.1} parent=11 // pred_check_branch
          %357 = sbr.rel (%p355) target = $region48
        $region47: #{student_forward.1} parent=11 // pred_region
          _
        $region48: #{student_forward.1} parent=11 // pred_fallthru
          _
        // Predicated region
        $region49: #{student_forward.1} parent=11 // pred_check
          %p358 = pneg %p258
        $region50: #{student_forward.1} parent=11 // pred_check_branch
          %360 = sbr.rel (%p358) target = $region52
        $region51: #{student_forward.1} parent=11 // pred_region
          _
        $region52: #{student_forward.1} parent=11 // pred_fallthru
          _
        // Predicated region
        $region53: #{student_forward.1} parent=11 // pred_check
          %p361 = pneg %p279
        $region54: #{student_forward.1} parent=11 // pred_check_branch
          %363 = sbr.rel (%p361) target = $region56
        $region55: #{student_forward.1} parent=11 // pred_region
          _
        $region56: #{student_forward.1} parent=11 // pred_fallthru
          _
      $region12: #{student_forward.1} parent=5 // pred_fallthru
        _
      %p364 = scmp.lt.s32.totalorder %s22, 2
      // Predicated region
      $region57: #{student_forward.1} parent=5 // pred_check
        %p365 = pneg %p364
      $region58: #{student_forward.1} parent=5 // pred_check_branch
        %367 = sbr.rel (%p365) target = $region60
      $region59: #{student_forward.1} parent=5 // pred_region
        // Predicated region
        $region61: #{student_forward.1} parent=59 // pred_check
          %p368 = pneg %p42
        $region62: #{student_forward.1} parent=59 // pred_check_branch
          %370 = sbr.rel (%p368) target = $region64
        $region63: #{student_forward.1} parent=59 // pred_region
          %p371 = scmp.lt.s32.totalorder %s22, 1
          %s372 = scalar_select %p371, %s22, 1
          %s373 = smul.addr %s372, 54
          %s374 = smul.addr %s373, 4
          %s375 = scalar_lea.vmem %s0, %s374
        $region64: #{student_forward.1} parent=59 // pred_fallthru
          _
      $region60: #{student_forward.1} parent=5 // pred_fallthru
        _
      %p376 = scmp.le.s32.totalorder 1, %s22
      %p377 = scmp.lt.s32.totalorder %s22, 3
      %p378 = pnand %p376, %p377
      %p379 = pneg %p378
      // Predicated region
      $region65: #{student_forward.1} parent=5 // pred_check
        _
      $region66: #{student_forward.1} parent=5 // pred_check_branch
        %381 = sbr.rel (%p378) target = $region68
      $region67: #{student_forward.1} parent=5 // pred_region
        %s382 = ssub.s32 %s22, 1
        // Predicated region
        $region69: #{student_forward.1} parent=67 // pred_check
          %p383 = pneg %p195
        $region70: #{student_forward.1} parent=67 // pred_check_branch
          %385 = sbr.rel (%p383) target = $region72
        $region71: #{student_forward.1} parent=67 // pred_region
          %387 = dma.done [#allocation5], 18432
        $region72: #{student_forward.1} parent=67 // pred_fallthru
          _
        %p388 = scmp.lt.s32.totalorder %s27, 1
        %s389 = scalar_select %p388, %s27, 1
        %s390 = smul.addr %s389, 54
        %s391 = smul.addr %s390, 4
        %s392 = scalar_lea.vmem %s0, %s391
        %p393 = pneg %p48
        %p394 = pneg %p45
        %p395 = pneg %p69
        %p396 = pneg %p66
        %p397 = pneg %p90
        %p398 = pneg %p87
        %p399 = pneg %p111
        %p400 = pneg %p108
        %p401 = pneg %p132
        %p402 = pneg %p129
        %p403 = pneg %p153
        %p404 = pneg %p150
        %p405 = pneg %p174
        %p406 = pneg %p171
        %p407 = pneg %p195
        %p408 = pneg %p192
        %p409 = pneg %p216
        %p410 = pneg %p213
        %p411 = pneg %p237
        %p412 = pneg %p234
        %p413 = pneg %p258
        %p414 = pneg %p255
        %p415 = pneg %p279
        %p416 = pneg %p276
        %p417 = pneg %p305
        %p418 = pneg %p302
        %s419 = sand.u32 %s292, 1
        %s420 = scalar_lea.sflag [#allocation6], %s419
        %s421 = sand.u32 %s292, 1
        %s422 = scalar_lea.vmem [#allocation7], %s421
        %p423 = scmp.lt.s32.totalorder %s27, 1
        %s424 = scalar_select %p423, %s27, 1
        %s425 = smul.addr %s424, 54
        %s426 = smul.addr %s425, 4
        %s427 = scalar_lea.vmem %s0, %s426
        %v429 = vld [vmem:[%s427] sm:$0xf]
        %v430 = vld [vmem:[%s427 + $0x4] sm:$0xf]
        %v431 = vld [vmem:[%s427 + $0xc] sm:$0xf]
        %v432 = vld [vmem:[%s427 + $0x10] sm:$0xf]
        %v433 = vld [vmem:[%s427 + $0x18] sm:$0xf]
        %v434 = vld [vmem:[%s427 + $0x1c] sm:$0xf]
        %v435 = vld [vmem:[%s427 + $0x24] sm:$0xf]
        %v436 = vld [vmem:[%s427 + $0x28] sm:$0xf]
        %v437 = vld [vmem:[%s427 + $0x30] sm:$0xf]
        %v438 = vld [vmem:[%s427 + $0x34] sm:$0xf]
        %v439 = vld [vmem:[%s427 + $0x3c] sm:$0xf]
        %v440 = vld [vmem:[%s427 + $0x40] sm:$0xf]
        %v441 = vld [vmem:[%s427 + $0x48] sm:$0xf]
        %v442 = vld [vmem:[%s427 + $0x4c] sm:$0xf]
        %v443 = vld [vmem:[%s427 + $0x54] sm:$0xf]
        %v444 = vld [vmem:[%s427 + $0x58] sm:$0xf]
        %v445 = vld [vmem:[%s427 + $0x60] sm:$0xf]
        %v446 = vld [vmem:[%s427 + $0x64] sm:$0xf]
        %v447 = vld [vmem:[%s427 + $0x6c] sm:$0xf]
        %v448 = vld [vmem:[%s427 + $0x70] sm:$0xf]
        %v449 = vld [vmem:[%s427 + $0x78] sm:$0xf]
        %v450 = vld [vmem:[%s427 + $0x7c] sm:$0xf]
        %v451 = vld [vmem:[%s427 + $0x84] sm:$0xf]
        %v452 = vld [vmem:[%s427 + $0x88] sm:$0xf]
        %v453 = vld [vmem:[%s427 + $0x90] sm:$0xf]
        %v454 = vld [vmem:[%s427 + $0x94] sm:$0xf]
        %v455 = vld [vmem:[%s427 + $0x9c] sm:$0xf]
        %v456 = vld [vmem:[%s427 + $0xa0] sm:$0xf]
        %v457 = vld [vmem:[%s427 + $0xa8] sm:$0xf]
        %v458 = vld [vmem:[%s427 + $0xac] sm:$0xf]
        %v459 = vld [vmem:[%s427 + $0xb4] sm:$0xf]
        %v460 = vld [vmem:[%s427 + $0xb8] sm:$0xf]
        %v461 = vld [vmem:[%s427 + $0xc0] sm:$0xf]
        %v462 = vld [vmem:[%s427 + $0xc4] sm:$0xf]
        %v463 = vld [vmem:[%s427 + $0xcc] sm:$0xf]
        %v464 = vld [vmem:[%s427 + $0xd0] sm:$0xf]
        %v465 = vld [vmem:[%s427 + $0x8] sm:$0x1]
        %v466 = vld [vmem:[%s427 + $0x14] sm:$0x1]
        %v467 = vld [vmem:[%s427 + $0x20] sm:$0x1]
        %v468 = vld [vmem:[%s427 + $0x2c] sm:$0x1]
        %v469 = vld [vmem:[%s427 + $0x38] sm:$0x1]
        %v470 = vld [vmem:[%s427 + $0x44] sm:$0x1]
        %v471 = vld [vmem:[%s427 + $0x50] sm:$0x1]
        %v472 = vld [vmem:[%s427 + $0x5c] sm:$0x1]
        %v473 = vld [vmem:[%s427 + $0x68] sm:$0x1]
        %v474 = vld [vmem:[%s427 + $0x74] sm:$0x1]
        %v475 = vld [vmem:[%s427 + $0x80] sm:$0x1]
        %v476 = vld [vmem:[%s427 + $0x8c] sm:$0x1]
        %v477 = vld [vmem:[%s427 + $0x98] sm:$0x1]
        %v478 = vld [vmem:[%s427 + $0xa4] sm:$0x1]
        %v479 = vld [vmem:[%s427 + $0xb0] sm:$0x1]
        %v480 = vld [vmem:[%s427 + $0xbc] sm:$0x1]
        %v481 = vld [vmem:[%s427 + $0xc8] sm:$0x1]
        %v482 = vld [vmem:[%s427 + $0xd4] sm:$0x1]
        %v483 = vld [vmem:[%s427] sm:$0xe]
        %v484 = vld [vmem:[%s427 + $0xc] sm:$0xe]
        %v485 = vld [vmem:[%s427 + $0x18] sm:$0xe]
        %v486 = vld [vmem:[%s427 + $0x24] sm:$0xe]
        %v487 = vld [vmem:[%s427 + $0x30] sm:$0xe]
        %v488 = vld [vmem:[%s427 + $0x3c] sm:$0xe]
        %v489 = vld [vmem:[%s427 + $0x48] sm:$0xe]
        %v490 = vld [vmem:[%s427 + $0x54] sm:$0xe]
        %v491 = vld [vmem:[%s427 + $0x60] sm:$0xe]
        %v492 = vld [vmem:[%s427 + $0x6c] sm:$0xe]
        %v493 = vld [vmem:[%s427 + $0x78] sm:$0xe]
        %v494 = vld [vmem:[%s427 + $0x84] sm:$0xe]
        %v495 = vld [vmem:[%s427 + $0x90] sm:$0xe]
        %v496 = vld [vmem:[%s427 + $0x9c] sm:$0xe]
        %v497 = vld [vmem:[%s427 + $0xa8] sm:$0xe]
        %v498 = vld [vmem:[%s427 + $0xb4] sm:$0xe]
        %v499 = vld [vmem:[%s427 + $0xc0] sm:$0xe]
        %v500 = vld [vmem:[%s427 + $0xcc] sm:$0xe]
        %v501 = vld [vmem:[%s1] sm:$0x3]
        %vm502 = vsmask.f32 3328
        %vm503 = vsmask.f32 7440
        %vm504 = vmor %vm502, %vm503
        %v506 = vshrl.u32 %v429, 16
        %v508 = vrot.slane %v506, 4
        %v509 = vshll.u32 %v429, 16
        %v511 = vrot.slane %v509, 5
        %v512 = vor.u32 %v508, %v511
        %v513 = vrot.slane %v512, 4
        %v515 = vshll.u32 %v430, 16
        %v517 = vrot.slane %v515, 5
        %v518 = vsel %vm504, %v513, %v517
        %v519 = vshrl.u32 %v430, 16
        %v521 = vrot.slane %v519, 4
        %v522 = vor.u32 %v521, %v517
        %v523 = vrot.slane %v522, 4
        %v525 = vshll.u32 %v465, 16
        %v527 = vrot.slane %v525, 5
        %v528 = vsel %vm504, %v523, %v527
        %v530 = vshrl.u32 %v431, 16
        %v532 = vrot.slane %v530, 4
        %v533 = vshll.u32 %v431, 16
        %v535 = vrot.slane %v533, 5
        %v536 = vor.u32 %v532, %v535
        %v537 = vrot.slane %v536, 4
        %v539 = vshll.u32 %v432, 16
        %v541 = vrot.slane %v539, 5
        %v542 = vsel %vm504, %v537, %v541
        %v543 = vshrl.u32 %v432, 16
        %v545 = vrot.slane %v543, 4
        %v546 = vor.u32 %v545, %v541
        %v547 = vrot.slane %v546, 4
        %v549 = vshll.u32 %v466, 16
        %v551 = vrot.slane %v549, 5
        %v552 = vsel %vm504, %v547, %v551
        %v554 = vshrl.u32 %v433, 16
        %v556 = vrot.slane %v554, 4
        %v557 = vshll.u32 %v433, 16
        %v559 = vrot.slane %v557, 5
        %v560 = vor.u32 %v556, %v559
        %v561 = vrot.slane %v560, 4
        %v563 = vshll.u32 %v434, 16
        %v565 = vrot.slane %v563, 5
        %v566 = vsel %vm504, %v561, %v565
        %v567 = vshrl.u32 %v434, 16
        %v569 = vrot.slane %v567, 4
        %v570 = vor.u32 %v569, %v565
        %v571 = vrot.slane %v570, 4
        %v573 = vshll.u32 %v467, 16
        %v575 = vrot.slane %v573, 5
        %v576 = vsel %vm504, %v571, %v575
        %v578 = vshrl.u32 %v435, 16
        %v580 = vrot.slane %v578, 4
        %v581 = vshll.u32 %v435, 16
        %v583 = vrot.slane %v581, 5
        %v584 = vor.u32 %v580, %v583
        %v585 = vrot.slane %v584, 4
        %v587 = vshll.u32 %v436, 16
        %v589 = vrot.slane %v587, 5
        %v590 = vsel %vm504, %v585, %v589
        %v591 = vshrl.u32 %v436, 16
        %v593 = vrot.slane %v591, 4
        %v594 = vor.u32 %v593, %v589
        %v595 = vrot.slane %v594, 4
        %v597 = vshll.u32 %v468, 16
        %v599 = vrot.slane %v597, 5
        %v600 = vsel %vm504, %v595, %v599
        %v602 = vshrl.u32 %v437, 16
        %v604 = vrot.slane %v602, 4
        %v605 = vshll.u32 %v437, 16
        %v607 = vrot.slane %v605, 5
        %v608 = vor.u32 %v604, %v607
        %v609 = vrot.slane %v608, 4
        %v611 = vshll.u32 %v438, 16
        %v613 = vrot.slane %v611, 5
        %v614 = vsel %vm504, %v609, %v613
        %v615 = vshrl.u32 %v438, 16
        %v617 = vrot.slane %v615, 4
        %v618 = vor.u32 %v617, %v613
        %v619 = vrot.slane %v618, 4
        %v621 = vshll.u32 %v469, 16
        %v623 = vrot.slane %v621, 5
        %v624 = vsel %vm504, %v619, %v623
        %v626 = vshrl.u32 %v439, 16
        %v628 = vrot.slane %v626, 4
        %v629 = vshll.u32 %v439, 16
        %v631 = vrot.slane %v629, 5
        %v632 = vor.u32 %v628, %v631
        %v633 = vrot.slane %v632, 4
        %v635 = vshll.u32 %v440, 16
        %v637 = vrot.slane %v635, 5
        %v638 = vsel %vm504, %v633, %v637
        %v639 = vshrl.u32 %v440, 16
        %v641 = vrot.slane %v639, 4
        %v642 = vor.u32 %v641, %v637
        %v643 = vrot.slane %v642, 4
        %v645 = vshll.u32 %v470, 16
        %v647 = vrot.slane %v645, 5
        %v648 = vsel %vm504, %v643, %v647
        %v650 = vshrl.u32 %v441, 16
        %v652 = vrot.slane %v650, 4
        %v653 = vshll.u32 %v441, 16
        %v655 = vrot.slane %v653, 5
        %v656 = vor.u32 %v652, %v655
        %v657 = vrot.slane %v656, 4
        %v659 = vshll.u32 %v442, 16
        %v661 = vrot.slane %v659, 5
        %v662 = vsel %vm504, %v657, %v661
        %v663 = vshrl.u32 %v442, 16
        %v665 = vrot.slane %v663, 4
        %v666 = vor.u32 %v665, %v661
        %v667 = vrot.slane %v666, 4
        %v669 = vshll.u32 %v471, 16
        %v671 = vrot.slane %v669, 5
        %v672 = vsel %vm504, %v667, %v671
        %v674 = vshrl.u32 %v443, 16
        %v676 = vrot.slane %v674, 4
        %v677 = vshll.u32 %v443, 16
        %v679 = vrot.slane %v677, 5
        %v680 = vor.u32 %v676, %v679
        %v681 = vrot.slane %v680, 4
        %v683 = vshll.u32 %v444, 16
        %v685 = vrot.slane %v683, 5
        %v686 = vsel %vm504, %v681, %v685
        %v687 = vshrl.u32 %v444, 16
        %v689 = vrot.slane %v687, 4
        %v690 = vor.u32 %v689, %v685
        %v691 = vrot.slane %v690, 4
        %v693 = vshll.u32 %v472, 16
        %v695 = vrot.slane %v693, 5
        %v696 = vsel %vm504, %v691, %v695
        %v698 = vshrl.u32 %v445, 16
        %v700 = vrot.slane %v698, 4
        %v701 = vshll.u32 %v445, 16
        %v703 = vrot.slane %v701, 5
        %v704 = vor.u32 %v700, %v703
        %v705 = vrot.slane %v704, 4
        %v707 = vshll.u32 %v446, 16
        %v709 = vrot.slane %v707, 5
        %v710 = vsel %vm504, %v705, %v709
        %v711 = vshrl.u32 %v446, 16
        %v713 = vrot.slane %v711, 4
        %v714 = vor.u32 %v713, %v709
        %v715 = vrot.slane %v714, 4
        %v717 = vshll.u32 %v473, 16
        %v719 = vrot.slane %v717, 5
        %v720 = vsel %vm504, %v715, %v719
        %v722 = vshrl.u32 %v447, 16
        %v724 = vrot.slane %v722, 4
        %v725 = vshll.u32 %v447, 16
        %v727 = vrot.slane %v725, 5
        %v728 = vor.u32 %v724, %v727
        %v729 = vrot.slane %v728, 4
        %v731 = vshll.u32 %v448, 16
        %v733 = vrot.slane %v731, 5
        %v734 = vsel %vm504, %v729, %v733
        %v735 = vshrl.u32 %v448, 16
        %v737 = vrot.slane %v735, 4
        %v738 = vor.u32 %v737, %v733
        %v739 = vrot.slane %v738, 4
        %v741 = vshll.u32 %v474, 16
        %v743 = vrot.slane %v741, 5
        %v744 = vsel %vm504, %v739, %v743
        %v746 = vshrl.u32 %v449, 16
        %v748 = vrot.slane %v746, 4
        %v749 = vshll.u32 %v449, 16
        %v751 = vrot.slane %v749, 5
        %v752 = vor.u32 %v748, %v751
        %v753 = vrot.slane %v752, 4
        %v755 = vshll.u32 %v450, 16
        %v757 = vrot.slane %v755, 5
        %v758 = vsel %vm504, %v753, %v757
        %v759 = vshrl.u32 %v450, 16
        %v761 = vrot.slane %v759, 4
        %v762 = vor.u32 %v761, %v757
        %v763 = vrot.slane %v762, 4
        %v765 = vshll.u32 %v475, 16
        %v767 = vrot.slane %v765, 5
        %v768 = vsel %vm504, %v763, %v767
        %v770 = vshrl.u32 %v451, 16
        %v772 = vrot.slane %v770, 4
        %v773 = vshll.u32 %v451, 16
        %v775 = vrot.slane %v773, 5
        %v776 = vor.u32 %v772, %v775
        %v777 = vrot.slane %v776, 4
        %v779 = vshll.u32 %v452, 16
        %v781 = vrot.slane %v779, 5
        %v782 = vsel %vm504, %v777, %v781
        %v783 = vshrl.u32 %v452, 16
        %v785 = vrot.slane %v783, 4
        %v786 = vor.u32 %v785, %v781
        %v787 = vrot.slane %v786, 4
        %v789 = vshll.u32 %v476, 16
        %v791 = vrot.slane %v789, 5
        %v792 = vsel %vm504, %v787, %v791
        %v794 = vshrl.u32 %v453, 16
        %v796 = vrot.slane %v794, 4
        %v797 = vshll.u32 %v453, 16
        %v799 = vrot.slane %v797, 5
        %v800 = vor.u32 %v796, %v799
        %v801 = vrot.slane %v800, 4
        %v803 = vshll.u32 %v454, 16
        %v805 = vrot.slane %v803, 5
        %v806 = vsel %vm504, %v801, %v805
        %v807 = vshrl.u32 %v454, 16
        %v809 = vrot.slane %v807, 4
        %v810 = vor.u32 %v809, %v805
        %v811 = vrot.slane %v810, 4
        %v813 = vshll.u32 %v477, 16
        %v815 = vrot.slane %v813, 5
        %v816 = vsel %vm504, %v811, %v815
        %v818 = vshrl.u32 %v455, 16
        %v820 = vrot.slane %v818, 4
        %v821 = vshll.u32 %v455, 16
        %v823 = vrot.slane %v821, 5
        %v824 = vor.u32 %v820, %v823
        %v825 = vrot.slane %v824, 4
        %v827 = vshll.u32 %v456, 16
        %v829 = vrot.slane %v827, 5
        %v830 = vsel %vm504, %v825, %v829
        %v831 = vshrl.u32 %v456, 16
        %v833 = vrot.slane %v831, 4
        %v834 = vor.u32 %v833, %v829
        %v835 = vrot.slane %v834, 4
        %v837 = vshll.u32 %v478, 16
        %v839 = vrot.slane %v837, 5
        %v840 = vsel %vm504, %v835, %v839
        %v842 = vshrl.u32 %v457, 16
        %v844 = vrot.slane %v842, 4
        %v845 = vshll.u32 %v457, 16
        %v847 = vrot.slane %v845, 5
        %v848 = vor.u32 %v844, %v847
        %v849 = vrot.slane %v848, 4
        %v851 = vshll.u32 %v458, 16
        %v853 = vrot.slane %v851, 5
        %v854 = vsel %vm504, %v849, %v853
        %v855 = vshrl.u32 %v458, 16
        %v857 = vrot.slane %v855, 4
        %v858 = vor.u32 %v857, %v853
        %v859 = vrot.slane %v858, 4
        %v861 = vshll.u32 %v479, 16
        %v863 = vrot.slane %v861, 5
        %v864 = vsel %vm504, %v859, %v863
        %v866 = vshrl.u32 %v459, 16
        %v868 = vrot.slane %v866, 4
        %v869 = vshll.u32 %v459, 16
        %v871 = vrot.slane %v869, 5
        %v872 = vor.u32 %v868, %v871
        %v873 = vrot.slane %v872, 4
        %v875 = vshll.u32 %v460, 16
        %v877 = vrot.slane %v875, 5
        %v878 = vsel %vm504, %v873, %v877
        %v879 = vshrl.u32 %v460, 16
        %v881 = vrot.slane %v879, 4
        %v882 = vor.u32 %v881, %v877
        %v883 = vrot.slane %v882, 4
        %v885 = vshll.u32 %v480, 16
        %v887 = vrot.slane %v885, 5
        %v888 = vsel %vm504, %v883, %v887
        %s889 = scalar_lea.vmem %s1, 2
        %v890 = vld [vmem:[%s889] sm:$0x3]
        %v891 = vunpack.c.l.b16 %v518
        %v892 = vunpack.c.l.b16 %v528
        %v893 = vunpack.c.l.b16 %v542
        %v894 = vunpack.c.l.b16 %v552
        %v895 = vunpack.c.l.b16 %v566
        %v896 = vunpack.c.l.b16 %v576
        %v897 = vunpack.c.l.b16 %v590
        %v898 = vunpack.c.l.b16 %v600
        %v899 = vunpack.c.l.b16 %v614
        %v900 = vunpack.c.l.b16 %v624
        %v901 = vunpack.c.l.b16 %v638
        %v902 = vunpack.c.l.b16 %v648
        %v903 = vunpack.c.l.b16 %v662
        %v904 = vunpack.c.l.b16 %v672
        %v905 = vunpack.c.l.b16 %v686
        %v906 = vunpack.c.l.b16 %v696
        %v907 = vunpack.c.l.b16 %v710
        %v908 = vunpack.c.l.b16 %v720
        %v909 = vunpack.c.l.b16 %v734
        %v910 = vunpack.c.l.b16 %v744
        %v911 = vunpack.c.l.b16 %v758
        %v912 = vunpack.c.l.b16 %v768
        %v913 = vunpack.c.l.b16 %v782
        %v914 = vunpack.c.l.b16 %v792
        %v915 = vunpack.c.l.b16 %v806
        %v916 = vunpack.c.l.b16 %v816
        %v917 = vunpack.c.l.b16 %v830
        %v918 = vunpack.c.l.b16 %v840
        %v919 = vunpack.c.l.b16 %v854
        %v920 = vunpack.c.l.b16 %v864
        %v921 = vunpack.c.l.b16 %v878
        %v922 = vunpack.c.l.b16 %v888
        %v923 = vpack.c.b16 %v892, %v891
        %v924 = vpack.c.b16 %v894, %v893
        %v925 = vpack.c.b16 %v896, %v895
        %v926 = vpack.c.b16 %v898, %v897
        %v927 = vpack.c.b16 %v900, %v899
        %v928 = vpack.c.b16 %v902, %v901
        %v929 = vpack.c.b16 %v904, %v903
        %v930 = vpack.c.b16 %v906, %v905
        %v931 = vpack.c.b16 %v908, %v907
        %v932 = vpack.c.b16 %v910, %v909
        %v933 = vpack.c.b16 %v912, %v911
        %v934 = vpack.c.b16 %v914, %v913
        %v935 = vpack.c.b16 %v916, %v915
        %v936 = vpack.c.b16 %v918, %v917
        %v937 = vpack.c.b16 %v920, %v919
        %v938 = vpack.c.b16 %v922, %v921
        %vm939 = vcmask 23552
        %v941 = vsel %vm939, %v923, 0
        %v944 = vsel %vm939, %v924, 0
        %v947 = vsel %vm939, %v925, 0
        %v950 = vsel %vm939, %v926, 0
        %v953 = vsel %vm939, %v927, 0
        %v956 = vsel %vm939, %v928, 0
        %v959 = vsel %vm939, %v929, 0
        %v962 = vsel %vm939, %v930, 0
        %v965 = vsel %vm939, %v931, 0
        %v968 = vsel %vm939, %v932, 0
        %v971 = vsel %vm939, %v933, 0
        %v974 = vsel %vm939, %v934, 0
        %v977 = vsel %vm939, %v935, 0
        %v980 = vsel %vm939, %v936, 0
        %v983 = vsel %vm939, %v937, 0
        %v986 = vsel %vm939, %v938, 0
        %vm988 = vcmask 1040384
        %vm989 = vcmask 1041408
        %v990 = vsel %vm988, 4294967295, 65535
        %v991 = vsel %vm989, %v990, 0
        %v993 = vand.u32 %v890, %v991
        %995 = vmatpush.bf16.msra.mxu0 0
        %996 = vmatpush.bf16.msra.mxu0 0
        %997 = vmatpush.bf16.msra.mxu0 0
        %998 = vmatpush.bf16.msra.mxu0 0
        %999 = vmatpush.bf16.msra.mxu0 0
        %1000 = vmatpush.bf16.msra.mxu0 0
        %1001 = vmatpush.bf16.msra.mxu0 0
        %1002 = vmatpush.bf16.msra.mxu0 %v993
        %1003 = vmatmul.bf16.gmra.mxu0 %v941
        %v1004 = vpop.f32.mrf.mxu0
        %v1005 = vadd.f32 0.0, %v1004
        %v1006 = vpop.f32.mrf.mxu0
        %v1007 = vadd.f32 0.0, %v1006
        %1008 = vmatmul.bf16.gmra.mxu0 %v944
        %v1009 = vpop.f32.mrf.mxu0
        %v1010 = vadd.f32 0.0, %v1009
        %v1011 = vpop.f32.mrf.mxu0
        %v1012 = vadd.f32 0.0, %v1011
        %1013 = vmatmul.bf16.gmra.mxu0 %v947
        %v1014 = vpop.f32.mrf.mxu0
        %v1015 = vadd.f32 0.0, %v1014
        %v1016 = vpop.f32.mrf.mxu0
        %v1017 = vadd.f32 0.0, %v1016
        %1018 = vmatmul.bf16.gmra.mxu0 %v950
        %v1019 = vpop.f32.mrf.mxu0
        %v1020 = vadd.f32 0.0, %v1019
        %v1021 = vpop.f32.mrf.mxu0
        %v1022 = vadd.f32 0.0, %v1021
        %1023 = vmatmul.bf16.gmra.mxu0 %v953
        %v1024 = vpop.f32.mrf.mxu0
        %v1025 = vadd.f32 0.0, %v1024
        %v1026 = vpop.f32.mrf.mxu0
        %v1027 = vadd.f32 0.0, %v1026
        %1028 = vmatmul.bf16.gmra.mxu0 %v956
        %v1029 = vpop.f32.mrf.mxu0
        %v1030 = vadd.f32 0.0, %v1029
        %v1031 = vpop.f32.mrf.mxu0
        %v1032 = vadd.f32 0.0, %v1031
        %1033 = vmatmul.bf16.gmra.mxu0 %v959
        %v1034 = vpop.f32.mrf.mxu0
        %v1035 = vadd.f32 0.0, %v1034
        %v1036 = vpop.f32.mrf.mxu0
        %v1037 = vadd.f32 0.0, %v1036
        %1038 = vmatmul.bf16.gmra.mxu0 %v962
        %v1039 = vpop.f32.mrf.mxu0
        %v1040 = vadd.f32 0.0, %v1039
        %v1041 = vpop.f32.mrf.mxu0
        %v1042 = vadd.f32 0.0, %v1041
        %1043 = vmatmul.bf16.gmra.mxu0 %v965
        %v1044 = vpop.f32.mrf.mxu0
        %v1045 = vadd.f32 0.0, %v1044
        %v1046 = vpop.f32.mrf.mxu0
        %v1047 = vadd.f32 0.0, %v1046
        %1048 = vmatmul.bf16.gmra.mxu0 %v968
        %v1049 = vpop.f32.mrf.mxu0
        %v1050 = vadd.f32 0.0, %v1049
        %v1051 = vpop.f32.mrf.mxu0
        %v1052 = vadd.f32 0.0, %v1051
        %1053 = vmatmul.bf16.gmra.mxu0 %v971
        %v1054 = vpop.f32.mrf.mxu0
        %v1055 = vadd.f32 0.0, %v1054
        %v1056 = vpop.f32.mrf.mxu0
        %v1057 = vadd.f32 0.0, %v1056
        %1058 = vmatmul.bf16.gmra.mxu0 %v974
        %v1059 = vpop.f32.mrf.mxu0
        %v1060 = vadd.f32 0.0, %v1059
        %v1061 = vpop.f32.mrf.mxu0
        %v1062 = vadd.f32 0.0, %v1061
        %1063 = vmatmul.bf16.gmra.mxu0 %v977
        %v1064 = vpop.f32.mrf.mxu0
        %v1065 = vadd.f32 0.0, %v1064
        %v1066 = vpop.f32.mrf.mxu0
        %v1067 = vadd.f32 0.0, %v1066
        %1068 = vmatmul.bf16.gmra.mxu0 %v980
        %v1069 = vpop.f32.mrf.mxu0
        %v1070 = vadd.f32 0.0, %v1069
        %v1071 = vpop.f32.mrf.mxu0
        %v1072 = vadd.f32 0.0, %v1071
        %1073 = vmatmul.bf16.gmra.mxu0 %v983
        %v1074 = vpop.f32.mrf.mxu0
        %v1075 = vadd.f32 0.0, %v1074
        %v1076 = vpop.f32.mrf.mxu0
        %v1077 = vadd.f32 0.0, %v1076
        %1078 = vmatmul.bf16.gmra.mxu0 %v986
        %v1079 = vpop.f32.mrf.mxu0
        %v1080 = vadd.f32 0.0, %v1079
        %v1081 = vpop.f32.mrf.mxu0
        %v1082 = vadd.f32 0.0, %v1081
        %1083 = vdwg.mxu0
        %v1116 = vunpack.c.l.b16 %v429
        %v1117 = vunpack.c.l.b16 %v430
        %v1118 = vunpack.c.l.b16 %v431
        %v1119 = vunpack.c.l.b16 %v432
        %v1120 = vunpack.c.l.b16 %v433
        %v1121 = vunpack.c.l.b16 %v434
        %v1122 = vunpack.c.l.b16 %v435
        %v1123 = vunpack.c.l.b16 %v436
        %v1124 = vunpack.c.l.b16 %v437
        %v1125 = vunpack.c.l.b16 %v438
        %v1126 = vunpack.c.l.b16 %v439
        %v1127 = vunpack.c.l.b16 %v440
        %v1128 = vunpack.c.l.b16 %v441
        %v1129 = vunpack.c.l.b16 %v442
        %v1130 = vunpack.c.l.b16 %v443
        %v1131 = vunpack.c.l.b16 %v444
        %v1132 = vunpack.c.l.b16 %v445
        %v1133 = vunpack.c.l.b16 %v446
        %v1134 = vunpack.c.l.b16 %v447
        %v1135 = vunpack.c.l.b16 %v448
        %v1136 = vunpack.c.l.b16 %v449
        %v1137 = vunpack.c.l.b16 %v450
        %v1138 = vunpack.c.l.b16 %v451
        %v1139 = vunpack.c.l.b16 %v452
        %v1140 = vunpack.c.l.b16 %v453
        %v1141 = vunpack.c.l.b16 %v454
        %v1142 = vunpack.c.l.b16 %v455
        %v1143 = vunpack.c.l.b16 %v456
        %v1144 = vunpack.c.l.b16 %v457
        %v1145 = vunpack.c.l.b16 %v458
        %v1146 = vunpack.c.l.b16 %v459
        %v1147 = vunpack.c.l.b16 %v460
        %v1148 = vpack.c.b16 %v1117, %v1116
        %v1149 = vpack.c.b16 %v1119, %v1118
        %v1150 = vpack.c.b16 %v1121, %v1120
        %v1151 = vpack.c.b16 %v1123, %v1122
        %v1152 = vpack.c.b16 %v1125, %v1124
        %v1153 = vpack.c.b16 %v1127, %v1126
        %v1154 = vpack.c.b16 %v1129, %v1128
        %v1155 = vpack.c.b16 %v1131, %v1130
        %v1156 = vpack.c.b16 %v1133, %v1132
        %v1157 = vpack.c.b16 %v1135, %v1134
        %v1158 = vpack.c.b16 %v1137, %v1136
        %v1159 = vpack.c.b16 %v1139, %v1138
        %v1160 = vpack.c.b16 %v1141, %v1140
        %v1161 = vpack.c.b16 %v1143, %v1142
        %v1162 = vpack.c.b16 %v1145, %v1144
        %v1163 = vpack.c.b16 %v1147, %v1146
        %v1165 = vsel %vm939, %v1148, 0
        %v1168 = vsel %vm939, %v1149, 0
        %v1171 = vsel %vm939, %v1150, 0
        %v1174 = vsel %vm939, %v1151, 0
        %v1177 = vsel %vm939, %v1152, 0
        %v1180 = vsel %vm939, %v1153, 0
        %v1183 = vsel %vm939, %v1154, 0
        %v1186 = vsel %vm939, %v1155, 0
        %v1189 = vsel %vm939, %v1156, 0
        %v1192 = vsel %vm939, %v1157, 0
        %v1195 = vsel %vm939, %v1158, 0
        %v1198 = vsel %vm939, %v1159, 0
        %v1201 = vsel %vm939, %v1160, 0
        %v1204 = vsel %vm939, %v1161, 0
        %v1207 = vsel %vm939, %v1162, 0
        %v1210 = vsel %vm939, %v1163, 0
        %v1213 = vand.u32 %v501, %v991
        %1215 = vmatpush.bf16.msra.mxu0 0
        %1216 = vmatpush.bf16.msra.mxu0 0
        %1217 = vmatpush.bf16.msra.mxu0 0
        %1218 = vmatpush.bf16.msra.mxu0 0
        %1219 = vmatpush.bf16.msra.mxu0 0
        %1220 = vmatpush.bf16.msra.mxu0 0
        %1221 = vmatpush.bf16.msra.mxu0 0
        %1222 = vmatpush.bf16.msra.mxu0 %v1213
        %1223 = vmatmul.bf16.gmra.mxu0 %v1165
        %v1224 = vpop.f32.mrf.mxu0
        %v1225 = vadd.f32 %v1005, %v1224
        %v1226 = vpop.f32.mrf.mxu0
        %v1227 = vadd.f32 %v1007, %v1226
        %1228 = vmatmul.bf16.gmra.mxu0 %v1168
        %v1229 = vpop.f32.mrf.mxu0
        %v1230 = vadd.f32 %v1010, %v1229
        %v1231 = vpop.f32.mrf.mxu0
        %v1232 = vadd.f32 %v1012, %v1231
        %1233 = vmatmul.bf16.gmra.mxu0 %v1171
        %v1234 = vpop.f32.mrf.mxu0
        %v1235 = vadd.f32 %v1015, %v1234
        %v1236 = vpop.f32.mrf.mxu0
        %v1237 = vadd.f32 %v1017, %v1236
        %1238 = vmatmul.bf16.gmra.mxu0 %v1174
        %v1239 = vpop.f32.mrf.mxu0
        %v1240 = vadd.f32 %v1020, %v1239
        %v1241 = vpop.f32.mrf.mxu0
        %v1242 = vadd.f32 %v1022, %v1241
        %1243 = vmatmul.bf16.gmra.mxu0 %v1177
        %v1244 = vpop.f32.mrf.mxu0
        %v1245 = vadd.f32 %v1025, %v1244
        %v1246 = vpop.f32.mrf.mxu0
        %v1247 = vadd.f32 %v1027, %v1246
        %1248 = vmatmul.bf16.gmra.mxu0 %v1180
        %v1249 = vpop.f32.mrf.mxu0
        %v1250 = vadd.f32 %v1030, %v1249
        %v1251 = vpop.f32.mrf.mxu0
        %v1252 = vadd.f32 %v1032, %v1251
        %1253 = vmatmul.bf16.gmra.mxu0 %v1183
        %v1254 = vpop.f32.mrf.mxu0
        %v1255 = vadd.f32 %v1035, %v1254
        %v1256 = vpop.f32.mrf.mxu0
        %v1257 = vadd.f32 %v1037, %v1256
        %1258 = vmatmul.bf16.gmra.mxu0 %v1186
        %v1259 = vpop.f32.mrf.mxu0
        %v1260 = vadd.f32 %v1040, %v1259
        %v1261 = vpop.f32.mrf.mxu0
        %v1262 = vadd.f32 %v1042, %v1261
        %1263 = vmatmul.bf16.gmra.mxu0 %v1189
        %v1264 = vpop.f32.mrf.mxu0
        %v1265 = vadd.f32 %v1045, %v1264
        %v1266 = vpop.f32.mrf.mxu0
        %v1267 = vadd.f32 %v1047, %v1266
        %1268 = vmatmul.bf16.gmra.mxu0 %v1192
        %v1269 = vpop.f32.mrf.mxu0
        %v1270 = vadd.f32 %v1050, %v1269
        %v1271 = vpop.f32.mrf.mxu0
        %v1272 = vadd.f32 %v1052, %v1271
        %1273 = vmatmul.bf16.gmra.mxu0 %v1195
        %v1274 = vpop.f32.mrf.mxu0
        %v1275 = vadd.f32 %v1055, %v1274
        %v1276 = vpop.f32.mrf.mxu0
        %v1277 = vadd.f32 %v1057, %v1276
        %1278 = vmatmul.bf16.gmra.mxu0 %v1198
        %v1279 = vpop.f32.mrf.mxu0
        %v1280 = vadd.f32 %v1060, %v1279
        %v1281 = vpop.f32.mrf.mxu0
        %v1282 = vadd.f32 %v1062, %v1281
        %1283 = vmatmul.bf16.gmra.mxu0 %v1201
        %v1284 = vpop.f32.mrf.mxu0
        %v1285 = vadd.f32 %v1065, %v1284
        %v1286 = vpop.f32.mrf.mxu0
        %v1287 = vadd.f32 %v1067, %v1286
        %1288 = vmatmul.bf16.gmra.mxu0 %v1204
        %v1289 = vpop.f32.mrf.mxu0
        %v1290 = vadd.f32 %v1070, %v1289
        %v1291 = vpop.f32.mrf.mxu0
        %v1292 = vadd.f32 %v1072, %v1291
        %1293 = vmatmul.bf16.gmra.mxu0 %v1207
        %v1294 = vpop.f32.mrf.mxu0
        %v1295 = vadd.f32 %v1075, %v1294
        %v1296 = vpop.f32.mrf.mxu0
        %v1297 = vadd.f32 %v1077, %v1296
        %1298 = vmatmul.bf16.gmra.mxu0 %v1210
        %v1299 = vpop.f32.mrf.mxu0
        %v1300 = vadd.f32 %v1080, %v1299
        %v1301 = vpop.f32.mrf.mxu0
        %v1302 = vadd.f32 %v1082, %v1301
        %1303 = vdwg.mxu0
        %vm1336 = vcmask 1042432
        %vm1337 = vcmask 1046532
        %vm1338 = vmor %vm1336, %vm1337
        %v1339 = vrot.slane %v483, 5
        %v1340 = vrot.slane %v1339, 4
        %v1341 = vrot.slane %v430, 5
        %v1342 = vsel %vm1338, %v1340, %v1341
        %v1343 = vrot.slane %v1341, 4
        %v1344 = vrot.slane %v465, 5
        %v1345 = vsel %vm1338, %v1343, %v1344
        %v1346 = vrot.slane %v484, 5
        %v1347 = vrot.slane %v1346, 4
        %v1348 = vrot.slane %v432, 5
        %v1349 = vsel %vm1338, %v1347, %v1348
        %v1350 = vrot.slane %v1348, 4
        %v1351 = vrot.slane %v466, 5
        %v1352 = vsel %vm1338, %v1350, %v1351
        %v1353 = vrot.slane %v485, 5
        %v1354 = vrot.slane %v1353, 4
        %v1355 = vrot.slane %v434, 5
        %v1356 = vsel %vm1338, %v1354, %v1355
        %v1357 = vrot.slane %v1355, 4
        %v1358 = vrot.slane %v467, 5
        %v1359 = vsel %vm1338, %v1357, %v1358
        %v1360 = vrot.slane %v486, 5
        %v1361 = vrot.slane %v1360, 4
        %v1362 = vrot.slane %v436, 5
        %v1363 = vsel %vm1338, %v1361, %v1362
        %v1364 = vrot.slane %v1362, 4
        %v1365 = vrot.slane %v468, 5
        %v1366 = vsel %vm1338, %v1364, %v1365
        %v1367 = vrot.slane %v487, 5
        %v1368 = vrot.slane %v1367, 4
        %v1369 = vrot.slane %v438, 5
        %v1370 = vsel %vm1338, %v1368, %v1369
        %v1371 = vrot.slane %v1369, 4
        %v1372 = vrot.slane %v469, 5
        %v1373 = vsel %vm1338, %v1371, %v1372
        %v1374 = vrot.slane %v488, 5
        %v1375 = vrot.slane %v1374, 4
        %v1376 = vrot.slane %v440, 5
        %v1377 = vsel %vm1338, %v1375, %v1376
        %v1378 = vrot.slane %v1376, 4
        %v1379 = vrot.slane %v470, 5
        %v1380 = vsel %vm1338, %v1378, %v1379
        %v1381 = vrot.slane %v489, 5
        %v1382 = vrot.slane %v1381, 4
        %v1383 = vrot.slane %v442, 5
        %v1384 = vsel %vm1338, %v1382, %v1383
        %v1385 = vrot.slane %v1383, 4
        %v1386 = vrot.slane %v471, 5
        %v1387 = vsel %vm1338, %v1385, %v1386
        %v1388 = vrot.slane %v490, 5
        %v1389 = vrot.slane %v1388, 4
        %v1390 = vrot.slane %v444, 5
        %v1391 = vsel %vm1338, %v1389, %v1390
        %v1392 = vrot.slane %v1390, 4
        %v1393 = vrot.slane %v472, 5
        %v1394 = vsel %vm1338, %v1392, %v1393
        %v1395 = vrot.slane %v491, 5
        %v1396 = vrot.slane %v1395, 4
        %v1397 = vrot.slane %v446, 5
        %v1398 = vsel %vm1338, %v1396, %v1397
        %v1399 = vrot.slane %v1397, 4
        %v1400 = vrot.slane %v473, 5
        %v1401 = vsel %vm1338, %v1399, %v1400
        %v1402 = vrot.slane %v492, 5
        %v1403 = vrot.slane %v1402, 4
        %v1404 = vrot.slane %v448, 5
        %v1405 = vsel %vm1338, %v1403, %v1404
        %v1406 = vrot.slane %v1404, 4
        %v1407 = vrot.slane %v474, 5
        %v1408 = vsel %vm1338, %v1406, %v1407
        %v1409 = vrot.slane %v493, 5
        %v1410 = vrot.slane %v1409, 4
        %v1411 = vrot.slane %v450, 5
        %v1412 = vsel %vm1338, %v1410, %v1411
        %v1413 = vrot.slane %v1411, 4
        %v1414 = vrot.slane %v475, 5
        %v1415 = vsel %vm1338, %v1413, %v1414
        %v1416 = vrot.slane %v494, 5
        %v1417 = vrot.slane %v1416, 4
        %v1418 = vrot.slane %v452, 5
        %v1419 = vsel %vm1338, %v1417, %v1418
        %v1420 = vrot.slane %v1418, 4
        %v1421 = vrot.slane %v476, 5
        %v1422 = vsel %vm1338, %v1420, %v1421
        %v1423 = vrot.slane %v495, 5
        %v1424 = vrot.slane %v1423, 4
        %v1425 = vrot.slane %v454, 5
        %v1426 = vsel %vm1338, %v1424, %v1425
        %v1427 = vrot.slane %v1425, 4
        %v1428 = vrot.slane %v477, 5
        %v1429 = vsel %vm1338, %v1427, %v1428
        %v1430 = vrot.slane %v496, 5
        %v1431 = vrot.slane %v1430, 4
        %v1432 = vrot.slane %v456, 5
        %v1433 = vsel %vm1338, %v1431, %v1432
        %v1434 = vrot.slane %v1432, 4
        %v1435 = vrot.slane %v478, 5
        %v1436 = vsel %vm1338, %v1434, %v1435
        %v1437 = vrot.slane %v497, 5
        %v1438 = vrot.slane %v1437, 4
        %v1439 = vrot.slane %v458, 5
        %v1440 = vsel %vm1338, %v1438, %v1439
        %v1441 = vrot.slane %v1439, 4
        %v1442 = vrot.slane %v479, 5
        %v1443 = vsel %vm1338, %v1441, %v1442
        %v1444 = vrot.slane %v498, 5
        %v1445 = vrot.slane %v1444, 4
        %v1446 = vrot.slane %v460, 5
        %v1447 = vsel %vm1338, %v1445, %v1446
        %v1448 = vrot.slane %v1446, 4
        %v1449 = vrot.slane %v480, 5
        %v1450 = vsel %vm1338, %v1448, %v1449
        %s1451 = scalar_lea.vmem %s1, 4
        %v1452 = vld [vmem:[%s1451] sm:$0x3]
        %v1453 = vunpack.c.l.b16 %v1342
        %v1454 = vunpack.c.l.b16 %v1345
        %v1455 = vunpack.c.l.b16 %v1349
        %v1456 = vunpack.c.l.b16 %v1352
        %v1457 = vunpack.c.l.b16 %v1356
        %v1458 = vunpack.c.l.b16 %v1359
        %v1459 = vunpack.c.l.b16 %v1363
        %v1460 = vunpack.c.l.b16 %v1366
        %v1461 = vunpack.c.l.b16 %v1370
        %v1462 = vunpack.c.l.b16 %v1373
        %v1463 = vunpack.c.l.b16 %v1377
        %v1464 = vunpack.c.l.b16 %v1380
        %v1465 = vunpack.c.l.b16 %v1384
        %v1466 = vunpack.c.l.b16 %v1387
        %v1467 = vunpack.c.l.b16 %v1391
        %v1468 = vunpack.c.l.b16 %v1394
        %v1469 = vunpack.c.l.b16 %v1398
        %v1470 = vunpack.c.l.b16 %v1401
        %v1471 = vunpack.c.l.b16 %v1405
        %v1472 = vunpack.c.l.b16 %v1408
        %v1473 = vunpack.c.l.b16 %v1412
        %v1474 = vunpack.c.l.b16 %v1415
        %v1475 = vunpack.c.l.b16 %v1419
        %v1476 = vunpack.c.l.b16 %v1422
        %v1477 = vunpack.c.l.b16 %v1426
        %v1478 = vunpack.c.l.b16 %v1429
        %v1479 = vunpack.c.l.b16 %v1433
        %v1480 = vunpack.c.l.b16 %v1436
        %v1481 = vunpack.c.l.b16 %v1440
        %v1482 = vunpack.c.l.b16 %v1443
        %v1483 = vunpack.c.l.b16 %v1447
        %v1484 = vunpack.c.l.b16 %v1450
        %v1485 = vpack.c.b16 %v1454, %v1453
        %v1486 = vpack.c.b16 %v1456, %v1455
        %v1487 = vpack.c.b16 %v1458, %v1457
        %v1488 = vpack.c.b16 %v1460, %v1459
        %v1489 = vpack.c.b16 %v1462, %v1461
        %v1490 = vpack.c.b16 %v1464, %v1463
        %v1491 = vpack.c.b16 %v1466, %v1465
        %v1492 = vpack.c.b16 %v1468, %v1467
        %v1493 = vpack.c.b16 %v1470, %v1469
        %v1494 = vpack.c.b16 %v1472, %v1471
        %v1495 = vpack.c.b16 %v1474, %v1473
        %v1496 = vpack.c.b16 %v1476, %v1475
        %v1497 = vpack.c.b16 %v1478, %v1477
        %v1498 = vpack.c.b16 %v1480, %v1479
        %v1499 = vpack.c.b16 %v1482, %v1481
        %v1500 = vpack.c.b16 %v1484, %v1483
        %v1502 = vsel %vm939, %v1485, 0
        %v1505 = vsel %vm939, %v1486, 0
        %v1508 = vsel %vm939, %v1487, 0
        %v1511 = vsel %vm939, %v1488, 0
        %v1514 = vsel %vm939, %v1489, 0
        %v1517 = vsel %vm939, %v1490, 0
        %v1520 = vsel %vm939, %v1491, 0
        %v1523 = vsel %vm939, %v1492, 0
        %v1526 = vsel %vm939, %v1493, 0
        %v1529 = vsel %vm939, %v1494, 0
        %v1532 = vsel %vm939, %v1495, 0
        %v1535 = vsel %vm939, %v1496, 0
        %v1538 = vsel %vm939, %v1497, 0
        %v1541 = vsel %vm939, %v1498, 0
        %v1544 = vsel %vm939, %v1499, 0
        %v1547 = vsel %vm939, %v1500, 0
        %v1550 = vand.u32 %v1452, %v991
        %1552 = vmatpush.bf16.msra.mxu0 0
        %1553 = vmatpush.bf16.msra.mxu0 0
        %1554 = vmatpush.bf16.msra.mxu0 0
        %1555 = vmatpush.bf16.msra.mxu0 0
        %1556 = vmatpush.bf16.msra.mxu0 0
        %1557 = vmatpush.bf16.msra.mxu0 0
        %1558 = vmatpush.bf16.msra.mxu0 0
        %1559 = vmatpush.bf16.msra.mxu0 %v1550
        %1560 = vmatmul.bf16.gmra.mxu0 %v1502
        %v1561 = vpop.f32.mrf.mxu0
        %v1562 = vadd.f32 0.0, %v1561
        %v1563 = vpop.f32.mrf.mxu0
        %v1564 = vadd.f32 0.0, %v1563
        %1565 = vmatmul.bf16.gmra.mxu0 %v1505
        %v1566 = vpop.f32.mrf.mxu0
        %v1567 = vadd.f32 0.0, %v1566
        %v1568 = vpop.f32.mrf.mxu0
        %v1569 = vadd.f32 0.0, %v1568
        %1570 = vmatmul.bf16.gmra.mxu0 %v1508
        %v1571 = vpop.f32.mrf.mxu0
        %v1572 = vadd.f32 0.0, %v1571
        %v1573 = vpop.f32.mrf.mxu0
        %v1574 = vadd.f32 0.0, %v1573
        %1575 = vmatmul.bf16.gmra.mxu0 %v1511
        %v1576 = vpop.f32.mrf.mxu0
        %v1577 = vadd.f32 0.0, %v1576
        %v1578 = vpop.f32.mrf.mxu0
        %v1579 = vadd.f32 0.0, %v1578
        %1580 = vmatmul.bf16.gmra.mxu0 %v1514
        %v1581 = vpop.f32.mrf.mxu0
        %v1582 = vadd.f32 0.0, %v1581
        %v1583 = vpop.f32.mrf.mxu0
        %v1584 = vadd.f32 0.0, %v1583
        %1585 = vmatmul.bf16.gmra.mxu0 %v1517
        %v1586 = vpop.f32.mrf.mxu0
        %v1587 = vadd.f32 0.0, %v1586
        %v1588 = vpop.f32.mrf.mxu0
        %v1589 = vadd.f32 0.0, %v1588
        %1590 = vmatmul.bf16.gmra.mxu0 %v1520
        %v1591 = vpop.f32.mrf.mxu0
        %v1592 = vadd.f32 0.0, %v1591
        %v1593 = vpop.f32.mrf.mxu0
        %v1594 = vadd.f32 0.0, %v1593
        %1595 = vmatmul.bf16.gmra.mxu0 %v1523
        %v1596 = vpop.f32.mrf.mxu0
        %v1597 = vadd.f32 0.0, %v1596
        %v1598 = vpop.f32.mrf.mxu0
        %v1599 = vadd.f32 0.0, %v1598
        %1600 = vmatmul.bf16.gmra.mxu0 %v1526
        %v1601 = vpop.f32.mrf.mxu0
        %v1602 = vadd.f32 0.0, %v1601
        %v1603 = vpop.f32.mrf.mxu0
        %v1604 = vadd.f32 0.0, %v1603
        %1605 = vmatmul.bf16.gmra.mxu0 %v1529
        %v1606 = vpop.f32.mrf.mxu0
        %v1607 = vadd.f32 0.0, %v1606
        %v1608 = vpop.f32.mrf.mxu0
        %v1609 = vadd.f32 0.0, %v1608
        %1610 = vmatmul.bf16.gmra.mxu0 %v1532
        %v1611 = vpop.f32.mrf.mxu0
        %v1612 = vadd.f32 0.0, %v1611
        %v1613 = vpop.f32.mrf.mxu0
        %v1614 = vadd.f32 0.0, %v1613
        %1615 = vmatmul.bf16.gmra.mxu0 %v1535
        %v1616 = vpop.f32.mrf.mxu0
        %v1617 = vadd.f32 0.0, %v1616
        %v1618 = vpop.f32.mrf.mxu0
        %v1619 = vadd.f32 0.0, %v1618
        %1620 = vmatmul.bf16.gmra.mxu0 %v1538
        %v1621 = vpop.f32.mrf.mxu0
        %v1622 = vadd.f32 0.0, %v1621
        %v1623 = vpop.f32.mrf.mxu0
        %v1624 = vadd.f32 0.0, %v1623
        %1625 = vmatmul.bf16.gmra.mxu0 %v1541
        %v1626 = vpop.f32.mrf.mxu0
        %v1627 = vadd.f32 0.0, %v1626
        %v1628 = vpop.f32.mrf.mxu0
        %v1629 = vadd.f32 0.0, %v1628
        %1630 = vmatmul.bf16.gmra.mxu0 %v1544
        %v1631 = vpop.f32.mrf.mxu0
        %v1632 = vadd.f32 0.0, %v1631
        %v1633 = vpop.f32.mrf.mxu0
        %v1634 = vadd.f32 0.0, %v1633
        %1635 = vmatmul.bf16.gmra.mxu0 %v1547
        %v1636 = vpop.f32.mrf.mxu0
        %v1637 = vadd.f32 0.0, %v1636
        %v1638 = vpop.f32.mrf.mxu0
        %v1639 = vadd.f32 0.0, %v1638
        %1640 = vdwg.mxu0
        %v1641 = vadd.f32 %v1225, %v1562
        %v1642 = vadd.f32 %v1227, %v1564
        %v1643 = vadd.f32 %v1230, %v1567
        %v1644 = vadd.f32 %v1232, %v1569
        %v1645 = vadd.f32 %v1235, %v1572
        %v1646 = vadd.f32 %v1237, %v1574
        %v1647 = vadd.f32 %v1240, %v1577
        %v1648 = vadd.f32 %v1242, %v1579
        %v1649 = vadd.f32 %v1245, %v1582
        %v1650 = vadd.f32 %v1247, %v1584
        %v1651 = vadd.f32 %v1250, %v1587
        %v1652 = vadd.f32 %v1252, %v1589
        %v1653 = vadd.f32 %v1255, %v1592
        %v1654 = vadd.f32 %v1257, %v1594
        %v1655 = vadd.f32 %v1260, %v1597
        %v1656 = vadd.f32 %v1262, %v1599
        %v1657 = vadd.f32 %v1265, %v1602
        %v1658 = vadd.f32 %v1267, %v1604
        %v1659 = vadd.f32 %v1270, %v1607
        %v1660 = vadd.f32 %v1272, %v1609
        %v1661 = vadd.f32 %v1275, %v1612
        %v1662 = vadd.f32 %v1277, %v1614
        %v1663 = vadd.f32 %v1280, %v1617
        %v1664 = vadd.f32 %v1282, %v1619
        %v1665 = vadd.f32 %v1285, %v1622
        %v1666 = vadd.f32 %v1287, %v1624
        %v1667 = vadd.f32 %v1290, %v1627
        %v1668 = vadd.f32 %v1292, %v1629
        %v1669 = vadd.f32 %v1295, %v1632
        %v1670 = vadd.f32 %v1297, %v1634
        %v1671 = vadd.f32 %v1300, %v1637
        %v1672 = vadd.f32 %v1302, %v1639
        %s1673 = scalar_lea.vmem %s1, 6
        %v1674 = vld [vmem:[%s1673] sm:$0x3]
        %v1677 = vunpack.c.l.b16 %v461
        %v1678 = vunpack.c.l.b16 %v462
        %v1679 = vpack.c.b16 %v1678, %v1677
        %v1681 = vsel %vm939, %v1679, 0
        %v1684 = vand.u32 %v1674, %v991
        %1686 = vmatpush.bf16.msra.mxu0 0
        %1687 = vmatpush.bf16.msra.mxu0 0
        %1688 = vmatpush.bf16.msra.mxu0 0
        %1689 = vmatpush.bf16.msra.mxu0 0
        %1690 = vmatpush.bf16.msra.mxu0 0
        %1691 = vmatpush.bf16.msra.mxu0 0
        %1692 = vmatpush.bf16.msra.mxu0 0
        %1693 = vmatpush.bf16.msra.mxu0 %v1684
        %1694 = vmatmul.bf16.gmra.mxu0 %v1168
        %v1695 = vpop.f32.mrf.mxu0
        %v1696 = vadd.f32 0.0, %v1695
        %v1697 = vpop.f32.mrf.mxu0
        %v1698 = vadd.f32 0.0, %v1697
        %1699 = vmatmul.bf16.gmra.mxu0 %v1171
        %v1700 = vpop.f32.mrf.mxu0
        %v1701 = vadd.f32 0.0, %v1700
        %v1702 = vpop.f32.mrf.mxu0
        %v1703 = vadd.f32 0.0, %v1702
        %1704 = vmatmul.bf16.gmra.mxu0 %v1174
        %v1705 = vpop.f32.mrf.mxu0
        %v1706 = vadd.f32 0.0, %v1705
        %v1707 = vpop.f32.mrf.mxu0
        %v1708 = vadd.f32 0.0, %v1707
        %1709 = vmatmul.bf16.gmra.mxu0 %v1177
        %v1710 = vpop.f32.mrf.mxu0
        %v1711 = vadd.f32 0.0, %v1710
        %v1712 = vpop.f32.mrf.mxu0
        %v1713 = vadd.f32 0.0, %v1712
        %1714 = vmatmul.bf16.gmra.mxu0 %v1180
        %v1715 = vpop.f32.mrf.mxu0
        %v1716 = vadd.f32 0.0, %v1715
        %v1717 = vpop.f32.mrf.mxu0
        %v1718 = vadd.f32 0.0, %v1717
        %1719 = vmatmul.bf16.gmra.mxu0 %v1183
        %v1720 = vpop.f32.mrf.mxu0
        %v1721 = vadd.f32 0.0, %v1720
        %v1722 = vpop.f32.mrf.mxu0
        %v1723 = vadd.f32 0.0, %v1722
        %1724 = vmatmul.bf16.gmra.mxu0 %v1186
        %v1725 = vpop.f32.mrf.mxu0
        %v1726 = vadd.f32 0.0, %v1725
        %v1727 = vpop.f32.mrf.mxu0
        %v1728 = vadd.f32 0.0, %v1727
        %1729 = vmatmul.bf16.gmra.mxu0 %v1189
        %v1730 = vpop.f32.mrf.mxu0
        %v1731 = vadd.f32 0.0, %v1730
        %v1732 = vpop.f32.mrf.mxu0
        %v1733 = vadd.f32 0.0, %v1732
        %1734 = vmatmul.bf16.gmra.mxu0 %v1192
        %v1735 = vpop.f32.mrf.mxu0
        %v1736 = vadd.f32 0.0, %v1735
        %v1737 = vpop.f32.mrf.mxu0
        %v1738 = vadd.f32 0.0, %v1737
        %1739 = vmatmul.bf16.gmra.mxu0 %v1195
        %v1740 = vpop.f32.mrf.mxu0
        %v1741 = vadd.f32 0.0, %v1740
        %v1742 = vpop.f32.mrf.mxu0
        %v1743 = vadd.f32 0.0, %v1742
        %1744 = vmatmul.bf16.gmra.mxu0 %v1198
        %v1745 = vpop.f32.mrf.mxu0
        %v1746 = vadd.f32 0.0, %v1745
        %v1747 = vpop.f32.mrf.mxu0
        %v1748 = vadd.f32 0.0, %v1747
        %1749 = vmatmul.bf16.gmra.mxu0 %v1201
        %v1750 = vpop.f32.mrf.mxu0
        %v1751 = vadd.f32 0.0, %v1750
        %v1752 = vpop.f32.mrf.mxu0
        %v1753 = vadd.f32 0.0, %v1752
        %1754 = vmatmul.bf16.gmra.mxu0 %v1204
        %v1755 = vpop.f32.mrf.mxu0
        %v1756 = vadd.f32 0.0, %v1755
        %v1757 = vpop.f32.mrf.mxu0
        %v1758 = vadd.f32 0.0, %v1757
        %1759 = vmatmul.bf16.gmra.mxu0 %v1207
        %v1760 = vpop.f32.mrf.mxu0
        %v1761 = vadd.f32 0.0, %v1760
        %v1762 = vpop.f32.mrf.mxu0
        %v1763 = vadd.f32 0.0, %v1762
        %1764 = vmatmul.bf16.gmra.mxu0 %v1210
        %v1765 = vpop.f32.mrf.mxu0
        %v1766 = vadd.f32 0.0, %v1765
        %v1767 = vpop.f32.mrf.mxu0
        %v1768 = vadd.f32 0.0, %v1767
        %1769 = vmatmul.bf16.gmra.mxu0 %v1681
        %v1770 = vpop.f32.mrf.mxu0
        %v1771 = vadd.f32 0.0, %v1770
        %v1772 = vpop.f32.mrf.mxu0
        %v1773 = vadd.f32 0.0, %v1772
        %1774 = vdwg.mxu0
        %v1775 = vadd.f32 %v1641, %v1696
        %v1776 = vadd.f32 %v1642, %v1698
        %v1777 = vadd.f32 %v1643, %v1701
        %v1778 = vadd.f32 %v1644, %v1703
        %v1779 = vadd.f32 %v1645, %v1706
        %v1780 = vadd.f32 %v1646, %v1708
        %v1781 = vadd.f32 %v1647, %v1711
        %v1782 = vadd.f32 %v1648, %v1713
        %v1783 = vadd.f32 %v1649, %v1716
        %v1784 = vadd.f32 %v1650, %v1718
        %v1785 = vadd.f32 %v1651, %v1721
        %v1786 = vadd.f32 %v1652, %v1723
        %v1787 = vadd.f32 %v1653, %v1726
        %v1788 = vadd.f32 %v1654, %v1728
        %v1789 = vadd.f32 %v1655, %v1731
        %v1790 = vadd.f32 %v1656, %v1733
        %v1791 = vadd.f32 %v1657, %v1736
        %v1792 = vadd.f32 %v1658, %v1738
        %v1793 = vadd.f32 %v1659, %v1741
        %v1794 = vadd.f32 %v1660, %v1743
        %v1795 = vadd.f32 %v1661, %v1746
        %v1796 = vadd.f32 %v1662, %v1748
        %v1797 = vadd.f32 %v1663, %v1751
        %v1798 = vadd.f32 %v1664, %v1753
        %v1799 = vadd.f32 %v1665, %v1756
        %v1800 = vadd.f32 %v1666, %v1758
        %v1801 = vadd.f32 %v1667, %v1761
        %v1802 = vadd.f32 %v1668, %v1763
        %v1803 = vadd.f32 %v1669, %v1766
        %v1804 = vadd.f32 %v1670, %v1768
        %v1805 = vadd.f32 %v1671, %v1771
        %v1806 = vadd.f32 %v1672, %v1773
        %v1808 = vshrl.u32 %v461, 16
        %v1810 = vrot.slane %v1808, 4
        %v1811 = vshll.u32 %v461, 16
        %v1813 = vrot.slane %v1811, 5
        %v1814 = vor.u32 %v1810, %v1813
        %v1815 = vrot.slane %v1814, 4
        %v1817 = vshll.u32 %v462, 16
        %v1819 = vrot.slane %v1817, 5
        %v1820 = vsel %vm504, %v1815, %v1819
        %v1821 = vshrl.u32 %v462, 16
        %v1823 = vrot.slane %v1821, 4
        %v1824 = vor.u32 %v1823, %v1819
        %v1825 = vrot.slane %v1824, 4
        %v1827 = vshll.u32 %v481, 16
        %v1829 = vrot.slane %v1827, 5
        %v1830 = vsel %vm504, %v1825, %v1829
        %s1831 = scalar_lea.vmem %s1, 8
        %v1832 = vld [vmem:[%s1831] sm:$0x3]
        %v1833 = vunpack.c.l.b16 %v1820
        %v1834 = vunpack.c.l.b16 %v1830
        %v1835 = vpack.c.b16 %v1834, %v1833
        %v1837 = vsel %vm939, %v1835, 0
        %v1840 = vand.u32 %v1832, %v991
        %1842 = vmatpush.bf16.msra.mxu0 0
        %1843 = vmatpush.bf16.msra.mxu0 0
        %1844 = vmatpush.bf16.msra.mxu0 0
        %1845 = vmatpush.bf16.msra.mxu0 0
        %1846 = vmatpush.bf16.msra.mxu0 0
        %1847 = vmatpush.bf16.msra.mxu0 0
        %1848 = vmatpush.bf16.msra.mxu0 0
        %1849 = vmatpush.bf16.msra.mxu0 %v1840
        %1850 = vmatmul.bf16.gmra.mxu0 %v944
        %v1851 = vpop.f32.mrf.mxu0
        %v1852 = vadd.f32 0.0, %v1851
        %v1853 = vpop.f32.mrf.mxu0
        %v1854 = vadd.f32 0.0, %v1853
        %1855 = vmatmul.bf16.gmra.mxu0 %v947
        %v1856 = vpop.f32.mrf.mxu0
        %v1857 = vadd.f32 0.0, %v1856
        %v1858 = vpop.f32.mrf.mxu0
        %v1859 = vadd.f32 0.0, %v1858
        %1860 = vmatmul.bf16.gmra.mxu0 %v950
        %v1861 = vpop.f32.mrf.mxu0
        %v1862 = vadd.f32 0.0, %v1861
        %v1863 = vpop.f32.mrf.mxu0
        %v1864 = vadd.f32 0.0, %v1863
        %1865 = vmatmul.bf16.gmra.mxu0 %v953
        %v1866 = vpop.f32.mrf.mxu0
        %v1867 = vadd.f32 0.0, %v1866
        %v1868 = vpop.f32.mrf.mxu0
        %v1869 = vadd.f32 0.0, %v1868
        %1870 = vmatmul.bf16.gmra.mxu0 %v956
        %v1871 = vpop.f32.mrf.mxu0
        %v1872 = vadd.f32 0.0, %v1871
        %v1873 = vpop.f32.mrf.mxu0
        %v1874 = vadd.f32 0.0, %v1873
        %1875 = vmatmul.bf16.gmra.mxu0 %v959
        %v1876 = vpop.f32.mrf.mxu0
        %v1877 = vadd.f32 0.0, %v1876
        %v1878 = vpop.f32.mrf.mxu0
        %v1879 = vadd.f32 0.0, %v1878
        %1880 = vmatmul.bf16.gmra.mxu0 %v962
        %v1881 = vpop.f32.mrf.mxu0
        %v1882 = vadd.f32 0.0, %v1881
        %v1883 = vpop.f32.mrf.mxu0
        %v1884 = vadd.f32 0.0, %v1883
        %1885 = vmatmul.bf16.gmra.mxu0 %v965
        %v1886 = vpop.f32.mrf.mxu0
        %v1887 = vadd.f32 0.0, %v1886
        %v1888 = vpop.f32.mrf.mxu0
        %v1889 = vadd.f32 0.0, %v1888
        %1890 = vmatmul.bf16.gmra.mxu0 %v968
        %v1891 = vpop.f32.mrf.mxu0
        %v1892 = vadd.f32 0.0, %v1891
        %v1893 = vpop.f32.mrf.mxu0
        %v1894 = vadd.f32 0.0, %v1893
        %1895 = vmatmul.bf16.gmra.mxu0 %v971
        %v1896 = vpop.f32.mrf.mxu0
        %v1897 = vadd.f32 0.0, %v1896
        %v1898 = vpop.f32.mrf.mxu0
        %v1899 = vadd.f32 0.0, %v1898
        %1900 = vmatmul.bf16.gmra.mxu0 %v974
        %v1901 = vpop.f32.mrf.mxu0
        %v1902 = vadd.f32 0.0, %v1901
        %v1903 = vpop.f32.mrf.mxu0
        %v1904 = vadd.f32 0.0, %v1903
        %1905 = vmatmul.bf16.gmra.mxu0 %v977
        %v1906 = vpop.f32.mrf.mxu0
        %v1907 = vadd.f32 0.0, %v1906
        %v1908 = vpop.f32.mrf.mxu0
        %v1909 = vadd.f32 0.0, %v1908
        %1910 = vmatmul.bf16.gmra.mxu0 %v980
        %v1911 = vpop.f32.mrf.mxu0
        %v1912 = vadd.f32 0.0, %v1911
        %v1913 = vpop.f32.mrf.mxu0
        %v1914 = vadd.f32 0.0, %v1913
        %1915 = vmatmul.bf16.gmra.mxu0 %v983
        %v1916 = vpop.f32.mrf.mxu0
        %v1917 = vadd.f32 0.0, %v1916
        %v1918 = vpop.f32.mrf.mxu0
        %v1919 = vadd.f32 0.0, %v1918
        %1920 = vmatmul.bf16.gmra.mxu0 %v986
        %v1921 = vpop.f32.mrf.mxu0
        %v1922 = vadd.f32 0.0, %v1921
        %v1923 = vpop.f32.mrf.mxu0
        %v1924 = vadd.f32 0.0, %v1923
        %1925 = vmatmul.bf16.gmra.mxu0 %v1837
        %v1926 = vpop.f32.mrf.mxu0
        %v1927 = vadd.f32 0.0, %v1926
        %v1928 = vpop.f32.mrf.mxu0
        %v1929 = vadd.f32 0.0, %v1928
        %1930 = vdwg.mxu0
        %v1931 = vadd.f32 %v1775, %v1852
        %v1932 = vadd.f32 %v1776, %v1854
        %v1933 = vadd.f32 %v1777, %v1857
        %v1934 = vadd.f32 %v1778, %v1859
        %v1935 = vadd.f32 %v1779, %v1862
        %v1936 = vadd.f32 %v1780, %v1864
        %v1937 = vadd.f32 %v1781, %v1867
        %v1938 = vadd.f32 %v1782, %v1869
        %v1939 = vadd.f32 %v1783, %v1872
        %v1940 = vadd.f32 %v1784, %v1874
        %v1941 = vadd.f32 %v1785, %v1877
        %v1942 = vadd.f32 %v1786, %v1879
        %v1943 = vadd.f32 %v1787, %v1882
        %v1944 = vadd.f32 %v1788, %v1884
        %v1945 = vadd.f32 %v1789, %v1887
        %v1946 = vadd.f32 %v1790, %v1889
        %v1947 = vadd.f32 %v1791, %v1892
        %v1948 = vadd.f32 %v1792, %v1894
        %v1949 = vadd.f32 %v1793, %v1897
        %v1950 = vadd.f32 %v1794, %v1899
        %v1951 = vadd.f32 %v1795, %v1902
        %v1952 = vadd.f32 %v1796, %v1904
        %v1953 = vadd.f32 %v1797, %v1907
        %v1954 = vadd.f32 %v1798, %v1909
        %v1955 = vadd.f32 %v1799, %v1912
        %v1956 = vadd.f32 %v1800, %v1914
        %v1957 = vadd.f32 %v1801, %v1917
        %v1958 = vadd.f32 %v1802, %v1919
        %v1959 = vadd.f32 %v1803, %v1922
        %v1960 = vadd.f32 %v1804, %v1924
        %v1961 = vadd.f32 %v1805, %v1927
        %v1962 = vadd.f32 %v1806, %v1929
        %v1965 = vrot.slane %v499, 5
        %v1966 = vrot.slane %v1965, 4
        %v1967 = vrot.slane %v462, 5
        %v1968 = vsel %vm1338, %v1966, %v1967
        %v1969 = vrot.slane %v1967, 4
        %v1970 = vrot.slane %v481, 5
        %v1971 = vsel %vm1338, %v1969, %v1970
        %s1972 = scalar_lea.vmem %s1, 10
        %v1973 = vld [vmem:[%s1972] sm:$0x3]
        %v1974 = vunpack.c.l.b16 %v1968
        %v1975 = vunpack.c.l.b16 %v1971
        %v1976 = vpack.c.b16 %v1975, %v1974
        %v1978 = vsel %vm939, %v1976, 0
        %v1981 = vand.u32 %v1973, %v991
        %1983 = vmatpush.bf16.msra.mxu0 0
        %1984 = vmatpush.bf16.msra.mxu0 0
        %1985 = vmatpush.bf16.msra.mxu0 0
        %1986 = vmatpush.bf16.msra.mxu0 0
        %1987 = vmatpush.bf16.msra.mxu0 0
        %1988 = vmatpush.bf16.msra.mxu0 0
        %1989 = vmatpush.bf16.msra.mxu0 0
        %1990 = vmatpush.bf16.msra.mxu0 %v1981
        %1991 = vmatmul.bf16.gmra.mxu0 %v1505
        %v1992 = vpop.f32.mrf.mxu0
        %v1993 = vadd.f32 0.0, %v1992
        %v1994 = vpop.f32.mrf.mxu0
        %v1995 = vadd.f32 0.0, %v1994
        %1996 = vmatmul.bf16.gmra.mxu0 %v1508
        %v1997 = vpop.f32.mrf.mxu0
        %v1998 = vadd.f32 0.0, %v1997
        %v1999 = vpop.f32.mrf.mxu0
        %v2000 = vadd.f32 0.0, %v1999
        %2001 = vmatmul.bf16.gmra.mxu0 %v1511
        %v2002 = vpop.f32.mrf.mxu0
        %v2003 = vadd.f32 0.0, %v2002
        %v2004 = vpop.f32.mrf.mxu0
        %v2005 = vadd.f32 0.0, %v2004
        %2006 = vmatmul.bf16.gmra.mxu0 %v1514
        %v2007 = vpop.f32.mrf.mxu0
        %v2008 = vadd.f32 0.0, %v2007
        %v2009 = vpop.f32.mrf.mxu0
        %v2010 = vadd.f32 0.0, %v2009
        %2011 = vmatmul.bf16.gmra.mxu0 %v1517
        %v2012 = vpop.f32.mrf.mxu0
        %v2013 = vadd.f32 0.0, %v2012
        %v2014 = vpop.f32.mrf.mxu0
        %v2015 = vadd.f32 0.0, %v2014
        %2016 = vmatmul.bf16.gmra.mxu0 %v1520
        %v2017 = vpop.f32.mrf.mxu0
        %v2018 = vadd.f32 0.0, %v2017
        %v2019 = vpop.f32.mrf.mxu0
        %v2020 = vadd.f32 0.0, %v2019
        %2021 = vmatmul.bf16.gmra.mxu0 %v1523
        %v2022 = vpop.f32.mrf.mxu0
        %v2023 = vadd.f32 0.0, %v2022
        %v2024 = vpop.f32.mrf.mxu0
        %v2025 = vadd.f32 0.0, %v2024
        %2026 = vmatmul.bf16.gmra.mxu0 %v1526
        %v2027 = vpop.f32.mrf.mxu0
        %v2028 = vadd.f32 0.0, %v2027
        %v2029 = vpop.f32.mrf.mxu0
        %v2030 = vadd.f32 0.0, %v2029
        %2031 = vmatmul.bf16.gmra.mxu0 %v1529
        %v2032 = vpop.f32.mrf.mxu0
        %v2033 = vadd.f32 0.0, %v2032
        %v2034 = vpop.f32.mrf.mxu0
        %v2035 = vadd.f32 0.0, %v2034
        %2036 = vmatmul.bf16.gmra.mxu0 %v1532
        %v2037 = vpop.f32.mrf.mxu0
        %v2038 = vadd.f32 0.0, %v2037
        %v2039 = vpop.f32.mrf.mxu0
        %v2040 = vadd.f32 0.0, %v2039
        %2041 = vmatmul.bf16.gmra.mxu0 %v1535
        %v2042 = vpop.f32.mrf.mxu0
        %v2043 = vadd.f32 0.0, %v2042
        %v2044 = vpop.f32.mrf.mxu0
        %v2045 = vadd.f32 0.0, %v2044
        %2046 = vmatmul.bf16.gmra.mxu0 %v1538
        %v2047 = vpop.f32.mrf.mxu0
        %v2048 = vadd.f32 0.0, %v2047
        %v2049 = vpop.f32.mrf.mxu0
        %v2050 = vadd.f32 0.0, %v2049
        %2051 = vmatmul.bf16.gmra.mxu0 %v1541
        %v2052 = vpop.f32.mrf.mxu0
        %v2053 = vadd.f32 0.0, %v2052
        %v2054 = vpop.f32.mrf.mxu0
        %v2055 = vadd.f32 0.0, %v2054
        %2056 = vmatmul.bf16.gmra.mxu0 %v1544
        %v2057 = vpop.f32.mrf.mxu0
        %v2058 = vadd.f32 0.0, %v2057
        %v2059 = vpop.f32.mrf.mxu0
        %v2060 = vadd.f32 0.0, %v2059
        %2061 = vmatmul.bf16.gmra.mxu0 %v1547
        %v2062 = vpop.f32.mrf.mxu0
        %v2063 = vadd.f32 0.0, %v2062
        %v2064 = vpop.f32.mrf.mxu0
        %v2065 = vadd.f32 0.0, %v2064
        %2066 = vmatmul.bf16.gmra.mxu0 %v1978
        %v2067 = vpop.f32.mrf.mxu0
        %v2068 = vadd.f32 0.0, %v2067
        %v2069 = vpop.f32.mrf.mxu0
        %v2070 = vadd.f32 0.0, %v2069
        %2071 = vdwg.mxu0
        %v2072 = vadd.f32 %v1931, %v1993
        %v2073 = vadd.f32 %v1932, %v1995
        %v2074 = vadd.f32 %v1933, %v1998
        %v2075 = vadd.f32 %v1934, %v2000
        %v2076 = vadd.f32 %v1935, %v2003
        %v2077 = vadd.f32 %v1936, %v2005
        %v2078 = vadd.f32 %v1937, %v2008
        %v2079 = vadd.f32 %v1938, %v2010
        %v2080 = vadd.f32 %v1939, %v2013
        %v2081 = vadd.f32 %v1940, %v2015
        %v2082 = vadd.f32 %v1941, %v2018
        %v2083 = vadd.f32 %v1942, %v2020
        %v2084 = vadd.f32 %v1943, %v2023
        %v2085 = vadd.f32 %v1944, %v2025
        %v2086 = vadd.f32 %v1945, %v2028
        %v2087 = vadd.f32 %v1946, %v2030
        %v2088 = vadd.f32 %v1947, %v2033
        %v2089 = vadd.f32 %v1948, %v2035
        %v2090 = vadd.f32 %v1949, %v2038
        %v2091 = vadd.f32 %v1950, %v2040
        %v2092 = vadd.f32 %v1951, %v2043
        %v2093 = vadd.f32 %v1952, %v2045
        %v2094 = vadd.f32 %v1953, %v2048
        %v2095 = vadd.f32 %v1954, %v2050
        %v2096 = vadd.f32 %v1955, %v2053
        %v2097 = vadd.f32 %v1956, %v2055
        %v2098 = vadd.f32 %v1957, %v2058
        %v2099 = vadd.f32 %v1958, %v2060
        %v2100 = vadd.f32 %v1959, %v2063
        %v2101 = vadd.f32 %v1960, %v2065
        %v2102 = vadd.f32 %v1961, %v2068
        %v2103 = vadd.f32 %v1962, %v2070
        %s2104 = scalar_lea.vmem %s1, 12
        %v2105 = vld [vmem:[%s2104] sm:$0x3]
        %v2108 = vunpack.c.l.b16 %v463
        %v2109 = vunpack.c.l.b16 %v464
        %v2110 = vpack.c.b16 %v2109, %v2108
        %v2112 = vsel %vm939, %v2110, 0
        %v2115 = vand.u32 %v2105, %v991
        %2117 = vmatpush.bf16.msra.mxu0 0
        %2118 = vmatpush.bf16.msra.mxu0 0
        %2119 = vmatpush.bf16.msra.mxu0 0
        %2120 = vmatpush.bf16.msra.mxu0 0
        %2121 = vmatpush.bf16.msra.mxu0 0
        %2122 = vmatpush.bf16.msra.mxu0 0
        %2123 = vmatpush.bf16.msra.mxu0 0
        %2124 = vmatpush.bf16.msra.mxu0 %v2115
        %2125 = vmatmul.bf16.gmra.mxu0 %v1171
        %v2126 = vpop.f32.mrf.mxu0
        %v2127 = vadd.f32 0.0, %v2126
        %v2128 = vpop.f32.mrf.mxu0
        %v2129 = vadd.f32 0.0, %v2128
        %2130 = vmatmul.bf16.gmra.mxu0 %v1174
        %v2131 = vpop.f32.mrf.mxu0
        %v2132 = vadd.f32 0.0, %v2131
        %v2133 = vpop.f32.mrf.mxu0
        %v2134 = vadd.f32 0.0, %v2133
        %2135 = vmatmul.bf16.gmra.mxu0 %v1177
        %v2136 = vpop.f32.mrf.mxu0
        %v2137 = vadd.f32 0.0, %v2136
        %v2138 = vpop.f32.mrf.mxu0
        %v2139 = vadd.f32 0.0, %v2138
        %2140 = vmatmul.bf16.gmra.mxu0 %v1180
        %v2141 = vpop.f32.mrf.mxu0
        %v2142 = vadd.f32 0.0, %v2141
        %v2143 = vpop.f32.mrf.mxu0
        %v2144 = vadd.f32 0.0, %v2143
        %2145 = vmatmul.bf16.gmra.mxu0 %v1183
        %v2146 = vpop.f32.mrf.mxu0
        %v2147 = vadd.f32 0.0, %v2146
        %v2148 = vpop.f32.mrf.mxu0
        %v2149 = vadd.f32 0.0, %v2148
        %2150 = vmatmul.bf16.gmra.mxu0 %v1186
        %v2151 = vpop.f32.mrf.mxu0
        %v2152 = vadd.f32 0.0, %v2151
        %v2153 = vpop.f32.mrf.mxu0
        %v2154 = vadd.f32 0.0, %v2153
        %2155 = vmatmul.bf16.gmra.mxu0 %v1189
        %v2156 = vpop.f32.mrf.mxu0
        %v2157 = vadd.f32 0.0, %v2156
        %v2158 = vpop.f32.mrf.mxu0
        %v2159 = vadd.f32 0.0, %v2158
        %2160 = vmatmul.bf16.gmra.mxu0 %v1192
        %v2161 = vpop.f32.mrf.mxu0
        %v2162 = vadd.f32 0.0, %v2161
        %v2163 = vpop.f32.mrf.mxu0
        %v2164 = vadd.f32 0.0, %v2163
        %2165 = vmatmul.bf16.gmra.mxu0 %v1195
        %v2166 = vpop.f32.mrf.mxu0
        %v2167 = vadd.f32 0.0, %v2166
        %v2168 = vpop.f32.mrf.mxu0
        %v2169 = vadd.f32 0.0, %v2168
        %2170 = vmatmul.bf16.gmra.mxu0 %v1198
        %v2171 = vpop.f32.mrf.mxu0
        %v2172 = vadd.f32 0.0, %v2171
        %v2173 = vpop.f32.mrf.mxu0
        %v2174 = vadd.f32 0.0, %v2173
        %2175 = vmatmul.bf16.gmra.mxu0 %v1201
        %v2176 = vpop.f32.mrf.mxu0
        %v2177 = vadd.f32 0.0, %v2176
        %v2178 = vpop.f32.mrf.mxu0
        %v2179 = vadd.f32 0.0, %v2178
        %2180 = vmatmul.bf16.gmra.mxu0 %v1204
        %v2181 = vpop.f32.mrf.mxu0
        %v2182 = vadd.f32 0.0, %v2181
        %v2183 = vpop.f32.mrf.mxu0
        %v2184 = vadd.f32 0.0, %v2183
        %2185 = vmatmul.bf16.gmra.mxu0 %v1207
        %v2186 = vpop.f32.mrf.mxu0
        %v2187 = vadd.f32 0.0, %v2186
        %v2188 = vpop.f32.mrf.mxu0
        %v2189 = vadd.f32 0.0, %v2188
        %2190 = vmatmul.bf16.gmra.mxu0 %v1210
        %v2191 = vpop.f32.mrf.mxu0
        %v2192 = vadd.f32 0.0, %v2191
        %v2193 = vpop.f32.mrf.mxu0
        %v2194 = vadd.f32 0.0, %v2193
        %2195 = vmatmul.bf16.gmra.mxu0 %v1681
        %v2196 = vpop.f32.mrf.mxu0
        %v2197 = vadd.f32 0.0, %v2196
        %v2198 = vpop.f32.mrf.mxu0
        %v2199 = vadd.f32 0.0, %v2198
        %2200 = vmatmul.bf16.gmra.mxu0 %v2112
        %v2201 = vpop.f32.mrf.mxu0
        %v2202 = vadd.f32 0.0, %v2201
        %v2203 = vpop.f32.mrf.mxu0
        %v2204 = vadd.f32 0.0, %v2203
        %2205 = vdwg.mxu0
        %v2206 = vadd.f32 %v2072, %v2127
        %v2207 = vadd.f32 %v2073, %v2129
        %v2208 = vadd.f32 %v2074, %v2132
        %v2209 = vadd.f32 %v2075, %v2134
        %v2210 = vadd.f32 %v2076, %v2137
        %v2211 = vadd.f32 %v2077, %v2139
        %v2212 = vadd.f32 %v2078, %v2142
        %v2213 = vadd.f32 %v2079, %v2144
        %v2214 = vadd.f32 %v2080, %v2147
        %v2215 = vadd.f32 %v2081, %v2149
        %v2216 = vadd.f32 %v2082, %v2152
        %v2217 = vadd.f32 %v2083, %v2154
        %v2218 = vadd.f32 %v2084, %v2157
        %v2219 = vadd.f32 %v2085, %v2159
        %v2220 = vadd.f32 %v2086, %v2162
        %v2221 = vadd.f32 %v2087, %v2164
        %v2222 = vadd.f32 %v2088, %v2167
        %v2223 = vadd.f32 %v2089, %v2169
        %v2224 = vadd.f32 %v2090, %v2172
        %v2225 = vadd.f32 %v2091, %v2174
        %v2226 = vadd.f32 %v2092, %v2177
        %v2227 = vadd.f32 %v2093, %v2179
        %v2228 = vadd.f32 %v2094, %v2182
        %v2229 = vadd.f32 %v2095, %v2184
        %v2230 = vadd.f32 %v2096, %v2187
        %v2231 = vadd.f32 %v2097, %v2189
        %v2232 = vadd.f32 %v2098, %v2192
        %v2233 = vadd.f32 %v2099, %v2194
        %v2234 = vadd.f32 %v2100, %v2197
        %v2235 = vadd.f32 %v2101, %v2199
        %v2236 = vadd.f32 %v2102, %v2202
        %v2237 = vadd.f32 %v2103, %v2204
        %v2239 = vshrl.u32 %v463, 16
        %v2241 = vrot.slane %v2239, 4
        %v2242 = vshll.u32 %v463, 16
        %v2244 = vrot.slane %v2242, 5
        %v2245 = vor.u32 %v2241, %v2244
        %v2246 = vrot.slane %v2245, 4
        %v2248 = vshll.u32 %v464, 16
        %v2250 = vrot.slane %v2248, 5
        %v2251 = vsel %vm504, %v2246, %v2250
        %v2252 = vshrl.u32 %v464, 16
        %v2254 = vrot.slane %v2252, 4
        %v2255 = vor.u32 %v2254, %v2250
        %v2256 = vrot.slane %v2255, 4
        %v2258 = vshll.u32 %v482, 16
        %v2260 = vrot.slane %v2258, 5
        %v2261 = vsel %vm504, %v2256, %v2260
        %s2262 = scalar_lea.vmem %s1, 14
        %v2263 = vld [vmem:[%s2262] sm:$0x3]
        %v2264 = vunpack.c.l.b16 %v2251
        %v2265 = vunpack.c.l.b16 %v2261
        %v2266 = vpack.c.b16 %v2265, %v2264
        %v2268 = vsel %vm939, %v2266, 0
        %v2271 = vand.u32 %v2263, %v991
        %2273 = vmatpush.bf16.msra.mxu0 0
        %2274 = vmatpush.bf16.msra.mxu0 0
        %2275 = vmatpush.bf16.msra.mxu0 0
        %2276 = vmatpush.bf16.msra.mxu0 0
        %2277 = vmatpush.bf16.msra.mxu0 0
        %2278 = vmatpush.bf16.msra.mxu0 0
        %2279 = vmatpush.bf16.msra.mxu0 0
        %2280 = vmatpush.bf16.msra.mxu0 %v2271
        %2281 = vmatmul.bf16.gmra.mxu0 %v947
        %v2282 = vpop.f32.mrf.mxu0
        %v2283 = vadd.f32 0.0, %v2282
        %v2284 = vpop.f32.mrf.mxu0
        %v2285 = vadd.f32 0.0, %v2284
        %2286 = vmatmul.bf16.gmra.mxu0 %v950
        %v2287 = vpop.f32.mrf.mxu0
        %v2288 = vadd.f32 0.0, %v2287
        %v2289 = vpop.f32.mrf.mxu0
        %v2290 = vadd.f32 0.0, %v2289
        %2291 = vmatmul.bf16.gmra.mxu0 %v953
        %v2292 = vpop.f32.mrf.mxu0
        %v2293 = vadd.f32 0.0, %v2292
        %v2294 = vpop.f32.mrf.mxu0
        %v2295 = vadd.f32 0.0, %v2294
        %2296 = vmatmul.bf16.gmra.mxu0 %v956
        %v2297 = vpop.f32.mrf.mxu0
        %v2298 = vadd.f32 0.0, %v2297
        %v2299 = vpop.f32.mrf.mxu0
        %v2300 = vadd.f32 0.0, %v2299
        %2301 = vmatmul.bf16.gmra.mxu0 %v959
        %v2302 = vpop.f32.mrf.mxu0
        %v2303 = vadd.f32 0.0, %v2302
        %v2304 = vpop.f32.mrf.mxu0
        %v2305 = vadd.f32 0.0, %v2304
        %2306 = vmatmul.bf16.gmra.mxu0 %v962
        %v2307 = vpop.f32.mrf.mxu0
        %v2308 = vadd.f32 0.0, %v2307
        %v2309 = vpop.f32.mrf.mxu0
        %v2310 = vadd.f32 0.0, %v2309
        %2311 = vmatmul.bf16.gmra.mxu0 %v965
        %v2312 = vpop.f32.mrf.mxu0
        %v2313 = vadd.f32 0.0, %v2312
        %v2314 = vpop.f32.mrf.mxu0
        %v2315 = vadd.f32 0.0, %v2314
        %2316 = vmatmul.bf16.gmra.mxu0 %v968
        %v2317 = vpop.f32.mrf.mxu0
        %v2318 = vadd.f32 0.0, %v2317
        %v2319 = vpop.f32.mrf.mxu0
        %v2320 = vadd.f32 0.0, %v2319
        %2321 = vmatmul.bf16.gmra.mxu0 %v971
        %v2322 = vpop.f32.mrf.mxu0
        %v2323 = vadd.f32 0.0, %v2322
        %v2324 = vpop.f32.mrf.mxu0
        %v2325 = vadd.f32 0.0, %v2324
        %2326 = vmatmul.bf16.gmra.mxu0 %v974
        %v2327 = vpop.f32.mrf.mxu0
        %v2328 = vadd.f32 0.0, %v2327
        %v2329 = vpop.f32.mrf.mxu0
        %v2330 = vadd.f32 0.0, %v2329
        %2331 = vmatmul.bf16.gmra.mxu0 %v977
        %v2332 = vpop.f32.mrf.mxu0
        %v2333 = vadd.f32 0.0, %v2332
        %v2334 = vpop.f32.mrf.mxu0
        %v2335 = vadd.f32 0.0, %v2334
        %2336 = vmatmul.bf16.gmra.mxu0 %v980
        %v2337 = vpop.f32.mrf.mxu0
        %v2338 = vadd.f32 0.0, %v2337
        %v2339 = vpop.f32.mrf.mxu0
        %v2340 = vadd.f32 0.0, %v2339
        %2341 = vmatmul.bf16.gmra.mxu0 %v983
        %v2342 = vpop.f32.mrf.mxu0
        %v2343 = vadd.f32 0.0, %v2342
        %v2344 = vpop.f32.mrf.mxu0
        %v2345 = vadd.f32 0.0, %v2344
        %2346 = vmatmul.bf16.gmra.mxu0 %v986
        %v2347 = vpop.f32.mrf.mxu0
        %v2348 = vadd.f32 0.0, %v2347
        %v2349 = vpop.f32.mrf.mxu0
        %v2350 = vadd.f32 0.0, %v2349
        %2351 = vmatmul.bf16.gmra.mxu0 %v1837
        %v2352 = vpop.f32.mrf.mxu0
        %v2353 = vadd.f32 0.0, %v2352
        %v2354 = vpop.f32.mrf.mxu0
        %v2355 = vadd.f32 0.0, %v2354
        %2356 = vmatmul.bf16.gmra.mxu0 %v2268
        %v2357 = vpop.f32.mrf.mxu0
        %v2358 = vadd.f32 0.0, %v2357
        %v2359 = vpop.f32.mrf.mxu0
        %v2360 = vadd.f32 0.0, %v2359
        %2361 = vdwg.mxu0
        %v2362 = vadd.f32 %v2206, %v2283
        %v2363 = vadd.f32 %v2207, %v2285
        %v2364 = vadd.f32 %v2208, %v2288
        %v2365 = vadd.f32 %v2209, %v2290
        %v2366 = vadd.f32 %v2210, %v2293
        %v2367 = vadd.f32 %v2211, %v2295
        %v2368 = vadd.f32 %v2212, %v2298
        %v2369 = vadd.f32 %v2213, %v2300
        %v2370 = vadd.f32 %v2214, %v2303
        %v2371 = vadd.f32 %v2215, %v2305
        %v2372 = vadd.f32 %v2216, %v2308
        %v2373 = vadd.f32 %v2217, %v2310
        %v2374 = vadd.f32 %v2218, %v2313
        %v2375 = vadd.f32 %v2219, %v2315
        %v2376 = vadd.f32 %v2220, %v2318
        %v2377 = vadd.f32 %v2221, %v2320
        %v2378 = vadd.f32 %v2222, %v2323
        %v2379 = vadd.f32 %v2223, %v2325
        %v2380 = vadd.f32 %v2224, %v2328
        %v2381 = vadd.f32 %v2225, %v2330
        %v2382 = vadd.f32 %v2226, %v2333
        %v2383 = vadd.f32 %v2227, %v2335
        %v2384 = vadd.f32 %v2228, %v2338
        %v2385 = vadd.f32 %v2229, %v2340
        %v2386 = vadd.f32 %v2230, %v2343
        %v2387 = vadd.f32 %v2231, %v2345
        %v2388 = vadd.f32 %v2232, %v2348
        %v2389 = vadd.f32 %v2233, %v2350
        %v2390 = vadd.f32 %v2234, %v2353
        %v2391 = vadd.f32 %v2235, %v2355
        %v2392 = vadd.f32 %v2236, %v2358
        %v2393 = vadd.f32 %v2237, %v2360
        %v2396 = vrot.slane %v500, 5
        %v2397 = vrot.slane %v2396, 4
        %v2398 = vrot.slane %v464, 5
        %v2399 = vsel %vm1338, %v2397, %v2398
        %v2400 = vrot.slane %v2398, 4
        %v2401 = vrot.slane %v482, 5
        %v2402 = vsel %vm1338, %v2400, %v2401
        %s2403 = scalar_lea.vmem %s1, 16
        %v2404 = vld [vmem:[%s2403] sm:$0x3]
        %v2405 = vunpack.c.l.b16 %v2399
        %v2406 = vunpack.c.l.b16 %v2402
        %v2407 = vpack.c.b16 %v2406, %v2405
        %v2409 = vsel %vm939, %v2407, 0
        %v2412 = vand.u32 %v2404, %v991
        %2414 = vmatpush.bf16.msra.mxu0 0
        %2415 = vmatpush.bf16.msra.mxu0 0
        %2416 = vmatpush.bf16.msra.mxu0 0
        %2417 = vmatpush.bf16.msra.mxu0 0
        %2418 = vmatpush.bf16.msra.mxu0 0
        %2419 = vmatpush.bf16.msra.mxu0 0
        %2420 = vmatpush.bf16.msra.mxu0 0
        %2421 = vmatpush.bf16.msra.mxu0 %v2412
        %2422 = vmatmul.bf16.gmra.mxu0 %v1508
        %v2423 = vpop.f32.mrf.mxu0
        %v2424 = vadd.f32 0.0, %v2423
        %v2425 = vpop.f32.mrf.mxu0
        %v2426 = vadd.f32 0.0, %v2425
        %2427 = vmatmul.bf16.gmra.mxu0 %v1511
        %v2428 = vpop.f32.mrf.mxu0
        %v2429 = vadd.f32 0.0, %v2428
        %v2430 = vpop.f32.mrf.mxu0
        %v2431 = vadd.f32 0.0, %v2430
        %2432 = vmatmul.bf16.gmra.mxu0 %v1514
        %v2433 = vpop.f32.mrf.mxu0
        %v2434 = vadd.f32 0.0, %v2433
        %v2435 = vpop.f32.mrf.mxu0
        %v2436 = vadd.f32 0.0, %v2435
        %2437 = vmatmul.bf16.gmra.mxu0 %v1517
        %v2438 = vpop.f32.mrf.mxu0
        %v2439 = vadd.f32 0.0, %v2438
        %v2440 = vpop.f32.mrf.mxu0
        %v2441 = vadd.f32 0.0, %v2440
        %2442 = vmatmul.bf16.gmra.mxu0 %v1520
        %v2443 = vpop.f32.mrf.mxu0
        %v2444 = vadd.f32 0.0, %v2443
        %v2445 = vpop.f32.mrf.mxu0
        %v2446 = vadd.f32 0.0, %v2445
        %2447 = vmatmul.bf16.gmra.mxu0 %v1523
        %v2448 = vpop.f32.mrf.mxu0
        %v2449 = vadd.f32 0.0, %v2448
        %v2450 = vpop.f32.mrf.mxu0
        %v2451 = vadd.f32 0.0, %v2450
        %2452 = vmatmul.bf16.gmra.mxu0 %v1526
        %v2453 = vpop.f32.mrf.mxu0
        %v2454 = vadd.f32 0.0, %v2453
        %v2455 = vpop.f32.mrf.mxu0
        %v2456 = vadd.f32 0.0, %v2455
        %2457 = vmatmul.bf16.gmra.mxu0 %v1529
        %v2458 = vpop.f32.mrf.mxu0
        %v2459 = vadd.f32 0.0, %v2458
        %v2460 = vpop.f32.mrf.mxu0
        %v2461 = vadd.f32 0.0, %v2460
        %2462 = vmatmul.bf16.gmra.mxu0 %v1532
        %v2463 = vpop.f32.mrf.mxu0
        %v2464 = vadd.f32 0.0, %v2463
        %v2465 = vpop.f32.mrf.mxu0
        %v2466 = vadd.f32 0.0, %v2465
        %2467 = vmatmul.bf16.gmra.mxu0 %v1535
        %v2468 = vpop.f32.mrf.mxu0
        %v2469 = vadd.f32 0.0, %v2468
        %v2470 = vpop.f32.mrf.mxu0
        %v2471 = vadd.f32 0.0, %v2470
        %2472 = vmatmul.bf16.gmra.mxu0 %v1538
        %v2473 = vpop.f32.mrf.mxu0
        %v2474 = vadd.f32 0.0, %v2473
        %v2475 = vpop.f32.mrf.mxu0
        %v2476 = vadd.f32 0.0, %v2475
        %2477 = vmatmul.bf16.gmra.mxu0 %v1541
        %v2478 = vpop.f32.mrf.mxu0
        %v2479 = vadd.f32 0.0, %v2478
        %v2480 = vpop.f32.mrf.mxu0
        %v2481 = vadd.f32 0.0, %v2480
        %2482 = vmatmul.bf16.gmra.mxu0 %v1544
        %v2483 = vpop.f32.mrf.mxu0
        %v2484 = vadd.f32 0.0, %v2483
        %v2485 = vpop.f32.mrf.mxu0
        %v2486 = vadd.f32 0.0, %v2485
        %2487 = vmatmul.bf16.gmra.mxu0 %v1547
        %v2488 = vpop.f32.mrf.mxu0
        %v2489 = vadd.f32 0.0, %v2488
        %v2490 = vpop.f32.mrf.mxu0
        %v2491 = vadd.f32 0.0, %v2490
        %2492 = vmatmul.bf16.gmra.mxu0 %v1978
        %v2493 = vpop.f32.mrf.mxu0
        %v2494 = vadd.f32 0.0, %v2493
        %v2495 = vpop.f32.mrf.mxu0
        %v2496 = vadd.f32 0.0, %v2495
        %2497 = vmatmul.bf16.gmra.mxu0 %v2409
        %v2498 = vpop.f32.mrf.mxu0
        %v2499 = vadd.f32 0.0, %v2498
        %v2500 = vpop.f32.mrf.mxu0
        %v2501 = vadd.f32 0.0, %v2500
        %2502 = vdwg.mxu0
        %v2503 = vadd.f32 %v2362, %v2424
        %v2504 = vadd.f32 %v2363, %v2426
        %v2505 = vadd.f32 %v2364, %v2429
        %v2506 = vadd.f32 %v2365, %v2431
        %v2507 = vadd.f32 %v2366, %v2434
        %v2508 = vadd.f32 %v2367, %v2436
        %v2509 = vadd.f32 %v2368, %v2439
        %v2510 = vadd.f32 %v2369, %v2441
        %v2511 = vadd.f32 %v2370, %v2444
        %v2512 = vadd.f32 %v2371, %v2446
        %v2513 = vadd.f32 %v2372, %v2449
        %v2514 = vadd.f32 %v2373, %v2451
        %v2515 = vadd.f32 %v2374, %v2454
        %v2516 = vadd.f32 %v2375, %v2456
        %v2517 = vadd.f32 %v2376, %v2459
        %v2518 = vadd.f32 %v2377, %v2461
        %v2519 = vadd.f32 %v2378, %v2464
        %v2520 = vadd.f32 %v2379, %v2466
        %v2521 = vadd.f32 %v2380, %v2469
        %v2522 = vadd.f32 %v2381, %v2471
        %v2523 = vadd.f32 %v2382, %v2474
        %v2524 = vadd.f32 %v2383, %v2476
        %v2525 = vadd.f32 %v2384, %v2479
        %v2526 = vadd.f32 %v2385, %v2481
        %v2527 = vadd.f32 %v2386, %v2484
        %v2528 = vadd.f32 %v2387, %v2486
        %v2529 = vadd.f32 %v2388, %v2489
        %v2530 = vadd.f32 %v2389, %v2491
        %v2531 = vadd.f32 %v2390, %v2494
        %v2532 = vadd.f32 %v2391, %v2496
        %v2533 = vadd.f32 %v2392, %v2499
        %v2534 = vadd.f32 %v2393, %v2501
        %v2535 = vld [vmem:[%s2] sm:$0x1]
        %v2537 = vperm.slane %v2535, 0
        %v2539 = vmul.f32 %v2503, %v2537
        %v2540 = vmul.f32 %v2504, %v2537
        %v2541 = vmul.f32 %v2505, %v2537
        %v2542 = vmul.f32 %v2506, %v2537
        %v2543 = vmul.f32 %v2507, %v2537
        %v2544 = vmul.f32 %v2508, %v2537
        %v2545 = vmul.f32 %v2509, %v2537
        %v2546 = vmul.f32 %v2510, %v2537
        %v2547 = vmul.f32 %v2511, %v2537
        %v2548 = vmul.f32 %v2512, %v2537
        %v2549 = vmul.f32 %v2513, %v2537
        %v2550 = vmul.f32 %v2514, %v2537
        %v2551 = vmul.f32 %v2515, %v2537
        %v2552 = vmul.f32 %v2516, %v2537
        %v2553 = vmul.f32 %v2517, %v2537
        %v2554 = vmul.f32 %v2518, %v2537
        %v2555 = vmul.f32 %v2519, %v2537
        %v2556 = vmul.f32 %v2520, %v2537
        %v2557 = vmul.f32 %v2521, %v2537
        %v2558 = vmul.f32 %v2522, %v2537
        %v2559 = vmul.f32 %v2523, %v2537
        %v2560 = vmul.f32 %v2524, %v2537
        %v2561 = vmul.f32 %v2525, %v2537
        %v2562 = vmul.f32 %v2526, %v2537
        %v2563 = vmul.f32 %v2527, %v2537
        %v2564 = vmul.f32 %v2528, %v2537
        %v2565 = vmul.f32 %v2529, %v2537
        %v2566 = vmul.f32 %v2530, %v2537
        %v2567 = vmul.f32 %v2531, %v2537
        %v2568 = vmul.f32 %v2532, %v2537
        %v2569 = vmul.f32 %v2533, %v2537
        %v2570 = vmul.f32 %v2534, %v2537
        %v2571 = vld [vmem:[%s3] sm:$0x1]
        %v2573 = vperm.slane %v2571, 0
        %v2575 = vadd.f32 %v2539, %v2573
        %v2576 = vadd.f32 %v2540, %v2573
        %v2577 = vadd.f32 %v2541, %v2573
        %v2578 = vadd.f32 %v2542, %v2573
        %v2579 = vadd.f32 %v2543, %v2573
        %v2580 = vadd.f32 %v2544, %v2573
        %v2581 = vadd.f32 %v2545, %v2573
        %v2582 = vadd.f32 %v2546, %v2573
        %v2583 = vadd.f32 %v2547, %v2573
        %v2584 = vadd.f32 %v2548, %v2573
        %v2585 = vadd.f32 %v2549, %v2573
        %v2586 = vadd.f32 %v2550, %v2573
        %v2587 = vadd.f32 %v2551, %v2573
        %v2588 = vadd.f32 %v2552, %v2573
        %v2589 = vadd.f32 %v2553, %v2573
        %v2590 = vadd.f32 %v2554, %v2573
        %v2591 = vadd.f32 %v2555, %v2573
        %v2592 = vadd.f32 %v2556, %v2573
        %v2593 = vadd.f32 %v2557, %v2573
        %v2594 = vadd.f32 %v2558, %v2573
        %v2595 = vadd.f32 %v2559, %v2573
        %v2596 = vadd.f32 %v2560, %v2573
        %v2597 = vadd.f32 %v2561, %v2573
        %v2598 = vadd.f32 %v2562, %v2573
        %v2599 = vadd.f32 %v2563, %v2573
        %v2600 = vadd.f32 %v2564, %v2573
        %v2601 = vadd.f32 %v2565, %v2573
        %v2602 = vadd.f32 %v2566, %v2573
        %v2603 = vadd.f32 %v2567, %v2573
        %v2604 = vadd.f32 %v2568, %v2573
        %v2605 = vadd.f32 %v2569, %v2573
        %v2606 = vadd.f32 %v2570, %v2573
        %v2607 = vmax.f32 %v2575, 0.0
        %v2608 = vmax.f32 %v2576, 0.0
        %v2609 = vmax.f32 %v2577, 0.0
        %v2610 = vmax.f32 %v2578, 0.0
        %v2611 = vmax.f32 %v2579, 0.0
        %v2612 = vmax.f32 %v2580, 0.0
        %v2613 = vmax.f32 %v2581, 0.0
        %v2614 = vmax.f32 %v2582, 0.0
        %v2615 = vmax.f32 %v2583, 0.0
        %v2616 = vmax.f32 %v2584, 0.0
        %v2617 = vmax.f32 %v2585, 0.0
        %v2618 = vmax.f32 %v2586, 0.0
        %v2619 = vmax.f32 %v2587, 0.0
        %v2620 = vmax.f32 %v2588, 0.0
        %v2621 = vmax.f32 %v2589, 0.0
        %v2622 = vmax.f32 %v2590, 0.0
        %v2623 = vmax.f32 %v2591, 0.0
        %v2624 = vmax.f32 %v2592, 0.0
        %v2625 = vmax.f32 %v2593, 0.0
        %v2626 = vmax.f32 %v2594, 0.0
        %v2627 = vmax.f32 %v2595, 0.0
        %v2628 = vmax.f32 %v2596, 0.0
        %v2629 = vmax.f32 %v2597, 0.0
        %v2630 = vmax.f32 %v2598, 0.0
        %v2631 = vmax.f32 %v2599, 0.0
        %v2632 = vmax.f32 %v2600, 0.0
        %v2633 = vmax.f32 %v2601, 0.0
        %v2634 = vmax.f32 %v2602, 0.0
        %v2635 = vmax.f32 %v2603, 0.0
        %v2636 = vmax.f32 %v2604, 0.0
        %v2637 = vmax.f32 %v2605, 0.0
        %v2638 = vmax.f32 %v2606, 0.0
        %v2639 = vmax.f32 %v2607, %v2609
        %v2640 = vmax.f32 %v2608, %v2610
        %v2641 = vmax.f32 %v2611, %v2613
        %v2642 = vmax.f32 %v2612, %v2614
        %v2643 = vmax.f32 %v2615, %v2617
        %v2644 = vmax.f32 %v2616, %v2618
        %v2645 = vmax.f32 %v2619, %v2621
        %v2646 = vmax.f32 %v2620, %v2622
        %v2647 = vmax.f32 %v2623, %v2625
        %v2648 = vmax.f32 %v2624, %v2626
        %v2649 = vmax.f32 %v2627, %v2629
        %v2650 = vmax.f32 %v2628, %v2630
        %v2651 = vmax.f32 %v2631, %v2633
        %v2652 = vmax.f32 %v2632, %v2634
        %v2653 = vmax.f32 %v2635, %v2637
        %v2654 = vmax.f32 %v2636, %v2638
        %v2671 = vrot.slane %v2639, 2
        %v2672 = vrot.slane %v2639, 4
        %v2673 = vrot.slane %v2639, 6
        %v2674 = vrot.slane %v2640, 2
        %v2675 = vrot.slane %v2640, 4
        %v2676 = vrot.slane %v2640, 6
        %v2677 = vrot.slane %v2641, 2
        %v2678 = vrot.slane %v2641, 4
        %v2679 = vrot.slane %v2641, 6
        %v2680 = vrot.slane %v2642, 2
        %v2681 = vrot.slane %v2642, 4
        %v2682 = vrot.slane %v2642, 6
        %v2683 = vrot.slane %v2643, 2
        %v2684 = vrot.slane %v2643, 4
        %v2685 = vrot.slane %v2643, 6
        %v2686 = vrot.slane %v2644, 2
        %v2687 = vrot.slane %v2644, 4
        %v2688 = vrot.slane %v2644, 6
        %v2689 = vrot.slane %v2645, 2
        %v2690 = vrot.slane %v2645, 4
        %v2691 = vrot.slane %v2645, 6
        %v2692 = vrot.slane %v2646, 2
        %v2693 = vrot.slane %v2646, 4
        %v2694 = vrot.slane %v2646, 6
        %v2695 = vrot.slane %v2647, 2
        %v2696 = vrot.slane %v2647, 4
        %v2697 = vrot.slane %v2647, 6
        %v2698 = vrot.slane %v2648, 2
        %v2699 = vrot.slane %v2648, 4
        %v2700 = vrot.slane %v2648, 6
        %v2701 = vrot.slane %v2649, 2
        %v2702 = vrot.slane %v2649, 4
        %v2703 = vrot.slane %v2649, 6
        %v2704 = vrot.slane %v2650, 2
        %v2705 = vrot.slane %v2650, 4
        %v2706 = vrot.slane %v2650, 6
        %v2707 = vrot.slane %v2651, 2
        %v2708 = vrot.slane %v2651, 4
        %v2709 = vrot.slane %v2651, 6
        %v2710 = vrot.slane %v2652, 2
        %v2711 = vrot.slane %v2652, 4
        %v2712 = vrot.slane %v2652, 6
        %v2713 = vrot.slane %v2653, 2
        %v2714 = vrot.slane %v2653, 4
        %v2715 = vrot.slane %v2653, 6
        %v2716 = vrot.slane %v2654, 2
        %v2717 = vrot.slane %v2654, 4
        %v2718 = vrot.slane %v2654, 6
        %v2767 = vrot.slane %v2639, 7
        %v2768 = vrot.slane %v2767, 2
        %v2769 = vrot.slane %v2671, 7
        %v2770 = vrot.slane %v2769, 2
        %v2771 = vrot.slane %v2672, 7
        %v2772 = vrot.slane %v2771, 2
        %v2773 = vrot.slane %v2673, 7
        %v2774 = vrot.slane %v2773, 2
        %v2775 = vrot.slane %v2640, 7
        %v2776 = vrot.slane %v2775, 2
        %v2777 = vrot.slane %v2674, 7
        %v2778 = vrot.slane %v2777, 2
        %v2779 = vrot.slane %v2675, 7
        %v2780 = vrot.slane %v2779, 2
        %v2781 = vrot.slane %v2676, 7
        %v2782 = vrot.slane %v2781, 2
        %v2783 = vrot.slane %v2641, 7
        %v2784 = vrot.slane %v2783, 2
        %v2785 = vrot.slane %v2677, 7
        %v2786 = vrot.slane %v2785, 2
        %v2787 = vrot.slane %v2678, 7
        %v2788 = vrot.slane %v2787, 2
        %v2789 = vrot.slane %v2679, 7
        %v2790 = vrot.slane %v2789, 2
        %v2791 = vrot.slane %v2642, 7
        %v2792 = vrot.slane %v2791, 2
        %v2793 = vrot.slane %v2680, 7
        %v2794 = vrot.slane %v2793, 2
        %v2795 = vrot.slane %v2681, 7
        %v2796 = vrot.slane %v2795, 2
        %v2797 = vrot.slane %v2682, 7
        %v2798 = vrot.slane %v2797, 2
        %v2799 = vrot.slane %v2643, 7
        %v2800 = vrot.slane %v2799, 2
        %v2801 = vrot.slane %v2683, 7
        %v2802 = vrot.slane %v2801, 2
        %v2803 = vrot.slane %v2684, 7
        %v2804 = vrot.slane %v2803, 2
        %v2805 = vrot.slane %v2685, 7
        %v2806 = vrot.slane %v2805, 2
        %v2807 = vrot.slane %v2644, 7
        %v2808 = vrot.slane %v2807, 2
        %v2809 = vrot.slane %v2686, 7
        %v2810 = vrot.slane %v2809, 2
        %v2811 = vrot.slane %v2687, 7
        %v2812 = vrot.slane %v2811, 2
        %v2813 = vrot.slane %v2688, 7
        %v2814 = vrot.slane %v2813, 2
        %v2815 = vrot.slane %v2645, 7
        %v2816 = vrot.slane %v2815, 2
        %v2817 = vrot.slane %v2689, 7
        %v2818 = vrot.slane %v2817, 2
        %v2819 = vrot.slane %v2690, 7
        %v2820 = vrot.slane %v2819, 2
        %v2821 = vrot.slane %v2691, 7
        %v2822 = vrot.slane %v2821, 2
        %v2823 = vrot.slane %v2646, 7
        %v2824 = vrot.slane %v2823, 2
        %v2825 = vrot.slane %v2692, 7
        %v2826 = vrot.slane %v2825, 2
        %v2827 = vrot.slane %v2693, 7
        %v2828 = vrot.slane %v2827, 2
        %v2829 = vrot.slane %v2694, 7
        %v2830 = vrot.slane %v2829, 2
        %v2831 = vrot.slane %v2647, 7
        %v2832 = vrot.slane %v2831, 2
        %v2833 = vrot.slane %v2695, 7
        %v2834 = vrot.slane %v2833, 2
        %v2835 = vrot.slane %v2696, 7
        %v2836 = vrot.slane %v2835, 2
        %v2837 = vrot.slane %v2697, 7
        %v2838 = vrot.slane %v2837, 2
        %v2839 = vrot.slane %v2648, 7
        %v2840 = vrot.slane %v2839, 2
        %v2841 = vrot.slane %v2698, 7
        %v2842 = vrot.slane %v2841, 2
        %v2843 = vrot.slane %v2699, 7
        %v2844 = vrot.slane %v2843, 2
        %v2845 = vrot.slane %v2700, 7
        %v2846 = vrot.slane %v2845, 2
        %v2847 = vrot.slane %v2649, 7
        %v2848 = vrot.slane %v2847, 2
        %v2849 = vrot.slane %v2701, 7
        %v2850 = vrot.slane %v2849, 2
        %v2851 = vrot.slane %v2702, 7
        %v2852 = vrot.slane %v2851, 2
        %v2853 = vrot.slane %v2703, 7
        %v2854 = vrot.slane %v2853, 2
        %v2855 = vrot.slane %v2650, 7
        %v2856 = vrot.slane %v2855, 2
        %v2857 = vrot.slane %v2704, 7
        %v2858 = vrot.slane %v2857, 2
        %v2859 = vrot.slane %v2705, 7
        %v2860 = vrot.slane %v2859, 2
        %v2861 = vrot.slane %v2706, 7
        %v2862 = vrot.slane %v2861, 2
        %v2863 = vrot.slane %v2651, 7
        %v2864 = vrot.slane %v2863, 2
        %v2865 = vrot.slane %v2707, 7
        %v2866 = vrot.slane %v2865, 2
        %v2867 = vrot.slane %v2708, 7
        %v2868 = vrot.slane %v2867, 2
        %v2869 = vrot.slane %v2709, 7
        %v2870 = vrot.slane %v2869, 2
        %v2871 = vrot.slane %v2652, 7
        %v2872 = vrot.slane %v2871, 2
        %v2873 = vrot.slane %v2710, 7
        %v2874 = vrot.slane %v2873, 2
        %v2875 = vrot.slane %v2711, 7
        %v2876 = vrot.slane %v2875, 2
        %v2877 = vrot.slane %v2712, 7
        %v2878 = vrot.slane %v2877, 2
        %v2879 = vrot.slane %v2653, 7
        %v2880 = vrot.slane %v2879, 2
        %v2881 = vrot.slane %v2713, 7
        %v2882 = vrot.slane %v2881, 2
        %v2883 = vrot.slane %v2714, 7
        %v2884 = vrot.slane %v2883, 2
        %v2885 = vrot.slane %v2715, 7
        %v2886 = vrot.slane %v2885, 2
        %v2887 = vrot.slane %v2654, 7
        %v2888 = vrot.slane %v2887, 2
        %v2889 = vrot.slane %v2716, 7
        %v2890 = vrot.slane %v2889, 2
        %v2891 = vrot.slane %v2717, 7
        %v2892 = vrot.slane %v2891, 2
        %v2893 = vrot.slane %v2718, 7
        %v2894 = vrot.slane %v2893, 2
        %v2959 = vmax.f32 %v2639, %v2768
        %v2960 = vmax.f32 %v2671, %v2770
        %v2961 = vmax.f32 %v2672, %v2772
        %v2962 = vmax.f32 %v2673, %v2774
        %v2963 = vmax.f32 %v2640, %v2776
        %v2964 = vmax.f32 %v2674, %v2778
        %v2965 = vmax.f32 %v2675, %v2780
        %v2966 = vmax.f32 %v2676, %v2782
        %v2967 = vmax.f32 %v2641, %v2784
        %v2968 = vmax.f32 %v2677, %v2786
        %v2969 = vmax.f32 %v2678, %v2788
        %v2970 = vmax.f32 %v2679, %v2790
        %v2971 = vmax.f32 %v2642, %v2792
        %v2972 = vmax.f32 %v2680, %v2794
        %v2973 = vmax.f32 %v2681, %v2796
        %v2974 = vmax.f32 %v2682, %v2798
        %v2975 = vmax.f32 %v2643, %v2800
        %v2976 = vmax.f32 %v2683, %v2802
        %v2977 = vmax.f32 %v2684, %v2804
        %v2978 = vmax.f32 %v2685, %v2806
        %v2979 = vmax.f32 %v2644, %v2808
        %v2980 = vmax.f32 %v2686, %v2810
        %v2981 = vmax.f32 %v2687, %v2812
        %v2982 = vmax.f32 %v2688, %v2814
        %v2983 = vmax.f32 %v2645, %v2816
        %v2984 = vmax.f32 %v2689, %v2818
        %v2985 = vmax.f32 %v2690, %v2820
        %v2986 = vmax.f32 %v2691, %v2822
        %v2987 = vmax.f32 %v2646, %v2824
        %v2988 = vmax.f32 %v2692, %v2826
        %v2989 = vmax.f32 %v2693, %v2828
        %v2990 = vmax.f32 %v2694, %v2830
        %v2991 = vmax.f32 %v2647, %v2832
        %v2992 = vmax.f32 %v2695, %v2834
        %v2993 = vmax.f32 %v2696, %v2836
        %v2994 = vmax.f32 %v2697, %v2838
        %v2995 = vmax.f32 %v2648, %v2840
        %v2996 = vmax.f32 %v2698, %v2842
        %v2997 = vmax.f32 %v2699, %v2844
        %v2998 = vmax.f32 %v2700, %v2846
        %v2999 = vmax.f32 %v2649, %v2848
        %v3000 = vmax.f32 %v2701, %v2850
        %v3001 = vmax.f32 %v2702, %v2852
        %v3002 = vmax.f32 %v2703, %v2854
        %v3003 = vmax.f32 %v2650, %v2856
        %v3004 = vmax.f32 %v2704, %v2858
        %v3005 = vmax.f32 %v2705, %v2860
        %v3006 = vmax.f32 %v2706, %v2862
        %v3007 = vmax.f32 %v2651, %v2864
        %v3008 = vmax.f32 %v2707, %v2866
        %v3009 = vmax.f32 %v2708, %v2868
        %v3010 = vmax.f32 %v2709, %v2870
        %v3011 = vmax.f32 %v2652, %v2872
        %v3012 = vmax.f32 %v2710, %v2874
        %v3013 = vmax.f32 %v2711, %v2876
        %v3014 = vmax.f32 %v2712, %v2878
        %v3015 = vmax.f32 %v2653, %v2880
        %v3016 = vmax.f32 %v2713, %v2882
        %v3017 = vmax.f32 %v2714, %v2884
        %v3018 = vmax.f32 %v2715, %v2886
        %v3019 = vmax.f32 %v2654, %v2888
        %v3020 = vmax.f32 %v2716, %v2890
        %v3021 = vmax.f32 %v2717, %v2892
        %v3022 = vmax.f32 %v2718, %v2894
        %vm3023 = vcmask 519168
        %3024 = vst.msk [vmem:[#allocation2] sm:$0xf] %vm3023, 0
        %vm3025 = vcmask 516096
        %3026 = vst.msk [vmem:[#allocation2 + $0x4] sm:$0x1] %vm3025, 0
        %3027 = vst.msk [vmem:[#allocation2 + $0x8] sm:$0xf] %vm3023, 0
        %3028 = vst.msk [vmem:[#allocation2 + $0xc] sm:$0x1] %vm3025, 0
        %3029 = vst.msk [vmem:[#allocation2 + $0x10] sm:$0xf] %vm3023, 0
        %3030 = vst.msk [vmem:[#allocation2 + $0x14] sm:$0x1] %vm3025, 0
        %3031 = vst.msk [vmem:[#allocation2 + $0x18] sm:$0xf] %vm3023, 0
        %3032 = vst.msk [vmem:[#allocation2 + $0x1c] sm:$0x1] %vm3025, 0
        %3033 = vst.msk [vmem:[#allocation2 + $0x20] sm:$0xf] %vm3023, 0
        %3034 = vst.msk [vmem:[#allocation2 + $0x24] sm:$0x1] %vm3025, 0
        %3035 = vst.msk [vmem:[#allocation2 + $0x28] sm:$0xf] %vm3023, 0
        %3036 = vst.msk [vmem:[#allocation2 + $0x2c] sm:$0x1] %vm3025, 0
        %3037 = vst.msk [vmem:[#allocation2 + $0x30] sm:$0xf] %vm3023, 0
        %3038 = vst.msk [vmem:[#allocation2 + $0x34] sm:$0x1] %vm3025, 0
        %3039 = vst.msk [vmem:[#allocation2 + $0x38] sm:$0xf] %vm3023, 0
        %3040 = vst.msk [vmem:[#allocation2 + $0x3c] sm:$0x1] %vm3025, 0
        %3041 = vst.msk [vmem:[#allocation2 + $0x40] sm:$0xf] %vm3023, 0
        %3042 = vst.msk [vmem:[#allocation2 + $0x44] sm:$0x1] %vm3025, 0
        %3043 = vst.msk [vmem:[#allocation2 + $0x48] sm:$0xf] %vm3023, 0
        %3044 = vst.msk [vmem:[#allocation2 + $0x4c] sm:$0x1] %vm3025, 0
        %v3045 = vpack.c.bf16 %v2959, %v2959
        %v3046 = vpack.c.bf16 %v2960, %v2960
        %v3047 = vpack.c.bf16 %v2961, %v2961
        %v3048 = vpack.c.bf16 %v2962, %v2962
        %v3049 = vpack.c.bf16 %v2963, %v2963
        %v3050 = vpack.c.bf16 %v2964, %v2964
        %v3051 = vpack.c.bf16 %v2965, %v2965
        %v3052 = vpack.c.bf16 %v2966, %v2966
        %v3053 = vpack.c.bf16 %v2967, %v2967
        %v3054 = vpack.c.bf16 %v2968, %v2968
        %v3055 = vpack.c.bf16 %v2969, %v2969
        %v3056 = vpack.c.bf16 %v2970, %v2970
        %v3057 = vpack.c.bf16 %v2971, %v2971
        %v3058 = vpack.c.bf16 %v2972, %v2972
        %v3059 = vpack.c.bf16 %v2973, %v2973
        %v3060 = vpack.c.bf16 %v2974, %v2974
        %v3061 = vpack.c.bf16 %v2975, %v2975
        %v3062 = vpack.c.bf16 %v2976, %v2976
        %v3063 = vpack.c.bf16 %v2977, %v2977
        %v3064 = vpack.c.bf16 %v2978, %v2978
        %v3065 = vpack.c.bf16 %v2979, %v2979
        %v3066 = vpack.c.bf16 %v2980, %v2980
        %v3067 = vpack.c.bf16 %v2981, %v2981
        %v3068 = vpack.c.bf16 %v2982, %v2982
        %v3069 = vpack.c.bf16 %v2983, %v2983
        %v3070 = vpack.c.bf16 %v2984, %v2984
        %v3071 = vpack.c.bf16 %v2985, %v2985
        %v3072 = vpack.c.bf16 %v2986, %v2986
        %v3073 = vpack.c.bf16 %v2987, %v2987
        %v3074 = vpack.c.bf16 %v2988, %v2988
        %v3075 = vpack.c.bf16 %v2989, %v2989
        %v3076 = vpack.c.bf16 %v2990, %v2990
        %v3077 = vpack.c.bf16 %v2991, %v2991
        %v3078 = vpack.c.bf16 %v2992, %v2992
        %v3079 = vpack.c.bf16 %v2993, %v2993
        %v3080 = vpack.c.bf16 %v2994, %v2994
        %v3081 = vpack.c.bf16 %v2995, %v2995
        %v3082 = vpack.c.bf16 %v2996, %v2996
        %v3083 = vpack.c.bf16 %v2997, %v2997
        %v3084 = vpack.c.bf16 %v2998, %v2998
        %v3085 = vpack.c.bf16 %v2999, %v2999
        %v3086 = vpack.c.bf16 %v3000, %v3000
        %v3087 = vpack.c.bf16 %v3001, %v3001
        %v3088 = vpack.c.bf16 %v3002, %v3002
        %v3089 = vpack.c.bf16 %v3003, %v3003
        %v3090 = vpack.c.bf16 %v3004, %v3004
        %v3091 = vpack.c.bf16 %v3005, %v3005
        %v3092 = vpack.c.bf16 %v3006, %v3006
        %v3093 = vpack.c.bf16 %v3007, %v3007
        %v3094 = vpack.c.bf16 %v3008, %v3008
        %v3095 = vpack.c.bf16 %v3009, %v3009
        %v3096 = vpack.c.bf16 %v3010, %v3010
        %v3097 = vpack.c.bf16 %v3011, %v3011
        %v3098 = vpack.c.bf16 %v3012, %v3012
        %v3099 = vpack.c.bf16 %v3013, %v3013
        %v3100 = vpack.c.bf16 %v3014, %v3014
        %v3101 = vpack.c.bf16 %v3015, %v3015
        %v3102 = vpack.c.bf16 %v3016, %v3016
        %v3103 = vpack.c.bf16 %v3017, %v3017
        %v3104 = vpack.c.bf16 %v3018, %v3018
        %v3105 = vpack.c.bf16 %v3019, %v3019
        %v3106 = vpack.c.bf16 %v3020, %v3020
        %v3107 = vpack.c.bf16 %v3021, %v3021
        %v3108 = vpack.c.bf16 %v3022, %v3022
        %v3173 = vunpack.c.l.b16 %v3045
        %v3174 = vunpack.c.l.b16 %v3046
        %v3175 = vunpack.c.l.b16 %v3047
        %v3176 = vunpack.c.l.b16 %v3048
        %v3177 = vunpack.c.l.b16 %v3049
        %v3178 = vunpack.c.l.b16 %v3050
        %v3179 = vunpack.c.l.b16 %v3051
        %v3180 = vunpack.c.l.b16 %v3052
        %v3181 = vunpack.c.l.b16 %v3053
        %v3182 = vunpack.c.l.b16 %v3054
        %v3183 = vunpack.c.l.b16 %v3055
        %v3184 = vunpack.c.l.b16 %v3056
        %v3185 = vunpack.c.l.b16 %v3057
        %v3186 = vunpack.c.l.b16 %v3058
        %v3187 = vunpack.c.l.b16 %v3059
        %v3188 = vunpack.c.l.b16 %v3060
        %v3189 = vunpack.c.l.b16 %v3061
        %v3190 = vunpack.c.l.b16 %v3062
        %v3191 = vunpack.c.l.b16 %v3063
        %v3192 = vunpack.c.l.b16 %v3064
        %v3193 = vunpack.c.l.b16 %v3065
        %v3194 = vunpack.c.l.b16 %v3066
        %v3195 = vunpack.c.l.b16 %v3067
        %v3196 = vunpack.c.l.b16 %v3068
        %v3197 = vunpack.c.l.b16 %v3069
        %v3198 = vunpack.c.l.b16 %v3070
        %v3199 = vunpack.c.l.b16 %v3071
        %v3200 = vunpack.c.l.b16 %v3072
        %v3201 = vunpack.c.l.b16 %v3073
        %v3202 = vunpack.c.l.b16 %v3074
        %v3203 = vunpack.c.l.b16 %v3075
        %v3204 = vunpack.c.l.b16 %v3076
        %v3205 = vunpack.c.l.b16 %v3077
        %v3206 = vunpack.c.l.b16 %v3078
        %v3207 = vunpack.c.l.b16 %v3079
        %v3208 = vunpack.c.l.b16 %v3080
        %v3209 = vunpack.c.l.b16 %v3081
        %v3210 = vunpack.c.l.b16 %v3082
        %v3211 = vunpack.c.l.b16 %v3083
        %v3212 = vunpack.c.l.b16 %v3084
        %v3213 = vunpack.c.l.b16 %v3085
        %v3214 = vunpack.c.l.b16 %v3086
        %v3215 = vunpack.c.l.b16 %v3087
        %v3216 = vunpack.c.l.b16 %v3088
        %v3217 = vunpack.c.l.b16 %v3089
        %v3218 = vunpack.c.l.b16 %v3090
        %v3219 = vunpack.c.l.b16 %v3091
        %v3220 = vunpack.c.l.b16 %v3092
        %v3221 = vunpack.c.l.b16 %v3093
        %v3222 = vunpack.c.l.b16 %v3094
        %v3223 = vunpack.c.l.b16 %v3095
        %v3224 = vunpack.c.l.b16 %v3096
        %v3225 = vunpack.c.l.b16 %v3097
        %v3226 = vunpack.c.l.b16 %v3098
        %v3227 = vunpack.c.l.b16 %v3099
        %v3228 = vunpack.c.l.b16 %v3100
        %v3229 = vunpack.c.l.b16 %v3101
        %v3230 = vunpack.c.l.b16 %v3102
        %v3231 = vunpack.c.l.b16 %v3103
        %v3232 = vunpack.c.l.b16 %v3104
        %v3233 = vunpack.c.l.b16 %v3105
        %v3234 = vunpack.c.l.b16 %v3106
        %v3235 = vunpack.c.l.b16 %v3107
        %v3236 = vunpack.c.l.b16 %v3108
        %v3237 = vrot.slane %v3173, 7
        %v3238 = vrot.slane %v3174, 6
        %vm3239 = vcmask 1042434
        %v3240 = vsel %vm3239, %v3238, %v3237
        %v3241 = vrot.slane %v3175, 5
        %vm3242 = vcmask 1043459
        %v3243 = vsel %vm3242, %v3241, %v3240
        %v3244 = vrot.slane %v3176, 4
        %vm3245 = vcmask 1044484
        %v3246 = vsel %vm3245, %v3244, %v3243
        %v3247 = vrot.slane %v3177, 3
        %vm3248 = vcmask 1045509
        %v3249 = vsel %vm3248, %v3247, %v3246
        %v3250 = vrot.slane %v3178, 2
        %vm3251 = vcmask 1046534
        %v3252 = vsel %vm3251, %v3250, %v3249
        %v3253 = vrot.slane %v3179, 1
        %vm3254 = vcmask 1047559
        %v3255 = vsel %vm3254, %v3253, %v3252
        %v3256 = vrot.slane %v3181, 7
        %v3257 = vrot.slane %v3182, 6
        %v3258 = vsel %vm3239, %v3257, %v3256
        %v3259 = vrot.slane %v3183, 5
        %v3260 = vsel %vm3242, %v3259, %v3258
        %v3261 = vrot.slane %v3184, 4
        %v3262 = vsel %vm3245, %v3261, %v3260
        %v3263 = vrot.slane %v3185, 3
        %v3264 = vsel %vm3248, %v3263, %v3262
        %v3265 = vrot.slane %v3186, 2
        %v3266 = vsel %vm3251, %v3265, %v3264
        %v3267 = vrot.slane %v3187, 1
        %v3268 = vsel %vm3254, %v3267, %v3266
        %v3269 = vrot.slane %v3189, 7
        %v3270 = vrot.slane %v3190, 6
        %v3271 = vsel %vm3239, %v3270, %v3269
        %v3272 = vrot.slane %v3191, 5
        %v3273 = vsel %vm3242, %v3272, %v3271
        %v3274 = vrot.slane %v3192, 4
        %v3275 = vsel %vm3245, %v3274, %v3273
        %v3276 = vrot.slane %v3193, 3
        %v3277 = vsel %vm3248, %v3276, %v3275
        %v3278 = vrot.slane %v3194, 2
        %v3279 = vsel %vm3251, %v3278, %v3277
        %v3280 = vrot.slane %v3195, 1
        %v3281 = vsel %vm3254, %v3280, %v3279
        %v3282 = vrot.slane %v3197, 7
        %v3283 = vrot.slane %v3198, 6
        %v3284 = vsel %vm3239, %v3283, %v3282
        %v3285 = vrot.slane %v3199, 5
        %v3286 = vsel %vm3242, %v3285, %v3284
        %v3287 = vrot.slane %v3200, 4
        %v3288 = vsel %vm3245, %v3287, %v3286
        %v3289 = vrot.slane %v3201, 3
        %v3290 = vsel %vm3248, %v3289, %v3288
        %v3291 = vrot.slane %v3202, 2
        %v3292 = vsel %vm3251, %v3291, %v3290
        %v3293 = vrot.slane %v3203, 1
        %v3294 = vsel %vm3254, %v3293, %v3292
        %v3295 = vrot.slane %v3205, 7
        %v3296 = vrot.slane %v3206, 6
        %v3297 = vsel %vm3239, %v3296, %v3295
        %v3298 = vrot.slane %v3207, 5
        %v3299 = vsel %vm3242, %v3298, %v3297
        %v3300 = vrot.slane %v3208, 4
        %v3301 = vsel %vm3245, %v3300, %v3299
        %v3302 = vrot.slane %v3209, 3
        %v3303 = vsel %vm3248, %v3302, %v3301
        %v3304 = vrot.slane %v3210, 2
        %v3305 = vsel %vm3251, %v3304, %v3303
        %v3306 = vrot.slane %v3211, 1
        %v3307 = vsel %vm3254, %v3306, %v3305
        %v3308 = vrot.slane %v3213, 7
        %v3309 = vrot.slane %v3214, 6
        %v3310 = vsel %vm3239, %v3309, %v3308
        %v3311 = vrot.slane %v3215, 5
        %v3312 = vsel %vm3242, %v3311, %v3310
        %v3313 = vrot.slane %v3216, 4
        %v3314 = vsel %vm3245, %v3313, %v3312
        %v3315 = vrot.slane %v3217, 3
        %v3316 = vsel %vm3248, %v3315, %v3314
        %v3317 = vrot.slane %v3218, 2
        %v3318 = vsel %vm3251, %v3317, %v3316
        %v3319 = vrot.slane %v3219, 1
        %v3320 = vsel %vm3254, %v3319, %v3318
        %v3321 = vrot.slane %v3221, 7
        %v3322 = vrot.slane %v3222, 6
        %v3323 = vsel %vm3239, %v3322, %v3321
        %v3324 = vrot.slane %v3223, 5
        %v3325 = vsel %vm3242, %v3324, %v3323
        %v3326 = vrot.slane %v3224, 4
        %v3327 = vsel %vm3245, %v3326, %v3325
        %v3328 = vrot.slane %v3225, 3
        %v3329 = vsel %vm3248, %v3328, %v3327
        %v3330 = vrot.slane %v3226, 2
        %v3331 = vsel %vm3251, %v3330, %v3329
        %v3332 = vrot.slane %v3227, 1
        %v3333 = vsel %vm3254, %v3332, %v3331
        %v3334 = vrot.slane %v3229, 7
        %v3335 = vrot.slane %v3230, 6
        %v3336 = vsel %vm3239, %v3335, %v3334
        %v3337 = vrot.slane %v3231, 5
        %v3338 = vsel %vm3242, %v3337, %v3336
        %v3339 = vrot.slane %v3232, 4
        %v3340 = vsel %vm3245, %v3339, %v3338
        %v3341 = vrot.slane %v3233, 3
        %v3342 = vsel %vm3248, %v3341, %v3340
        %v3343 = vrot.slane %v3234, 2
        %v3344 = vsel %vm3251, %v3343, %v3342
        %v3345 = vrot.slane %v3235, 1
        %v3346 = vsel %vm3254, %v3345, %v3344
        %v3347 = vpack.c.b16 %v3255, %v3255
        %v3348 = vpack.c.b16 %v3180, %v3180
        %v3349 = vpack.c.b16 %v3268, %v3268
        %v3350 = vpack.c.b16 %v3188, %v3188
        %v3351 = vpack.c.b16 %v3281, %v3281
        %v3352 = vpack.c.b16 %v3196, %v3196
        %v3353 = vpack.c.b16 %v3294, %v3294
        %v3354 = vpack.c.b16 %v3204, %v3204
        %v3355 = vpack.c.b16 %v3307, %v3307
        %v3356 = vpack.c.b16 %v3212, %v3212
        %v3357 = vpack.c.b16 %v3320, %v3320
        %v3358 = vpack.c.b16 %v3220, %v3220
        %v3359 = vpack.c.b16 %v3333, %v3333
        %v3360 = vpack.c.b16 %v3228, %v3228
        %v3361 = vpack.c.b16 %v3346, %v3346
        %v3362 = vpack.c.b16 %v3236, %v3236
        %s3379 = scalar_lea.vmem [#allocation2], 8
        %vm3380 = vcmask 519168
        %vm3381 = vsmask.f32 7938
        %vm3382 = vmand %vm3380, %vm3381
        %v3383 = vld [vmem:[%s3379] sm:$0xf]
        %v3384 = vsel %vm3382, %v3347, %v3383
        %3385 = vst [vmem:[%s3379] sm:$0xf] %v3384
        %vm3386 = vcmask 516096
        %vm3387 = vsmask.f32 256
        %vm3388 = vmand %vm3386, %vm3387
        %v3389 = vld [vmem:[%s3379 + $0x4] sm:$0x1]
        %v3390 = vsel %vm3388, %v3348, %v3389
        %3391 = vst [vmem:[%s3379 + $0x4] sm:$0x1] %v3390
        %v3392 = vld [vmem:[%s3379 + $0x8] sm:$0xf]
        %v3393 = vsel %vm3382, %v3349, %v3392
        %3394 = vst [vmem:[%s3379 + $0x8] sm:$0xf] %v3393
        %v3395 = vld [vmem:[%s3379 + $0xc] sm:$0x1]
        %v3396 = vsel %vm3388, %v3350, %v3395
        %3397 = vst [vmem:[%s3379 + $0xc] sm:$0x1] %v3396
        %v3398 = vld [vmem:[%s3379 + $0x10] sm:$0xf]
        %v3399 = vsel %vm3382, %v3351, %v3398
        %3400 = vst [vmem:[%s3379 + $0x10] sm:$0xf] %v3399
        %v3401 = vld [vmem:[%s3379 + $0x14] sm:$0x1]
        %v3402 = vsel %vm3388, %v3352, %v3401
        %3403 = vst [vmem:[%s3379 + $0x14] sm:$0x1] %v3402
        %v3404 = vld [vmem:[%s3379 + $0x18] sm:$0xf]
        %v3405 = vsel %vm3382, %v3353, %v3404
        %3406 = vst [vmem:[%s3379 + $0x18] sm:$0xf] %v3405
        %v3407 = vld [vmem:[%s3379 + $0x1c] sm:$0x1]
        %v3408 = vsel %vm3388, %v3354, %v3407
        %3409 = vst [vmem:[%s3379 + $0x1c] sm:$0x1] %v3408
        %v3410 = vld [vmem:[%s3379 + $0x20] sm:$0xf]
        %v3411 = vsel %vm3382, %v3355, %v3410
        %3412 = vst [vmem:[%s3379 + $0x20] sm:$0xf] %v3411
        %v3413 = vld [vmem:[%s3379 + $0x24] sm:$0x1]
        %v3414 = vsel %vm3388, %v3356, %v3413
        %3415 = vst [vmem:[%s3379 + $0x24] sm:$0x1] %v3414
        %v3416 = vld [vmem:[%s3379 + $0x28] sm:$0xf]
        %v3417 = vsel %vm3382, %v3357, %v3416
        %3418 = vst [vmem:[%s3379 + $0x28] sm:$0xf] %v3417
        %v3419 = vld [vmem:[%s3379 + $0x2c] sm:$0x1]
        %v3420 = vsel %vm3388, %v3358, %v3419
        %3421 = vst [vmem:[%s3379 + $0x2c] sm:$0x1] %v3420
        %v3422 = vld [vmem:[%s3379 + $0x30] sm:$0xf]
        %v3423 = vsel %vm3382, %v3359, %v3422
        %3424 = vst [vmem:[%s3379 + $0x30] sm:$0xf] %v3423
        %v3425 = vld [vmem:[%s3379 + $0x34] sm:$0x1]
        %v3426 = vsel %vm3388, %v3360, %v3425
        %3427 = vst [vmem:[%s3379 + $0x34] sm:$0x1] %v3426
        %v3428 = vld [vmem:[%s3379 + $0x38] sm:$0xf]
        %v3429 = vsel %vm3382, %v3361, %v3428
        %3430 = vst [vmem:[%s3379 + $0x38] sm:$0xf] %v3429
        %v3431 = vld [vmem:[%s3379 + $0x3c] sm:$0x1]
        %v3432 = vsel %vm3388, %v3362, %v3431
        %3433 = vst [vmem:[%s3379 + $0x3c] sm:$0x1] %v3432
        %v3434 = vld [vmem:[#allocation2] sm:$0xf]
        %v3435 = vld [vmem:[#allocation2 + $0x8] sm:$0xf]
        %v3436 = vld [vmem:[#allocation2 + $0x10] sm:$0xf]
        %v3437 = vld [vmem:[#allocation2 + $0x18] sm:$0xf]
        %v3438 = vld [vmem:[#allocation2 + $0x20] sm:$0xf]
        %v3439 = vld [vmem:[#allocation2 + $0x28] sm:$0xf]
        %v3440 = vld [vmem:[#allocation2 + $0x30] sm:$0xf]
        %v3441 = vld [vmem:[#allocation2 + $0x38] sm:$0xf]
        %v3442 = vld [vmem:[#allocation2 + $0x40] sm:$0xf]
        %v3443 = vld [vmem:[#allocation2 + $0x48] sm:$0xf]
        %v3444 = vld [vmem:[#allocation2 + $0x4] sm:$0x1]
        %v3445 = vld [vmem:[#allocation2 + $0xc] sm:$0x1]
        %v3446 = vld [vmem:[#allocation2 + $0x14] sm:$0x1]
        %v3447 = vld [vmem:[#allocation2 + $0x1c] sm:$0x1]
        %v3448 = vld [vmem:[#allocation2 + $0x24] sm:$0x1]
        %v3449 = vld [vmem:[#allocation2 + $0x2c] sm:$0x1]
        %v3450 = vld [vmem:[#allocation2 + $0x34] sm:$0x1]
        %v3451 = vld [vmem:[#allocation2 + $0x3c] sm:$0x1]
        %v3452 = vld [vmem:[#allocation2 + $0x44] sm:$0x1]
        %v3453 = vld [vmem:[#allocation2 + $0x4c] sm:$0x1]
        %v3454 = vld [vmem:[#allocation2] sm:$0xe]
        %v3455 = vld [vmem:[#allocation2 + $0x8] sm:$0xe]
        %v3456 = vld [vmem:[#allocation2 + $0x10] sm:$0xe]
        %v3457 = vld [vmem:[#allocation2 + $0x18] sm:$0xe]
        %v3458 = vld [vmem:[#allocation2 + $0x20] sm:$0xe]
        %v3459 = vld [vmem:[#allocation2 + $0x28] sm:$0xe]
        %v3460 = vld [vmem:[#allocation2 + $0x30] sm:$0xe]
        %v3461 = vld [vmem:[#allocation2 + $0x38] sm:$0xe]
        %v3462 = vld [vmem:[#allocation2 + $0x40] sm:$0xe]
        %v3463 = vld [vmem:[#allocation2 + $0x48] sm:$0xe]
        %v3464 = vld [vmem:[%s4] sm:$0xf]
        %v3465 = vld [vmem:[%s4 + $0x4] sm:$0xf]
        %v3466 = vld [vmem:[%s4 + $0x8] sm:$0xf]
        %v3467 = vld [vmem:[%s4 + $0xc] sm:$0xf]
        %v3468 = vld [vmem:[%s4 + $0x10] sm:$0xf]
        %v3469 = vld [vmem:[%s4 + $0x14] sm:$0xf]
        %v3470 = vld [vmem:[%s4 + $0x18] sm:$0xf]
        %v3471 = vld [vmem:[%s4 + $0x1c] sm:$0xf]
        %v3473 = vshrl.u32 %v3434, 16
        %v3475 = vrot.slane %v3473, 4
        %v3476 = vshll.u32 %v3434, 16
        %v3478 = vrot.slane %v3476, 5
        %v3479 = vor.u32 %v3475, %v3478
        %v3480 = vrot.slane %v3479, 4
        %v3482 = vshll.u32 %v3444, 16
        %v3484 = vrot.slane %v3482, 5
        %v3485 = vsel %vm504, %v3480, %v3484
        %v3487 = vshrl.u32 %v3435, 16
        %v3489 = vrot.slane %v3487, 4
        %v3490 = vshll.u32 %v3435, 16
        %v3492 = vrot.slane %v3490, 5
        %v3493 = vor.u32 %v3489, %v3492
        %v3494 = vrot.slane %v3493, 4
        %v3496 = vshll.u32 %v3445, 16
        %v3498 = vrot.slane %v3496, 5
        %v3499 = vsel %vm504, %v3494, %v3498
        %v3501 = vshrl.u32 %v3436, 16
        %v3503 = vrot.slane %v3501, 4
        %v3504 = vshll.u32 %v3436, 16
        %v3506 = vrot.slane %v3504, 5
        %v3507 = vor.u32 %v3503, %v3506
        %v3508 = vrot.slane %v3507, 4
        %v3510 = vshll.u32 %v3446, 16
        %v3512 = vrot.slane %v3510, 5
        %v3513 = vsel %vm504, %v3508, %v3512
        %v3515 = vshrl.u32 %v3437, 16
        %v3517 = vrot.slane %v3515, 4
        %v3518 = vshll.u32 %v3437, 16
        %v3520 = vrot.slane %v3518, 5
        %v3521 = vor.u32 %v3517, %v3520
        %v3522 = vrot.slane %v3521, 4
        %v3524 = vshll.u32 %v3447, 16
        %v3526 = vrot.slane %v3524, 5
        %v3527 = vsel %vm504, %v3522, %v3526
        %v3529 = vshrl.u32 %v3438, 16
        %v3531 = vrot.slane %v3529, 4
        %v3532 = vshll.u32 %v3438, 16
        %v3534 = vrot.slane %v3532, 5
        %v3535 = vor.u32 %v3531, %v3534
        %v3536 = vrot.slane %v3535, 4
        %v3538 = vshll.u32 %v3448, 16
        %v3540 = vrot.slane %v3538, 5
        %v3541 = vsel %vm504, %v3536, %v3540
        %v3543 = vshrl.u32 %v3439, 16
        %v3545 = vrot.slane %v3543, 4
        %v3546 = vshll.u32 %v3439, 16
        %v3548 = vrot.slane %v3546, 5
        %v3549 = vor.u32 %v3545, %v3548
        %v3550 = vrot.slane %v3549, 4
        %v3552 = vshll.u32 %v3449, 16
        %v3554 = vrot.slane %v3552, 5
        %v3555 = vsel %vm504, %v3550, %v3554
        %v3557 = vshrl.u32 %v3440, 16
        %v3559 = vrot.slane %v3557, 4
        %v3560 = vshll.u32 %v3440, 16
        %v3562 = vrot.slane %v3560, 5
        %v3563 = vor.u32 %v3559, %v3562
        %v3564 = vrot.slane %v3563, 4
        %v3566 = vshll.u32 %v3450, 16
        %v3568 = vrot.slane %v3566, 5
        %v3569 = vsel %vm504, %v3564, %v3568
        %v3571 = vshrl.u32 %v3441, 16
        %v3573 = vrot.slane %v3571, 4
        %v3574 = vshll.u32 %v3441, 16
        %v3576 = vrot.slane %v3574, 5
        %v3577 = vor.u32 %v3573, %v3576
        %v3578 = vrot.slane %v3577, 4
        %v3580 = vshll.u32 %v3451, 16
        %v3582 = vrot.slane %v3580, 5
        %v3583 = vsel %vm504, %v3578, %v3582
        %s3584 = scalar_lea.vmem %s4, 32
        %v3585 = vld [vmem:[%s3584] sm:$0xf]
        %v3586 = vld [vmem:[%s3584 + $0x4] sm:$0xf]
        %v3587 = vld [vmem:[%s3584 + $0x8] sm:$0xf]
        %v3588 = vld [vmem:[%s3584 + $0xc] sm:$0xf]
        %v3589 = vld [vmem:[%s3584 + $0x10] sm:$0xf]
        %v3590 = vld [vmem:[%s3584 + $0x14] sm:$0xf]
        %v3591 = vld [vmem:[%s3584 + $0x18] sm:$0xf]
        %v3592 = vld [vmem:[%s3584 + $0x1c] sm:$0xf]
        %v3593 = vunpack.c.l.b16 %v3485
        %v3594 = vunpack.c.l.b16 %v3499
        %v3595 = vunpack.c.l.b16 %v3513
        %v3596 = vunpack.c.l.b16 %v3527
        %v3597 = vunpack.c.l.b16 %v3541
        %v3598 = vunpack.c.l.b16 %v3555
        %v3599 = vunpack.c.l.b16 %v3569
        %v3600 = vunpack.c.l.b16 %v3583
        %v3601 = vpack.c.b16 %v3594, %v3593
        %v3602 = vpack.c.b16 %v3596, %v3595
        %v3603 = vpack.c.b16 %v3598, %v3597
        %v3604 = vpack.c.b16 %v3600, %v3599
        %v3613 = vunpack.c.l.b16 %v3585
        %v3614 = vunpack.c.l.b16 %v3586
        %v3615 = vunpack.c.l.b16 %v3587
        %v3616 = vunpack.c.l.b16 %v3588
        %v3617 = vunpack.c.l.b16 %v3589
        %v3618 = vunpack.c.l.b16 %v3590
        %v3619 = vunpack.c.l.b16 %v3591
        %v3620 = vunpack.c.l.b16 %v3592
        %v3621 = vpack.c.b16 %v3614, %v3613
        %v3622 = vpack.c.b16 %v3616, %v3615
        %v3623 = vpack.c.b16 %v3618, %v3617
        %v3624 = vpack.c.b16 %v3620, %v3619
        %vm3629 = vcmask 523264
        %v3631 = vsel %vm3629, %v3601, 0
        %v3634 = vsel %vm3629, %v3602, 0
        %v3637 = vsel %vm3629, %v3603, 0
        %v3640 = vsel %vm3629, %v3604, 0
        %3642 = vmatpush.bf16.msra.mxu0 0
        %3643 = vmatpush.bf16.msra.mxu0 0
        %3644 = vmatpush.bf16.msra.mxu0 0
        %3645 = vmatpush.bf16.msra.mxu0 0
        %3646 = vmatpush.bf16.msra.mxu0 %v3624
        %3647 = vmatpush.bf16.msra.mxu0 %v3623
        %3648 = vmatpush.bf16.msra.mxu0 %v3622
        %3649 = vmatpush.bf16.msra.mxu0 %v3621
        %3650 = vmatmul.bf16.gmra.mxu0 %v3631
        %v3651 = vpop.f32.mrf.mxu0
        %v3652 = vadd.f32 0.0, %v3651
        %v3653 = vpop.f32.mrf.mxu0
        %v3654 = vadd.f32 0.0, %v3653
        %3655 = vmatmul.bf16.gmra.mxu0 %v3634
        %v3656 = vpop.f32.mrf.mxu0
        %v3657 = vadd.f32 0.0, %v3656
        %v3658 = vpop.f32.mrf.mxu0
        %v3659 = vadd.f32 0.0, %v3658
        %3660 = vmatmul.bf16.gmra.mxu0 %v3637
        %v3661 = vpop.f32.mrf.mxu0
        %v3662 = vadd.f32 0.0, %v3661
        %v3663 = vpop.f32.mrf.mxu0
        %v3664 = vadd.f32 0.0, %v3663
        %3665 = vmatmul.bf16.gmra.mxu0 %v3640
        %v3666 = vpop.f32.mrf.mxu0
        %v3667 = vadd.f32 0.0, %v3666
        %v3668 = vpop.f32.mrf.mxu0
        %v3669 = vadd.f32 0.0, %v3668
        %3670 = vdwg.mxu0
        %v3679 = vunpack.c.l.b16 %v3434
        %v3680 = vunpack.c.l.b16 %v3435
        %v3681 = vunpack.c.l.b16 %v3436
        %v3682 = vunpack.c.l.b16 %v3437
        %v3683 = vunpack.c.l.b16 %v3438
        %v3684 = vunpack.c.l.b16 %v3439
        %v3685 = vunpack.c.l.b16 %v3440
        %v3686 = vunpack.c.l.b16 %v3441
        %v3687 = vpack.c.b16 %v3680, %v3679
        %v3688 = vpack.c.b16 %v3682, %v3681
        %v3689 = vpack.c.b16 %v3684, %v3683
        %v3690 = vpack.c.b16 %v3686, %v3685
        %v3699 = vunpack.c.l.b16 %v3464
        %v3700 = vunpack.c.l.b16 %v3465
        %v3701 = vunpack.c.l.b16 %v3466
        %v3702 = vunpack.c.l.b16 %v3467
        %v3703 = vunpack.c.l.b16 %v3468
        %v3704 = vunpack.c.l.b16 %v3469
        %v3705 = vunpack.c.l.b16 %v3470
        %v3706 = vunpack.c.l.b16 %v3471
        %v3707 = vpack.c.b16 %v3700, %v3699
        %v3708 = vpack.c.b16 %v3702, %v3701
        %v3709 = vpack.c.b16 %v3704, %v3703
        %v3710 = vpack.c.b16 %v3706, %v3705
        %v3716 = vsel %vm3629, %v3687, 0
        %v3719 = vsel %vm3629, %v3688, 0
        %v3722 = vsel %vm3629, %v3689, 0
        %v3725 = vsel %vm3629, %v3690, 0
        %3727 = vmatpush.bf16.msra.mxu0 0
        %3728 = vmatpush.bf16.msra.mxu0 0
        %3729 = vmatpush.bf16.msra.mxu0 0
        %3730 = vmatpush.bf16.msra.mxu0 0
        %3731 = vmatpush.bf16.msra.mxu0 %v3710
        %3732 = vmatpush.bf16.msra.mxu0 %v3709
        %3733 = vmatpush.bf16.msra.mxu0 %v3708
        %3734 = vmatpush.bf16.msra.mxu0 %v3707
        %3735 = vmatmul.bf16.gmra.mxu0 %v3716
        %v3736 = vpop.f32.mrf.mxu0
        %v3737 = vadd.f32 %v3652, %v3736
        %v3738 = vpop.f32.mrf.mxu0
        %v3739 = vadd.f32 %v3654, %v3738
        %3740 = vmatmul.bf16.gmra.mxu0 %v3719
        %v3741 = vpop.f32.mrf.mxu0
        %v3742 = vadd.f32 %v3657, %v3741
        %v3743 = vpop.f32.mrf.mxu0
        %v3744 = vadd.f32 %v3659, %v3743
        %3745 = vmatmul.bf16.gmra.mxu0 %v3722
        %v3746 = vpop.f32.mrf.mxu0
        %v3747 = vadd.f32 %v3662, %v3746
        %v3748 = vpop.f32.mrf.mxu0
        %v3749 = vadd.f32 %v3664, %v3748
        %3750 = vmatmul.bf16.gmra.mxu0 %v3725
        %v3751 = vpop.f32.mrf.mxu0
        %v3752 = vadd.f32 %v3667, %v3751
        %v3753 = vpop.f32.mrf.mxu0
        %v3754 = vadd.f32 %v3669, %v3753
        %3755 = vdwg.mxu0
        %v3772 = vrot.slane %v3454, 5
        %v3773 = vrot.slane %v3772, 4
        %v3774 = vrot.slane %v3444, 5
        %v3775 = vsel %vm1338, %v3773, %v3774
        %v3776 = vrot.slane %v3455, 5
        %v3777 = vrot.slane %v3776, 4
        %v3778 = vrot.slane %v3445, 5
        %v3779 = vsel %vm1338, %v3777, %v3778
        %v3780 = vrot.slane %v3456, 5
        %v3781 = vrot.slane %v3780, 4
        %v3782 = vrot.slane %v3446, 5
        %v3783 = vsel %vm1338, %v3781, %v3782
        %v3784 = vrot.slane %v3457, 5
        %v3785 = vrot.slane %v3784, 4
        %v3786 = vrot.slane %v3447, 5
        %v3787 = vsel %vm1338, %v3785, %v3786
        %v3788 = vrot.slane %v3458, 5
        %v3789 = vrot.slane %v3788, 4
        %v3790 = vrot.slane %v3448, 5
        %v3791 = vsel %vm1338, %v3789, %v3790
        %v3792 = vrot.slane %v3459, 5
        %v3793 = vrot.slane %v3792, 4
        %v3794 = vrot.slane %v3449, 5
        %v3795 = vsel %vm1338, %v3793, %v3794
        %v3796 = vrot.slane %v3460, 5
        %v3797 = vrot.slane %v3796, 4
        %v3798 = vrot.slane %v3450, 5
        %v3799 = vsel %vm1338, %v3797, %v3798
        %v3800 = vrot.slane %v3461, 5
        %v3801 = vrot.slane %v3800, 4
        %v3802 = vrot.slane %v3451, 5
        %v3803 = vsel %vm1338, %v3801, %v3802
        %s3804 = scalar_lea.vmem %s4, 64
        %v3805 = vld [vmem:[%s3804] sm:$0xf]
        %v3806 = vld [vmem:[%s3804 + $0x4] sm:$0xf]
        %v3807 = vld [vmem:[%s3804 + $0x8] sm:$0xf]
        %v3808 = vld [vmem:[%s3804 + $0xc] sm:$0xf]
        %v3809 = vld [vmem:[%s3804 + $0x10] sm:$0xf]
        %v3810 = vld [vmem:[%s3804 + $0x14] sm:$0xf]
        %v3811 = vld [vmem:[%s3804 + $0x18] sm:$0xf]
        %v3812 = vld [vmem:[%s3804 + $0x1c] sm:$0xf]
        %v3813 = vunpack.c.l.b16 %v3775
        %v3814 = vunpack.c.l.b16 %v3779
        %v3815 = vunpack.c.l.b16 %v3783
        %v3816 = vunpack.c.l.b16 %v3787
        %v3817 = vunpack.c.l.b16 %v3791
        %v3818 = vunpack.c.l.b16 %v3795
        %v3819 = vunpack.c.l.b16 %v3799
        %v3820 = vunpack.c.l.b16 %v3803
        %v3821 = vpack.c.b16 %v3814, %v3813
        %v3822 = vpack.c.b16 %v3816, %v3815
        %v3823 = vpack.c.b16 %v3818, %v3817
        %v3824 = vpack.c.b16 %v3820, %v3819
        %v3833 = vunpack.c.l.b16 %v3805
        %v3834 = vunpack.c.l.b16 %v3806
        %v3835 = vunpack.c.l.b16 %v3807
        %v3836 = vunpack.c.l.b16 %v3808
        %v3837 = vunpack.c.l.b16 %v3809
        %v3838 = vunpack.c.l.b16 %v3810
        %v3839 = vunpack.c.l.b16 %v3811
        %v3840 = vunpack.c.l.b16 %v3812
        %v3841 = vpack.c.b16 %v3834, %v3833
        %v3842 = vpack.c.b16 %v3836, %v3835
        %v3843 = vpack.c.b16 %v3838, %v3837
        %v3844 = vpack.c.b16 %v3840, %v3839
        %v3850 = vsel %vm3629, %v3821, 0
        %v3853 = vsel %vm3629, %v3822, 0
        %v3856 = vsel %vm3629, %v3823, 0
        %v3859 = vsel %vm3629, %v3824, 0
        %3861 = vmatpush.bf16.msra.mxu0 0
        %3862 = vmatpush.bf16.msra.mxu0 0
        %3863 = vmatpush.bf16.msra.mxu0 0
        %3864 = vmatpush.bf16.msra.mxu0 0
        %3865 = vmatpush.bf16.msra.mxu0 %v3844
        %3866 = vmatpush.bf16.msra.mxu0 %v3843
        %3867 = vmatpush.bf16.msra.mxu0 %v3842
        %3868 = vmatpush.bf16.msra.mxu0 %v3841
        %3869 = vmatmul.bf16.gmra.mxu0 %v3850
        %v3870 = vpop.f32.mrf.mxu0
        %v3871 = vadd.f32 0.0, %v3870
        %v3872 = vpop.f32.mrf.mxu0
        %v3873 = vadd.f32 0.0, %v3872
        %3874 = vmatmul.bf16.gmra.mxu0 %v3853
        %v3875 = vpop.f32.mrf.mxu0
        %v3876 = vadd.f32 0.0, %v3875
        %v3877 = vpop.f32.mrf.mxu0
        %v3878 = vadd.f32 0.0, %v3877
        %3879 = vmatmul.bf16.gmra.mxu0 %v3856
        %v3880 = vpop.f32.mrf.mxu0
        %v3881 = vadd.f32 0.0, %v3880
        %v3882 = vpop.f32.mrf.mxu0
        %v3883 = vadd.f32 0.0, %v3882
        %3884 = vmatmul.bf16.gmra.mxu0 %v3859
        %v3885 = vpop.f32.mrf.mxu0
        %v3886 = vadd.f32 0.0, %v3885
        %v3887 = vpop.f32.mrf.mxu0
        %v3888 = vadd.f32 0.0, %v3887
        %3889 = vdwg.mxu0
        %v3890 = vadd.f32 %v3737, %v3871
        %v3891 = vadd.f32 %v3739, %v3873
        %v3892 = vadd.f32 %v3742, %v3876
        %v3893 = vadd.f32 %v3744, %v3878
        %v3894 = vadd.f32 %v3747, %v3881
        %v3895 = vadd.f32 %v3749, %v3883
        %v3896 = vadd.f32 %v3752, %v3886
        %v3897 = vadd.f32 %v3754, %v3888
        %s3898 = scalar_lea.vmem %s4, 96
        %v3899 = vld [vmem:[%s3898] sm:$0xf]
        %v3900 = vld [vmem:[%s3898 + $0x4] sm:$0xf]
        %v3901 = vld [vmem:[%s3898 + $0x8] sm:$0xf]
        %v3902 = vld [vmem:[%s3898 + $0xc] sm:$0xf]
        %v3903 = vld [vmem:[%s3898 + $0x10] sm:$0xf]
        %v3904 = vld [vmem:[%s3898 + $0x14] sm:$0xf]
        %v3905 = vld [vmem:[%s3898 + $0x18] sm:$0xf]
        %v3906 = vld [vmem:[%s3898 + $0x1c] sm:$0xf]
        %v3908 = vunpack.c.l.b16 %v3442
        %v3909 = vpack.c.b16 %v3681, %v3680
        %v3910 = vpack.c.b16 %v3683, %v3682
        %v3911 = vpack.c.b16 %v3685, %v3684
        %v3912 = vpack.c.b16 %v3908, %v3686
        %v3921 = vunpack.c.l.b16 %v3899
        %v3922 = vunpack.c.l.b16 %v3900
        %v3923 = vunpack.c.l.b16 %v3901
        %v3924 = vunpack.c.l.b16 %v3902
        %v3925 = vunpack.c.l.b16 %v3903
        %v3926 = vunpack.c.l.b16 %v3904
        %v3927 = vunpack.c.l.b16 %v3905
        %v3928 = vunpack.c.l.b16 %v3906
        %v3929 = vpack.c.b16 %v3922, %v3921
        %v3930 = vpack.c.b16 %v3924, %v3923
        %v3931 = vpack.c.b16 %v3926, %v3925
        %v3932 = vpack.c.b16 %v3928, %v3927
        %v3938 = vsel %vm3629, %v3909, 0
        %v3941 = vsel %vm3629, %v3910, 0
        %v3944 = vsel %vm3629, %v3911, 0
        %v3947 = vsel %vm3629, %v3912, 0
        %3949 = vmatpush.bf16.msra.mxu0 0
        %3950 = vmatpush.bf16.msra.mxu0 0
        %3951 = vmatpush.bf16.msra.mxu0 0
        %3952 = vmatpush.bf16.msra.mxu0 0
        %3953 = vmatpush.bf16.msra.mxu0 %v3932
        %3954 = vmatpush.bf16.msra.mxu0 %v3931
        %3955 = vmatpush.bf16.msra.mxu0 %v3930
        %3956 = vmatpush.bf16.msra.mxu0 %v3929
        %3957 = vmatmul.bf16.gmra.mxu0 %v3938
        %v3958 = vpop.f32.mrf.mxu0
        %v3959 = vadd.f32 0.0, %v3958
        %v3960 = vpop.f32.mrf.mxu0
        %v3961 = vadd.f32 0.0, %v3960
        %3962 = vmatmul.bf16.gmra.mxu0 %v3941
        %v3963 = vpop.f32.mrf.mxu0
        %v3964 = vadd.f32 0.0, %v3963
        %v3965 = vpop.f32.mrf.mxu0
        %v3966 = vadd.f32 0.0, %v3965
        %3967 = vmatmul.bf16.gmra.mxu0 %v3944
        %v3968 = vpop.f32.mrf.mxu0
        %v3969 = vadd.f32 0.0, %v3968
        %v3970 = vpop.f32.mrf.mxu0
        %v3971 = vadd.f32 0.0, %v3970
        %3972 = vmatmul.bf16.gmra.mxu0 %v3947
        %v3973 = vpop.f32.mrf.mxu0
        %v3974 = vadd.f32 0.0, %v3973
        %v3975 = vpop.f32.mrf.mxu0
        %v3976 = vadd.f32 0.0, %v3975
        %3977 = vdwg.mxu0
        %v3978 = vadd.f32 %v3890, %v3959
        %v3979 = vadd.f32 %v3891, %v3961
        %v3980 = vadd.f32 %v3892, %v3964
        %v3981 = vadd.f32 %v3893, %v3966
        %v3982 = vadd.f32 %v3894, %v3969
        %v3983 = vadd.f32 %v3895, %v3971
        %v3984 = vadd.f32 %v3896, %v3974
        %v3985 = vadd.f32 %v3897, %v3976
        %v3987 = vshrl.u32 %v3442, 16
        %v3989 = vrot.slane %v3987, 4
        %v3990 = vshll.u32 %v3442, 16
        %v3992 = vrot.slane %v3990, 5
        %v3993 = vor.u32 %v3989, %v3992
        %v3994 = vrot.slane %v3993, 4
        %v3996 = vshll.u32 %v3452, 16
        %v3998 = vrot.slane %v3996, 5
        %v3999 = vsel %vm504, %v3994, %v3998
        %s4000 = scalar_lea.vmem %s4, 128
        %v4001 = vld [vmem:[%s4000] sm:$0xf]
        %v4002 = vld [vmem:[%s4000 + $0x4] sm:$0xf]
        %v4003 = vld [vmem:[%s4000 + $0x8] sm:$0xf]
        %v4004 = vld [vmem:[%s4000 + $0xc] sm:$0xf]
        %v4005 = vld [vmem:[%s4000 + $0x10] sm:$0xf]
        %v4006 = vld [vmem:[%s4000 + $0x14] sm:$0xf]
        %v4007 = vld [vmem:[%s4000 + $0x18] sm:$0xf]
        %v4008 = vld [vmem:[%s4000 + $0x1c] sm:$0xf]
        %v4009 = vunpack.c.l.b16 %v3999
        %v4010 = vpack.c.b16 %v3595, %v3594
        %v4011 = vpack.c.b16 %v3597, %v3596
        %v4012 = vpack.c.b16 %v3599, %v3598
        %v4013 = vpack.c.b16 %v4009, %v3600
        %v4022 = vunpack.c.l.b16 %v4001
        %v4023 = vunpack.c.l.b16 %v4002
        %v4024 = vunpack.c.l.b16 %v4003
        %v4025 = vunpack.c.l.b16 %v4004
        %v4026 = vunpack.c.l.b16 %v4005
        %v4027 = vunpack.c.l.b16 %v4006
        %v4028 = vunpack.c.l.b16 %v4007
        %v4029 = vunpack.c.l.b16 %v4008
        %v4030 = vpack.c.b16 %v4023, %v4022
        %v4031 = vpack.c.b16 %v4025, %v4024
        %v4032 = vpack.c.b16 %v4027, %v4026
        %v4033 = vpack.c.b16 %v4029, %v4028
        %v4039 = vsel %vm3629, %v4010, 0
        %v4042 = vsel %vm3629, %v4011, 0
        %v4045 = vsel %vm3629, %v4012, 0
        %v4048 = vsel %vm3629, %v4013, 0
        %4050 = vmatpush.bf16.msra.mxu0 0
        %4051 = vmatpush.bf16.msra.mxu0 0
        %4052 = vmatpush.bf16.msra.mxu0 0
        %4053 = vmatpush.bf16.msra.mxu0 0
        %4054 = vmatpush.bf16.msra.mxu0 %v4033
        %4055 = vmatpush.bf16.msra.mxu0 %v4032
        %4056 = vmatpush.bf16.msra.mxu0 %v4031
        %4057 = vmatpush.bf16.msra.mxu0 %v4030
        %4058 = vmatmul.bf16.gmra.mxu0 %v4039
        %v4059 = vpop.f32.mrf.mxu0
        %v4060 = vadd.f32 0.0, %v4059
        %v4061 = vpop.f32.mrf.mxu0
        %v4062 = vadd.f32 0.0, %v4061
        %4063 = vmatmul.bf16.gmra.mxu0 %v4042
        %v4064 = vpop.f32.mrf.mxu0
        %v4065 = vadd.f32 0.0, %v4064
        %v4066 = vpop.f32.mrf.mxu0
        %v4067 = vadd.f32 0.0, %v4066
        %4068 = vmatmul.bf16.gmra.mxu0 %v4045
        %v4069 = vpop.f32.mrf.mxu0
        %v4070 = vadd.f32 0.0, %v4069
        %v4071 = vpop.f32.mrf.mxu0
        %v4072 = vadd.f32 0.0, %v4071
        %4073 = vmatmul.bf16.gmra.mxu0 %v4048
        %v4074 = vpop.f32.mrf.mxu0
        %v4075 = vadd.f32 0.0, %v4074
        %v4076 = vpop.f32.mrf.mxu0
        %v4077 = vadd.f32 0.0, %v4076
        %4078 = vdwg.mxu0
        %v4079 = vadd.f32 %v3978, %v4060
        %v4080 = vadd.f32 %v3979, %v4062
        %v4081 = vadd.f32 %v3980, %v4065
        %v4082 = vadd.f32 %v3981, %v4067
        %v4083 = vadd.f32 %v3982, %v4070
        %v4084 = vadd.f32 %v3983, %v4072
        %v4085 = vadd.f32 %v3984, %v4075
        %v4086 = vadd.f32 %v3985, %v4077
        %v4089 = vrot.slane %v3462, 5
        %v4090 = vrot.slane %v4089, 4
        %v4091 = vrot.slane %v3452, 5
        %v4092 = vsel %vm1338, %v4090, %v4091
        %s4093 = scalar_lea.vmem %s4, 160
        %v4094 = vld [vmem:[%s4093] sm:$0xf]
        %v4095 = vld [vmem:[%s4093 + $0x4] sm:$0xf]
        %v4096 = vld [vmem:[%s4093 + $0x8] sm:$0xf]
        %v4097 = vld [vmem:[%s4093 + $0xc] sm:$0xf]
        %v4098 = vld [vmem:[%s4093 + $0x10] sm:$0xf]
        %v4099 = vld [vmem:[%s4093 + $0x14] sm:$0xf]
        %v4100 = vld [vmem:[%s4093 + $0x18] sm:$0xf]
        %v4101 = vld [vmem:[%s4093 + $0x1c] sm:$0xf]
        %v4102 = vunpack.c.l.b16 %v4092
        %v4103 = vpack.c.b16 %v3815, %v3814
        %v4104 = vpack.c.b16 %v3817, %v3816
        %v4105 = vpack.c.b16 %v3819, %v3818
        %v4106 = vpack.c.b16 %v4102, %v3820
        %v4115 = vunpack.c.l.b16 %v4094
        %v4116 = vunpack.c.l.b16 %v4095
        %v4117 = vunpack.c.l.b16 %v4096
        %v4118 = vunpack.c.l.b16 %v4097
        %v4119 = vunpack.c.l.b16 %v4098
        %v4120 = vunpack.c.l.b16 %v4099
        %v4121 = vunpack.c.l.b16 %v4100
        %v4122 = vunpack.c.l.b16 %v4101
        %v4123 = vpack.c.b16 %v4116, %v4115
        %v4124 = vpack.c.b16 %v4118, %v4117
        %v4125 = vpack.c.b16 %v4120, %v4119
        %v4126 = vpack.c.b16 %v4122, %v4121
        %v4132 = vsel %vm3629, %v4103, 0
        %v4135 = vsel %vm3629, %v4104, 0
        %v4138 = vsel %vm3629, %v4105, 0
        %v4141 = vsel %vm3629, %v4106, 0
        %4143 = vmatpush.bf16.msra.mxu0 0
        %4144 = vmatpush.bf16.msra.mxu0 0
        %4145 = vmatpush.bf16.msra.mxu0 0
        %4146 = vmatpush.bf16.msra.mxu0 0
        %4147 = vmatpush.bf16.msra.mxu0 %v4126
        %4148 = vmatpush.bf16.msra.mxu0 %v4125
        %4149 = vmatpush.bf16.msra.mxu0 %v4124
        %4150 = vmatpush.bf16.msra.mxu0 %v4123
        %4151 = vmatmul.bf16.gmra.mxu0 %v4132
        %v4152 = vpop.f32.mrf.mxu0
        %v4153 = vadd.f32 0.0, %v4152
        %v4154 = vpop.f32.mrf.mxu0
        %v4155 = vadd.f32 0.0, %v4154
        %4156 = vmatmul.bf16.gmra.mxu0 %v4135
        %v4157 = vpop.f32.mrf.mxu0
        %v4158 = vadd.f32 0.0, %v4157
        %v4159 = vpop.f32.mrf.mxu0
        %v4160 = vadd.f32 0.0, %v4159
        %4161 = vmatmul.bf16.gmra.mxu0 %v4138
        %v4162 = vpop.f32.mrf.mxu0
        %v4163 = vadd.f32 0.0, %v4162
        %v4164 = vpop.f32.mrf.mxu0
        %v4165 = vadd.f32 0.0, %v4164
        %4166 = vmatmul.bf16.gmra.mxu0 %v4141
        %v4167 = vpop.f32.mrf.mxu0
        %v4168 = vadd.f32 0.0, %v4167
        %v4169 = vpop.f32.mrf.mxu0
        %v4170 = vadd.f32 0.0, %v4169
        %4171 = vdwg.mxu0
        %v4172 = vadd.f32 %v4079, %v4153
        %v4173 = vadd.f32 %v4080, %v4155
        %v4174 = vadd.f32 %v4081, %v4158
        %v4175 = vadd.f32 %v4082, %v4160
        %v4176 = vadd.f32 %v4083, %v4163
        %v4177 = vadd.f32 %v4084, %v4165
        %v4178 = vadd.f32 %v4085, %v4168
        %v4179 = vadd.f32 %v4086, %v4170
        %s4180 = scalar_lea.vmem %s4, 192
        %v4181 = vld [vmem:[%s4180] sm:$0xf]
        %v4182 = vld [vmem:[%s4180 + $0x4] sm:$0xf]
        %v4183 = vld [vmem:[%s4180 + $0x8] sm:$0xf]
        %v4184 = vld [vmem:[%s4180 + $0xc] sm:$0xf]
        %v4185 = vld [vmem:[%s4180 + $0x10] sm:$0xf]
        %v4186 = vld [vmem:[%s4180 + $0x14] sm:$0xf]
        %v4187 = vld [vmem:[%s4180 + $0x18] sm:$0xf]
        %v4188 = vld [vmem:[%s4180 + $0x1c] sm:$0xf]
        %v4190 = vunpack.c.l.b16 %v3443
        %v4191 = vpack.c.b16 %v4190, %v3908
        %v4200 = vunpack.c.l.b16 %v4181
        %v4201 = vunpack.c.l.b16 %v4182
        %v4202 = vunpack.c.l.b16 %v4183
        %v4203 = vunpack.c.l.b16 %v4184
        %v4204 = vunpack.c.l.b16 %v4185
        %v4205 = vunpack.c.l.b16 %v4186
        %v4206 = vunpack.c.l.b16 %v4187
        %v4207 = vunpack.c.l.b16 %v4188
        %v4208 = vpack.c.b16 %v4201, %v4200
        %v4209 = vpack.c.b16 %v4203, %v4202
        %v4210 = vpack.c.b16 %v4205, %v4204
        %v4211 = vpack.c.b16 %v4207, %v4206
        %v4217 = vsel %vm3629, %v4191, 0
        %4219 = vmatpush.bf16.msra.mxu0 0
        %4220 = vmatpush.bf16.msra.mxu0 0
        %4221 = vmatpush.bf16.msra.mxu0 0
        %4222 = vmatpush.bf16.msra.mxu0 0
        %4223 = vmatpush.bf16.msra.mxu0 %v4211
        %4224 = vmatpush.bf16.msra.mxu0 %v4210
        %4225 = vmatpush.bf16.msra.mxu0 %v4209
        %4226 = vmatpush.bf16.msra.mxu0 %v4208
        %4227 = vmatmul.bf16.gmra.mxu0 %v3719
        %v4228 = vpop.f32.mrf.mxu0
        %v4229 = vadd.f32 0.0, %v4228
        %v4230 = vpop.f32.mrf.mxu0
        %v4231 = vadd.f32 0.0, %v4230
        %4232 = vmatmul.bf16.gmra.mxu0 %v3722
        %v4233 = vpop.f32.mrf.mxu0
        %v4234 = vadd.f32 0.0, %v4233
        %v4235 = vpop.f32.mrf.mxu0
        %v4236 = vadd.f32 0.0, %v4235
        %4237 = vmatmul.bf16.gmra.mxu0 %v3725
        %v4238 = vpop.f32.mrf.mxu0
        %v4239 = vadd.f32 0.0, %v4238
        %v4240 = vpop.f32.mrf.mxu0
        %v4241 = vadd.f32 0.0, %v4240
        %4242 = vmatmul.bf16.gmra.mxu0 %v4217
        %v4243 = vpop.f32.mrf.mxu0
        %v4244 = vadd.f32 0.0, %v4243
        %v4245 = vpop.f32.mrf.mxu0
        %v4246 = vadd.f32 0.0, %v4245
        %4247 = vdwg.mxu0
        %v4248 = vadd.f32 %v4172, %v4229
        %v4249 = vadd.f32 %v4173, %v4231
        %v4250 = vadd.f32 %v4174, %v4234
        %v4251 = vadd.f32 %v4175, %v4236
        %v4252 = vadd.f32 %v4176, %v4239
        %v4253 = vadd.f32 %v4177, %v4241
        %v4254 = vadd.f32 %v4178, %v4244
        %v4255 = vadd.f32 %v4179, %v4246
        %v4257 = vshrl.u32 %v3443, 16
        %v4259 = vrot.slane %v4257, 4
        %v4260 = vshll.u32 %v3443, 16
        %v4262 = vrot.slane %v4260, 5
        %v4263 = vor.u32 %v4259, %v4262
        %v4264 = vrot.slane %v4263, 4
        %v4266 = vshll.u32 %v3453, 16
        %v4268 = vrot.slane %v4266, 5
        %v4269 = vsel %vm504, %v4264, %v4268
        %s4270 = scalar_lea.vmem %s4, 224
        %v4271 = vld [vmem:[%s4270] sm:$0xf]
        %v4272 = vld [vmem:[%s4270 + $0x4] sm:$0xf]
        %v4273 = vld [vmem:[%s4270 + $0x8] sm:$0xf]
        %v4274 = vld [vmem:[%s4270 + $0xc] sm:$0xf]
        %v4275 = vld [vmem:[%s4270 + $0x10] sm:$0xf]
        %v4276 = vld [vmem:[%s4270 + $0x14] sm:$0xf]
        %v4277 = vld [vmem:[%s4270 + $0x18] sm:$0xf]
        %v4278 = vld [vmem:[%s4270 + $0x1c] sm:$0xf]
        %v4279 = vunpack.c.l.b16 %v4269
        %v4280 = vpack.c.b16 %v4279, %v4009
        %v4289 = vunpack.c.l.b16 %v4271
        %v4290 = vunpack.c.l.b16 %v4272
        %v4291 = vunpack.c.l.b16 %v4273
        %v4292 = vunpack.c.l.b16 %v4274
        %v4293 = vunpack.c.l.b16 %v4275
        %v4294 = vunpack.c.l.b16 %v4276
        %v4295 = vunpack.c.l.b16 %v4277
        %v4296 = vunpack.c.l.b16 %v4278
        %v4297 = vpack.c.b16 %v4290, %v4289
        %v4298 = vpack.c.b16 %v4292, %v4291
        %v4299 = vpack.c.b16 %v4294, %v4293
        %v4300 = vpack.c.b16 %v4296, %v4295
        %v4306 = vsel %vm3629, %v4280, 0
        %4308 = vmatpush.bf16.msra.mxu0 0
        %4309 = vmatpush.bf16.msra.mxu0 0
        %4310 = vmatpush.bf16.msra.mxu0 0
        %4311 = vmatpush.bf16.msra.mxu0 0
        %4312 = vmatpush.bf16.msra.mxu0 %v4300
        %4313 = vmatpush.bf16.msra.mxu0 %v4299
        %4314 = vmatpush.bf16.msra.mxu0 %v4298
        %4315 = vmatpush.bf16.msra.mxu0 %v4297
        %4316 = vmatmul.bf16.gmra.mxu0 %v3634
        %v4317 = vpop.f32.mrf.mxu0
        %v4318 = vadd.f32 0.0, %v4317
        %v4319 = vpop.f32.mrf.mxu0
        %v4320 = vadd.f32 0.0, %v4319
        %4321 = vmatmul.bf16.gmra.mxu0 %v3637
        %v4322 = vpop.f32.mrf.mxu0
        %v4323 = vadd.f32 0.0, %v4322
        %v4324 = vpop.f32.mrf.mxu0
        %v4325 = vadd.f32 0.0, %v4324
        %4326 = vmatmul.bf16.gmra.mxu0 %v3640
        %v4327 = vpop.f32.mrf.mxu0
        %v4328 = vadd.f32 0.0, %v4327
        %v4329 = vpop.f32.mrf.mxu0
        %v4330 = vadd.f32 0.0, %v4329
        %4331 = vmatmul.bf16.gmra.mxu0 %v4306
        %v4332 = vpop.f32.mrf.mxu0
        %v4333 = vadd.f32 0.0, %v4332
        %v4334 = vpop.f32.mrf.mxu0
        %v4335 = vadd.f32 0.0, %v4334
        %4336 = vdwg.mxu0
        %v4337 = vadd.f32 %v4248, %v4318
        %v4338 = vadd.f32 %v4249, %v4320
        %v4339 = vadd.f32 %v4250, %v4323
        %v4340 = vadd.f32 %v4251, %v4325
        %v4341 = vadd.f32 %v4252, %v4328
        %v4342 = vadd.f32 %v4253, %v4330
        %v4343 = vadd.f32 %v4254, %v4333
        %v4344 = vadd.f32 %v4255, %v4335
        %v4347 = vrot.slane %v3463, 5
        %v4348 = vrot.slane %v4347, 4
        %v4349 = vrot.slane %v3453, 5
        %v4350 = vsel %vm1338, %v4348, %v4349
        %s4351 = scalar_lea.vmem %s4, 256
        %v4352 = vld [vmem:[%s4351] sm:$0xf]
        %v4353 = vld [vmem:[%s4351 + $0x4] sm:$0xf]
        %v4354 = vld [vmem:[%s4351 + $0x8] sm:$0xf]
        %v4355 = vld [vmem:[%s4351 + $0xc] sm:$0xf]
        %v4356 = vld [vmem:[%s4351 + $0x10] sm:$0xf]
        %v4357 = vld [vmem:[%s4351 + $0x14] sm:$0xf]
        %v4358 = vld [vmem:[%s4351 + $0x18] sm:$0xf]
        %v4359 = vld [vmem:[%s4351 + $0x1c] sm:$0xf]
        %v4360 = vunpack.c.l.b16 %v4350
        %v4361 = vpack.c.b16 %v4360, %v4102
        %v4370 = vunpack.c.l.b16 %v4352
        %v4371 = vunpack.c.l.b16 %v4353
        %v4372 = vunpack.c.l.b16 %v4354
        %v4373 = vunpack.c.l.b16 %v4355
        %v4374 = vunpack.c.l.b16 %v4356
        %v4375 = vunpack.c.l.b16 %v4357
        %v4376 = vunpack.c.l.b16 %v4358
        %v4377 = vunpack.c.l.b16 %v4359
        %v4378 = vpack.c.b16 %v4371, %v4370
        %v4379 = vpack.c.b16 %v4373, %v4372
        %v4380 = vpack.c.b16 %v4375, %v4374
        %v4381 = vpack.c.b16 %v4377, %v4376
        %v4387 = vsel %vm3629, %v4361, 0
        %4389 = vmatpush.bf16.msra.mxu0 0
        %4390 = vmatpush.bf16.msra.mxu0 0
        %4391 = vmatpush.bf16.msra.mxu0 0
        %4392 = vmatpush.bf16.msra.mxu0 0
        %4393 = vmatpush.bf16.msra.mxu0 %v4381
        %4394 = vmatpush.bf16.msra.mxu0 %v4380
        %4395 = vmatpush.bf16.msra.mxu0 %v4379
        %4396 = vmatpush.bf16.msra.mxu0 %v4378
        %4397 = vmatmul.bf16.gmra.mxu0 %v3853
        %v4398 = vpop.f32.mrf.mxu0
        %v4399 = vadd.f32 0.0, %v4398
        %v4400 = vpop.f32.mrf.mxu0
        %v4401 = vadd.f32 0.0, %v4400
        %4402 = vmatmul.bf16.gmra.mxu0 %v3856
        %v4403 = vpop.f32.mrf.mxu0
        %v4404 = vadd.f32 0.0, %v4403
        %v4405 = vpop.f32.mrf.mxu0
        %v4406 = vadd.f32 0.0, %v4405
        %4407 = vmatmul.bf16.gmra.mxu0 %v3859
        %v4408 = vpop.f32.mrf.mxu0
        %v4409 = vadd.f32 0.0, %v4408
        %v4410 = vpop.f32.mrf.mxu0
        %v4411 = vadd.f32 0.0, %v4410
        %4412 = vmatmul.bf16.gmra.mxu0 %v4387
        %v4413 = vpop.f32.mrf.mxu0
        %v4414 = vadd.f32 0.0, %v4413
        %v4415 = vpop.f32.mrf.mxu0
        %v4416 = vadd.f32 0.0, %v4415
        %4417 = vdwg.mxu0
        %v4418 = vadd.f32 %v4337, %v4399
        %v4419 = vadd.f32 %v4338, %v4401
        %v4420 = vadd.f32 %v4339, %v4404
        %v4421 = vadd.f32 %v4340, %v4406
        %v4422 = vadd.f32 %v4341, %v4409
        %v4423 = vadd.f32 %v4342, %v4411
        %v4424 = vadd.f32 %v4343, %v4414
        %v4425 = vadd.f32 %v4344, %v4416
        %v4426 = vld [vmem:[%s5] sm:$0x1]
        %v4428 = vperm.slane %v4426, 0
        %v4430 = vmul.f32 %v4418, %v4428
        %v4431 = vmul.f32 %v4419, %v4428
        %v4432 = vmul.f32 %v4420, %v4428
        %v4433 = vmul.f32 %v4421, %v4428
        %v4434 = vmul.f32 %v4422, %v4428
        %v4435 = vmul.f32 %v4423, %v4428
        %v4436 = vmul.f32 %v4424, %v4428
        %v4437 = vmul.f32 %v4425, %v4428
        %v4438 = vld [vmem:[%s6] sm:$0x1]
        %v4440 = vperm.slane %v4438, 0
        %v4442 = vadd.f32 %v4430, %v4440
        %v4443 = vadd.f32 %v4431, %v4440
        %v4444 = vadd.f32 %v4432, %v4440
        %v4445 = vadd.f32 %v4433, %v4440
        %v4446 = vadd.f32 %v4434, %v4440
        %v4447 = vadd.f32 %v4435, %v4440
        %v4448 = vadd.f32 %v4436, %v4440
        %v4449 = vadd.f32 %v4437, %v4440
        %v4450 = vmax.f32 %v4442, 0.0
        %v4451 = vmax.f32 %v4443, 0.0
        %v4452 = vmax.f32 %v4444, 0.0
        %v4453 = vmax.f32 %v4445, 0.0
        %v4454 = vmax.f32 %v4446, 0.0
        %v4455 = vmax.f32 %v4447, 0.0
        %v4456 = vmax.f32 %v4448, 0.0
        %v4457 = vmax.f32 %v4449, 0.0
        %v4458 = vmax.f32 %v4450, %v4451
        %v4459 = vmax.f32 %v4452, %v4453
        %v4460 = vmax.f32 %v4454, %v4455
        %v4461 = vmax.f32 %v4456, %v4457
        %v4466 = vrot.slane %v4458, 2
        %v4467 = vrot.slane %v4458, 4
        %v4468 = vrot.slane %v4458, 6
        %v4469 = vrot.slane %v4459, 2
        %v4470 = vrot.slane %v4459, 4
        %v4471 = vrot.slane %v4459, 6
        %v4472 = vrot.slane %v4460, 2
        %v4473 = vrot.slane %v4460, 4
        %v4474 = vrot.slane %v4460, 6
        %v4475 = vrot.slane %v4461, 2
        %v4476 = vrot.slane %v4461, 4
        %v4477 = vrot.slane %v4461, 6
        %v4490 = vrot.slane %v4458, 7
        %v4491 = vrot.slane %v4490, 2
        %v4492 = vrot.slane %v4466, 7
        %v4493 = vrot.slane %v4492, 2
        %v4494 = vrot.slane %v4467, 7
        %v4495 = vrot.slane %v4494, 2
        %v4496 = vrot.slane %v4468, 7
        %v4497 = vrot.slane %v4496, 2
        %v4498 = vrot.slane %v4459, 7
        %v4499 = vrot.slane %v4498, 2
        %v4500 = vrot.slane %v4469, 7
        %v4501 = vrot.slane %v4500, 2
        %v4502 = vrot.slane %v4470, 7
        %v4503 = vrot.slane %v4502, 2
        %v4504 = vrot.slane %v4471, 7
        %v4505 = vrot.slane %v4504, 2
        %v4506 = vrot.slane %v4460, 7
        %v4507 = vrot.slane %v4506, 2
        %v4508 = vrot.slane %v4472, 7
        %v4509 = vrot.slane %v4508, 2
        %v4510 = vrot.slane %v4473, 7
        %v4511 = vrot.slane %v4510, 2
        %v4512 = vrot.slane %v4474, 7
        %v4513 = vrot.slane %v4512, 2
        %v4514 = vrot.slane %v4461, 7
        %v4515 = vrot.slane %v4514, 2
        %v4516 = vrot.slane %v4475, 7
        %v4517 = vrot.slane %v4516, 2
        %v4518 = vrot.slane %v4476, 7
        %v4519 = vrot.slane %v4518, 2
        %v4520 = vrot.slane %v4477, 7
        %v4521 = vrot.slane %v4520, 2
        %v4538 = vmax.f32 %v4458, %v4491
        %v4539 = vmax.f32 %v4466, %v4493
        %v4540 = vmax.f32 %v4467, %v4495
        %v4541 = vmax.f32 %v4468, %v4497
        %v4542 = vmax.f32 %v4459, %v4499
        %v4543 = vmax.f32 %v4469, %v4501
        %v4544 = vmax.f32 %v4470, %v4503
        %v4545 = vmax.f32 %v4471, %v4505
        %v4546 = vmax.f32 %v4460, %v4507
        %v4547 = vmax.f32 %v4472, %v4509
        %v4548 = vmax.f32 %v4473, %v4511
        %v4549 = vmax.f32 %v4474, %v4513
        %v4550 = vmax.f32 %v4461, %v4515
        %v4551 = vmax.f32 %v4475, %v4517
        %v4552 = vmax.f32 %v4476, %v4519
        %v4553 = vmax.f32 %v4477, %v4521
        %4554 = vst [vmem:[#allocation3] sm:$0x7] 0
        %4555 = vst [vmem:[#allocation3 + $0x4] sm:$0x7] 0
        %4556 = vst [vmem:[#allocation3 + $0x8] sm:$0x7] 0
        %4557 = vst [vmem:[#allocation3 + $0xc] sm:$0x7] 0
        %4558 = vst [vmem:[#allocation3 + $0x10] sm:$0x7] 0
        %4559 = vst [vmem:[#allocation3 + $0x14] sm:$0x7] 0
        %v4560 = vpack.c.bf16 %v4538, %v4538
        %v4561 = vpack.c.bf16 %v4539, %v4539
        %v4562 = vpack.c.bf16 %v4540, %v4540
        %v4563 = vpack.c.bf16 %v4541, %v4541
        %v4564 = vpack.c.bf16 %v4542, %v4542
        %v4565 = vpack.c.bf16 %v4543, %v4543
        %v4566 = vpack.c.bf16 %v4544, %v4544
        %v4567 = vpack.c.bf16 %v4545, %v4545
        %v4568 = vpack.c.bf16 %v4546, %v4546
        %v4569 = vpack.c.bf16 %v4547, %v4547
        %v4570 = vpack.c.bf16 %v4548, %v4548
        %v4571 = vpack.c.bf16 %v4549, %v4549
        %v4572 = vpack.c.bf16 %v4550, %v4550
        %v4573 = vpack.c.bf16 %v4551, %v4551
        %v4574 = vpack.c.bf16 %v4552, %v4552
        %v4575 = vpack.c.bf16 %v4553, %v4553
        %v4592 = vunpack.c.l.b16 %v4560
        %v4593 = vunpack.c.l.b16 %v4561
        %v4594 = vunpack.c.l.b16 %v4562
        %v4595 = vunpack.c.l.b16 %v4563
        %v4596 = vunpack.c.l.b16 %v4564
        %v4597 = vunpack.c.l.b16 %v4565
        %v4598 = vunpack.c.l.b16 %v4566
        %v4599 = vunpack.c.l.b16 %v4567
        %v4600 = vunpack.c.l.b16 %v4568
        %v4601 = vunpack.c.l.b16 %v4569
        %v4602 = vunpack.c.l.b16 %v4570
        %v4603 = vunpack.c.l.b16 %v4571
        %v4604 = vunpack.c.l.b16 %v4572
        %v4605 = vunpack.c.l.b16 %v4573
        %v4606 = vunpack.c.l.b16 %v4574
        %v4607 = vunpack.c.l.b16 %v4575
        %v4608 = vrot.slane %v4592, 7
        %v4609 = vrot.slane %v4593, 6
        %v4610 = vsel %vm3239, %v4609, %v4608
        %v4611 = vrot.slane %v4594, 5
        %v4612 = vsel %vm3242, %v4611, %v4610
        %v4613 = vrot.slane %v4595, 4
        %v4614 = vsel %vm3245, %v4613, %v4612
        %v4615 = vrot.slane %v4596, 7
        %v4616 = vrot.slane %v4597, 6
        %v4617 = vsel %vm3239, %v4616, %v4615
        %v4618 = vrot.slane %v4598, 5
        %v4619 = vsel %vm3242, %v4618, %v4617
        %v4620 = vrot.slane %v4599, 4
        %v4621 = vsel %vm3245, %v4620, %v4619
        %v4622 = vrot.slane %v4600, 7
        %v4623 = vrot.slane %v4601, 6
        %v4624 = vsel %vm3239, %v4623, %v4622
        %v4625 = vrot.slane %v4602, 5
        %v4626 = vsel %vm3242, %v4625, %v4624
        %v4627 = vrot.slane %v4603, 4
        %v4628 = vsel %vm3245, %v4627, %v4626
        %v4629 = vrot.slane %v4604, 7
        %v4630 = vrot.slane %v4605, 6
        %v4631 = vsel %vm3239, %v4630, %v4629
        %v4632 = vrot.slane %v4606, 5
        %v4633 = vsel %vm3242, %v4632, %v4631
        %v4634 = vrot.slane %v4607, 4
        %v4635 = vsel %vm3245, %v4634, %v4633
        %v4636 = vpack.c.b16 %v4614, %v4614
        %v4637 = vpack.c.b16 %v4621, %v4621
        %v4638 = vpack.c.b16 %v4628, %v4628
        %v4639 = vpack.c.b16 %v4635, %v4635
        %s4644 = scalar_lea.vmem [#allocation3], 4
        %vm4645 = vsmask.f32 2306
        %vm4646 = vmand %vm1336, %vm4645
        %v4647 = vld [vmem:[%s4644] sm:$0x7]
        %v4648 = vsel %vm4646, %v4636, %v4647
        %4649 = vst [vmem:[%s4644] sm:$0x7] %v4648
        %v4650 = vld [vmem:[%s4644 + $0x4] sm:$0x7]
        %v4651 = vsel %vm4646, %v4637, %v4650
        %4652 = vst [vmem:[%s4644 + $0x4] sm:$0x7] %v4651
        %v4653 = vld [vmem:[%s4644 + $0x8] sm:$0x7]
        %v4654 = vsel %vm4646, %v4638, %v4653
        %4655 = vst [vmem:[%s4644 + $0x8] sm:$0x7] %v4654
        %v4656 = vld [vmem:[%s4644 + $0xc] sm:$0x7]
        %v4657 = vsel %vm4646, %v4639, %v4656
        %4658 = vst [vmem:[%s4644 + $0xc] sm:$0x7] %v4657
        %v4659 = vld [vmem:[#allocation3] sm:$0x3]
        %v4660 = vld [vmem:[#allocation3 + $0x4] sm:$0x3]
        %v4661 = vld [vmem:[#allocation3 + $0x8] sm:$0x3]
        %v4662 = vld [vmem:[#allocation3 + $0xc] sm:$0x3]
        %v4663 = vld [vmem:[#allocation3 + $0x10] sm:$0x3]
        %v4664 = vld [vmem:[#allocation3 + $0x14] sm:$0x3]
        %v4665 = vld [vmem:[#allocation3] sm:$0x7]
        %v4666 = vld [vmem:[#allocation3 + $0x4] sm:$0x7]
        %v4667 = vld [vmem:[#allocation3 + $0x8] sm:$0x7]
        %v4668 = vld [vmem:[#allocation3 + $0xc] sm:$0x7]
        %v4669 = vld [vmem:[#allocation3 + $0x10] sm:$0x7]
        %v4670 = vld [vmem:[#allocation3 + $0x14] sm:$0x7]
        %v4671 = vld [vmem:[#allocation3] sm:$0x6]
        %v4672 = vld [vmem:[#allocation3 + $0x4] sm:$0x6]
        %v4673 = vld [vmem:[#allocation3 + $0x8] sm:$0x6]
        %v4674 = vld [vmem:[#allocation3 + $0xc] sm:$0x6]
        %v4675 = vld [vmem:[#allocation3 + $0x10] sm:$0x6]
        %v4676 = vld [vmem:[#allocation3 + $0x14] sm:$0x6]
        %v4681 = vrot.slane %v4665, 2
        %v4682 = vrot.slane %v4666, 2
        %v4683 = vrot.slane %v4667, 2
        %v4684 = vrot.slane %v4668, 2
        %v4687 = vsel %vm989, %v4665, %v4681
        %vm4688 = vcmask 1043458
        %v4689 = vsel %vm4688, %v4665, %v4681
        %v4691 = vrot.slane %v4689, 2
        %v4694 = vsel %vm989, %v4666, %v4682
        %v4695 = vsel %vm4688, %v4666, %v4682
        %v4697 = vrot.slane %v4695, 2
        %v4700 = vsel %vm989, %v4667, %v4683
        %v4701 = vsel %vm4688, %v4667, %v4683
        %v4703 = vrot.slane %v4701, 2
        %v4706 = vsel %vm989, %v4668, %v4684
        %v4707 = vsel %vm4688, %v4668, %v4684
        %v4709 = vrot.slane %v4707, 2
        %vm4710 = vsmask.f32 1280
        %vm4711 = vsmask.f32 3336
        %vm4712 = vmor %vm4710, %vm4711
        %vm4713 = vsmask.f32 5392
        %vm4714 = vmor %vm4712, %vm4713
        %vm4715 = vsmask.f32 7448
        %vm4716 = vmor %vm4714, %vm4715
        %v4717 = vshrl.u32 %v4687, 16
        %v4719 = vrot.slane %v4717, 6
        %v4720 = vshll.u32 %v4687, 16
        %v4722 = vrot.slane %v4720, 7
        %v4723 = vor.u32 %v4719, %v4722
        %v4724 = vrot.slane %v4723, 2
        %v4726 = vshll.u32 %v4691, 16
        %v4728 = vrot.slane %v4726, 7
        %v4729 = vsel %vm4716, %v4724, %v4728
        %v4730 = vshrl.u32 %v4694, 16
        %v4732 = vrot.slane %v4730, 6
        %v4733 = vshll.u32 %v4694, 16
        %v4735 = vrot.slane %v4733, 7
        %v4736 = vor.u32 %v4732, %v4735
        %v4737 = vrot.slane %v4736, 2
        %v4739 = vshll.u32 %v4697, 16
        %v4741 = vrot.slane %v4739, 7
        %v4742 = vsel %vm4716, %v4737, %v4741
        %v4743 = vshrl.u32 %v4700, 16
        %v4745 = vrot.slane %v4743, 6
        %v4746 = vshll.u32 %v4700, 16
        %v4748 = vrot.slane %v4746, 7
        %v4749 = vor.u32 %v4745, %v4748
        %v4750 = vrot.slane %v4749, 2
        %v4752 = vshll.u32 %v4703, 16
        %v4754 = vrot.slane %v4752, 7
        %v4755 = vsel %vm4716, %v4750, %v4754
        %v4756 = vshrl.u32 %v4706, 16
        %v4758 = vrot.slane %v4756, 6
        %v4759 = vshll.u32 %v4706, 16
        %v4761 = vrot.slane %v4759, 7
        %v4762 = vor.u32 %v4758, %v4761
        %v4763 = vrot.slane %v4762, 2
        %v4765 = vshll.u32 %v4709, 16
        %v4767 = vrot.slane %v4765, 7
        %v4768 = vsel %vm4716, %v4763, %v4767
        %v4773 = vrot.slane %v4671, 2
        %v4774 = vrot.slane %v4672, 2
        %v4775 = vrot.slane %v4673, 2
        %v4776 = vrot.slane %v4674, 2
        %v4779 = vsel %vm989, %v4671, %v4773
        %v4781 = vsel %vm4688, %v4671, %v4773
        %v4783 = vrot.slane %v4781, 2
        %v4786 = vsel %vm989, %v4672, %v4774
        %v4788 = vsel %vm4688, %v4672, %v4774
        %v4790 = vrot.slane %v4788, 2
        %v4793 = vsel %vm989, %v4673, %v4775
        %v4795 = vsel %vm4688, %v4673, %v4775
        %v4797 = vrot.slane %v4795, 2
        %v4800 = vsel %vm989, %v4674, %v4776
        %v4802 = vsel %vm4688, %v4674, %v4776
        %v4804 = vrot.slane %v4802, 2
        %vm4805 = vcmask 1040384
        %vm4806 = vcmask 1042434
        %vm4807 = vmor %vm4805, %vm4806
        %vm4808 = vcmask 1044484
        %vm4809 = vmor %vm4807, %vm4808
        %vm4810 = vcmask 1046534
        %vm4811 = vmor %vm4809, %vm4810
        %v4812 = vrot.slane %v4779, 7
        %v4813 = vrot.slane %v4812, 2
        %v4814 = vrot.slane %v4783, 7
        %v4815 = vsel %vm4811, %v4813, %v4814
        %v4816 = vrot.slane %v4786, 7
        %v4817 = vrot.slane %v4816, 2
        %v4818 = vrot.slane %v4790, 7
        %v4819 = vsel %vm4811, %v4817, %v4818
        %v4820 = vrot.slane %v4793, 7
        %v4821 = vrot.slane %v4820, 2
        %v4822 = vrot.slane %v4797, 7
        %v4823 = vsel %vm4811, %v4821, %v4822
        %v4824 = vrot.slane %v4800, 7
        %v4825 = vrot.slane %v4824, 2
        %v4826 = vrot.slane %v4804, 7
        %v4827 = vsel %vm4811, %v4825, %v4826
        %v4829 = vrot.slane %v4669, 2
        %v4832 = vsel %vm989, %v4669, %v4829
        %v4833 = vsel %vm4688, %v4669, %v4829
        %v4835 = vrot.slane %v4833, 2
        %v4836 = vshrl.u32 %v4832, 16
        %v4838 = vrot.slane %v4836, 6
        %v4839 = vshll.u32 %v4832, 16
        %v4841 = vrot.slane %v4839, 7
        %v4842 = vor.u32 %v4838, %v4841
        %v4843 = vrot.slane %v4842, 2
        %v4845 = vshll.u32 %v4835, 16
        %v4847 = vrot.slane %v4845, 7
        %v4848 = vsel %vm4716, %v4843, %v4847
        %v4850 = vrot.slane %v4675, 2
        %v4853 = vsel %vm989, %v4675, %v4850
        %v4855 = vsel %vm4688, %v4675, %v4850
        %v4857 = vrot.slane %v4855, 2
        %v4858 = vrot.slane %v4853, 7
        %v4859 = vrot.slane %v4858, 2
        %v4860 = vrot.slane %v4857, 7
        %v4861 = vsel %vm4811, %v4859, %v4860
        %v4863 = vrot.slane %v4670, 2
        %v4866 = vsel %vm989, %v4670, %v4863
        %v4867 = vsel %vm4688, %v4670, %v4863
        %v4869 = vrot.slane %v4867, 2
        %v4870 = vshrl.u32 %v4866, 16
        %v4872 = vrot.slane %v4870, 6
        %v4873 = vshll.u32 %v4866, 16
        %v4875 = vrot.slane %v4873, 7
        %v4876 = vor.u32 %v4872, %v4875
        %v4877 = vrot.slane %v4876, 2
        %v4879 = vshll.u32 %v4869, 16
        %v4881 = vrot.slane %v4879, 7
        %v4882 = vsel %vm4716, %v4877, %v4881
        %v4884 = vrot.slane %v4676, 2
        %v4887 = vsel %vm989, %v4676, %v4884
        %v4889 = vsel %vm4688, %v4676, %v4884
        %v4891 = vrot.slane %v4889, 2
        %v4892 = vrot.slane %v4887, 7
        %v4893 = vrot.slane %v4892, 2
        %v4894 = vrot.slane %v4891, 7
        %v4895 = vsel %vm4811, %v4893, %v4894
        %4897 = vst [vmem:[#allocation1] ss:$4 sm:$0xff] %v4659
        %s4899 = scalar_lea.vmem [#allocation1], 1
        %4900 = vst [vmem:[%s4899] ss:$4 sm:$0xff] %v4660
        %s4902 = scalar_lea.vmem [#allocation1], 2
        %4903 = vst [vmem:[%s4902] ss:$4 sm:$0xff] %v4661
        %s4905 = scalar_lea.vmem [#allocation1], 3
        %4906 = vst [vmem:[%s4905] ss:$4 sm:$0xff] %v4662
        %v4907 = vld.sshfl [vmem:[#allocation1] sm:$0xff pattern:$0x73625140]
        %4910 = vst [vmem:[#allocation1] ss:$4 sm:$0xff] %v4729
        %s4912 = scalar_lea.vmem [#allocation1], 1
        %4913 = vst [vmem:[%s4912] ss:$4 sm:$0xff] %v4742
        %s4915 = scalar_lea.vmem [#allocation1], 2
        %4916 = vst [vmem:[%s4915] ss:$4 sm:$0xff] %v4755
        %s4918 = scalar_lea.vmem [#allocation1], 3
        %4919 = vst [vmem:[%s4918] ss:$4 sm:$0xff] %v4768
        %v4920 = vld.sshfl [vmem:[#allocation1] sm:$0xff pattern:$0x73625140]
        %4923 = vst [vmem:[#allocation1] ss:$4 sm:$0xff] %v4815
        %s4925 = scalar_lea.vmem [#allocation1], 1
        %4926 = vst [vmem:[%s4925] ss:$4 sm:$0xff] %v4819
        %s4928 = scalar_lea.vmem [#allocation1], 2
        %4929 = vst [vmem:[%s4928] ss:$4 sm:$0xff] %v4823
        %s4931 = scalar_lea.vmem [#allocation1], 3
        %4932 = vst [vmem:[%s4931] ss:$4 sm:$0xff] %v4827
        %v4933 = vld.sshfl [vmem:[#allocation1] sm:$0xff pattern:$0x73625140]
        %4935 = vst [vmem:[#allocation1] ss:$4 sm:$0xff] %v4660
        %s4936 = scalar_lea.vmem [#allocation1], 1
        %4937 = vst [vmem:[%s4936] ss:$4 sm:$0xff] %v4661
        %s4938 = scalar_lea.vmem [#allocation1], 2
        %4939 = vst [vmem:[%s4938] ss:$4 sm:$0xff] %v4662
        %s4941 = scalar_lea.vmem [#allocation1], 3
        %4942 = vst [vmem:[%s4941] ss:$4 sm:$0xff] %v4663
        %v4943 = vld.sshfl [vmem:[#allocation1] sm:$0xff pattern:$0x73625140]
        %4945 = vst [vmem:[#allocation1] ss:$4 sm:$0xff] %v4742
        %s4946 = scalar_lea.vmem [#allocation1], 1
        %4947 = vst [vmem:[%s4946] ss:$4 sm:$0xff] %v4755
        %s4948 = scalar_lea.vmem [#allocation1], 2
        %4949 = vst [vmem:[%s4948] ss:$4 sm:$0xff] %v4768
        %s4951 = scalar_lea.vmem [#allocation1], 3
        %4952 = vst [vmem:[%s4951] ss:$4 sm:$0xff] %v4848
        %v4953 = vld.sshfl [vmem:[#allocation1] sm:$0xff pattern:$0x73625140]
        %4955 = vst [vmem:[#allocation1] ss:$4 sm:$0xff] %v4819
        %s4956 = scalar_lea.vmem [#allocation1], 1
        %4957 = vst [vmem:[%s4956] ss:$4 sm:$0xff] %v4823
        %s4958 = scalar_lea.vmem [#allocation1], 2
        %4959 = vst [vmem:[%s4958] ss:$4 sm:$0xff] %v4827
        %s4961 = scalar_lea.vmem [#allocation1], 3
        %4962 = vst [vmem:[%s4961] ss:$4 sm:$0xff] %v4861
        %v4963 = vld.sshfl [vmem:[#allocation1] sm:$0xff pattern:$0x73625140]
        %4965 = vst [vmem:[#allocation1] ss:$4 sm:$0xff] %v4661
        %s4966 = scalar_lea.vmem [#allocation1], 1
        %4967 = vst [vmem:[%s4966] ss:$4 sm:$0xff] %v4662
        %s4968 = scalar_lea.vmem [#allocation1], 2
        %4969 = vst [vmem:[%s4968] ss:$4 sm:$0xff] %v4663
        %s4971 = scalar_lea.vmem [#allocation1], 3
        %4972 = vst [vmem:[%s4971] ss:$4 sm:$0xff] %v4664
        %v4973 = vld.sshfl [vmem:[#allocation1] sm:$0xff pattern:$0x73625140]
        %4975 = vst [vmem:[#allocation1] ss:$4 sm:$0xff] %v4755
        %s4976 = scalar_lea.vmem [#allocation1], 1
        %4977 = vst [vmem:[%s4976] ss:$4 sm:$0xff] %v4768
        %s4978 = scalar_lea.vmem [#allocation1], 2
        %4979 = vst [vmem:[%s4978] ss:$4 sm:$0xff] %v4848
        %s4981 = scalar_lea.vmem [#allocation1], 3
        %4982 = vst [vmem:[%s4981] ss:$4 sm:$0xff] %v4882
        %v4983 = vld.sshfl [vmem:[#allocation1] sm:$0xff pattern:$0x73625140]
        %4985 = vst [vmem:[#allocation1] ss:$4 sm:$0xff] %v4823
        %s4986 = scalar_lea.vmem [#allocation1], 1
        %4987 = vst [vmem:[%s4986] ss:$4 sm:$0xff] %v4827
        %s4988 = scalar_lea.vmem [#allocation1], 2
        %4989 = vst [vmem:[%s4988] ss:$4 sm:$0xff] %v4861
        %s4991 = scalar_lea.vmem [#allocation1], 3
        %4992 = vst [vmem:[%s4991] ss:$4 sm:$0xff] %v4895
        %v4993 = vld.sshfl [vmem:[#allocation1] sm:$0xff pattern:$0x73625140]
        %v4995 = vld [vmem:[#allocation4] sm:$0xff]
        %v4996 = vld [vmem:[#allocation4 + $0x8] sm:$0xff]
        %v4997 = vld [vmem:[#allocation4 + $0x10] sm:$0xff]
        %v4998 = vld [vmem:[#allocation4 + $0x18] sm:$0xff]
        %v4999 = vld [vmem:[#allocation4 + $0x20] sm:$0xff]
        %v5000 = vld [vmem:[#allocation4 + $0x28] sm:$0xff]
        %v5001 = vld [vmem:[#allocation4 + $0x30] sm:$0xff]
        %v5002 = vld [vmem:[#allocation4 + $0x38] sm:$0xff]
        %v5003 = vld [vmem:[#allocation4 + $0x40] sm:$0xff]
        %v5004 = vld [vmem:[#allocation4 + $0x48] sm:$0xff]
        %v5005 = vld [vmem:[#allocation4 + $0x50] sm:$0xff]
        %v5006 = vld [vmem:[#allocation4 + $0x58] sm:$0xff]
        %v5007 = vld [vmem:[#allocation4 + $0x60] sm:$0xff]
        %v5008 = vld [vmem:[#allocation4 + $0x68] sm:$0xff]
        %v5009 = vld [vmem:[#allocation4 + $0x70] sm:$0xff]
        %v5010 = vld [vmem:[#allocation4 + $0x78] sm:$0xff]
        %v5011 = vld [vmem:[#allocation4 + $0x80] sm:$0xff]
        %v5012 = vld [vmem:[#allocation4 + $0x88] sm:$0xff]
        %v5013 = vld [vmem:[#allocation4 + $0x90] sm:$0xff]
        %v5014 = vld [vmem:[#allocation4 + $0x98] sm:$0xff]
        %v5015 = vld [vmem:[#allocation4 + $0xa0] sm:$0xff]
        %v5016 = vld [vmem:[#allocation4 + $0xa8] sm:$0xff]
        %v5017 = vld [vmem:[#allocation4 + $0xb0] sm:$0xff]
        %v5018 = vld [vmem:[#allocation4 + $0xb8] sm:$0xff]
        %v5019 = vld [vmem:[#allocation4 + $0xc0] sm:$0xff]
        %v5020 = vld [vmem:[#allocation4 + $0xc8] sm:$0xff]
        %v5021 = vld [vmem:[#allocation4 + $0xd0] sm:$0xff]
        %v5022 = vld [vmem:[#allocation4 + $0xd8] sm:$0xff]
        %v5023 = vld [vmem:[#allocation4 + $0xe0] sm:$0xff]
        %v5024 = vld [vmem:[#allocation4 + $0xe8] sm:$0xff]
        %v5025 = vld [vmem:[#allocation4 + $0xf0] sm:$0xff]
        %v5026 = vld [vmem:[#allocation4 + $0xf8] sm:$0xff]
        %v5027 = vld [vmem:[#allocation4 + $0x100] sm:$0xff]
        %v5028 = vld [vmem:[#allocation4 + $0x108] sm:$0xff]
        %v5029 = vld [vmem:[#allocation4 + $0x110] sm:$0xff]
        %v5030 = vld [vmem:[#allocation4 + $0x118] sm:$0xff]
        %v5031 = vld [vmem:[#allocation4 + $0x120] sm:$0xff]
        %v5032 = vld [vmem:[#allocation4 + $0x128] sm:$0xff]
        %v5033 = vld [vmem:[#allocation4 + $0x130] sm:$0xff]
        %v5034 = vld [vmem:[#allocation4 + $0x138] sm:$0xff]
        %v5035 = vld [vmem:[#allocation4 + $0x140] sm:$0xff]
        %v5036 = vld [vmem:[#allocation4 + $0x148] sm:$0xff]
        %v5037 = vld [vmem:[#allocation4 + $0x150] sm:$0xff]
        %v5038 = vld [vmem:[#allocation4 + $0x158] sm:$0xff]
        %v5039 = vld [vmem:[#allocation4 + $0x160] sm:$0xff]
        %v5040 = vld [vmem:[#allocation4 + $0x168] sm:$0xff]
        %v5041 = vld [vmem:[#allocation4 + $0x170] sm:$0xff]
        %v5042 = vld [vmem:[#allocation4 + $0x178] sm:$0xff]
        %v5043 = vld [vmem:[#allocation4 + $0x180] sm:$0xff]
        %v5044 = vld [vmem:[#allocation4 + $0x188] sm:$0xff]
        %v5045 = vld [vmem:[#allocation4 + $0x190] sm:$0xff]
        %v5046 = vld [vmem:[#allocation4 + $0x198] sm:$0xff]
        %v5047 = vld [vmem:[#allocation4 + $0x1a0] sm:$0xff]
        %v5048 = vld [vmem:[#allocation4 + $0x1a8] sm:$0xff]
        %v5049 = vld [vmem:[#allocation4 + $0x1b0] sm:$0xff]
        %v5050 = vld [vmem:[#allocation4 + $0x1b8] sm:$0xff]
        %v5051 = vld [vmem:[#allocation4 + $0x1c0] sm:$0xff]
        %v5052 = vld [vmem:[#allocation4 + $0x1c8] sm:$0xff]
        %v5053 = vld [vmem:[#allocation4 + $0x1d0] sm:$0xff]
        %v5054 = vld [vmem:[#allocation4 + $0x1d8] sm:$0xff]
        %v5055 = vld [vmem:[#allocation4 + $0x1e0] sm:$0xff]
        %v5056 = vld [vmem:[#allocation4 + $0x1e8] sm:$0xff]
        %v5057 = vld [vmem:[#allocation4 + $0x1f0] sm:$0xff]
        %v5058 = vld [vmem:[#allocation4 + $0x1f8] sm:$0xff]
        %v5059 = vld [vmem:[#allocation4 + $0x200] sm:$0xff]
        %v5060 = vld [vmem:[#allocation4 + $0x208] sm:$0xff]
        %v5061 = vld [vmem:[#allocation4 + $0x210] sm:$0xff]
        %v5062 = vld [vmem:[#allocation4 + $0x218] sm:$0xff]
        %v5063 = vld [vmem:[#allocation4 + $0x220] sm:$0xff]
        %v5064 = vld [vmem:[#allocation4 + $0x228] sm:$0xff]
        %v5065 = vld [vmem:[#allocation4 + $0x230] sm:$0xff]
        %v5066 = vld [vmem:[#allocation4 + $0x238] sm:$0xff]
        %v5067 = vld [vmem:[#allocation4 + $0x240] sm:$0xff]
        %v5068 = vld [vmem:[#allocation4 + $0x248] sm:$0xff]
        %v5069 = vld [vmem:[#allocation4 + $0x250] sm:$0xff]
        %v5070 = vld [vmem:[#allocation4 + $0x258] sm:$0xff]
        %v5071 = vld [vmem:[#allocation4 + $0x260] sm:$0xff]
        %v5072 = vld [vmem:[#allocation4 + $0x268] sm:$0xff]
        %v5073 = vld [vmem:[#allocation4 + $0x270] sm:$0xff]
        %v5074 = vld [vmem:[#allocation4 + $0x278] sm:$0xff]
        %v5075 = vld [vmem:[#allocation4 + $0x280] sm:$0xff]
        %v5076 = vld [vmem:[#allocation4 + $0x288] sm:$0xff]
        %v5077 = vld [vmem:[#allocation4 + $0x290] sm:$0xff]
        %v5078 = vld [vmem:[#allocation4 + $0x298] sm:$0xff]
        %v5079 = vld [vmem:[#allocation4 + $0x2a0] sm:$0xff]
        %v5080 = vld [vmem:[#allocation4 + $0x2a8] sm:$0xff]
        %v5081 = vld [vmem:[#allocation4 + $0x2b0] sm:$0xff]
        %v5082 = vld [vmem:[#allocation4 + $0x2b8] sm:$0xff]
        %v5083 = vld [vmem:[#allocation4 + $0x2c0] sm:$0xff]
        %v5084 = vld [vmem:[#allocation4 + $0x2c8] sm:$0xff]
        %v5085 = vld [vmem:[#allocation4 + $0x2d0] sm:$0xff]
        %v5086 = vld [vmem:[#allocation4 + $0x2d8] sm:$0xff]
        %v5087 = vld [vmem:[#allocation4 + $0x2e0] sm:$0xff]
        %v5088 = vld [vmem:[#allocation4 + $0x2e8] sm:$0xff]
        %v5089 = vld [vmem:[#allocation4 + $0x2f0] sm:$0xff]
        %v5090 = vld [vmem:[#allocation4 + $0x2f8] sm:$0xff]
        %v5091 = vld [vmem:[#allocation4 + $0x300] sm:$0xff]
        %v5092 = vld [vmem:[#allocation4 + $0x308] sm:$0xff]
        %v5093 = vld [vmem:[#allocation4 + $0x310] sm:$0xff]
        %v5094 = vld [vmem:[#allocation4 + $0x318] sm:$0xff]
        %v5095 = vld [vmem:[#allocation4 + $0x320] sm:$0xff]
        %v5096 = vld [vmem:[#allocation4 + $0x328] sm:$0xff]
        %v5097 = vld [vmem:[#allocation4 + $0x330] sm:$0xff]
        %v5098 = vld [vmem:[#allocation4 + $0x338] sm:$0xff]
        %v5099 = vld [vmem:[#allocation4 + $0x340] sm:$0xff]
        %v5100 = vld [vmem:[#allocation4 + $0x348] sm:$0xff]
        %v5101 = vld [vmem:[#allocation4 + $0x350] sm:$0xff]
        %v5102 = vld [vmem:[#allocation4 + $0x358] sm:$0xff]
        %v5103 = vld [vmem:[#allocation4 + $0x360] sm:$0xff]
        %v5104 = vld [vmem:[#allocation4 + $0x368] sm:$0xff]
        %v5105 = vld [vmem:[#allocation4 + $0x370] sm:$0xff]
        %v5106 = vld [vmem:[#allocation4 + $0x378] sm:$0xff]
        %v5107 = vld [vmem:[#allocation4 + $0x380] sm:$0xff]
        %v5108 = vld [vmem:[#allocation4 + $0x388] sm:$0xff]
        %v5109 = vld [vmem:[#allocation4 + $0x390] sm:$0xff]
        %v5110 = vld [vmem:[#allocation4 + $0x398] sm:$0xff]
        %v5111 = vld [vmem:[#allocation4 + $0x3a0] sm:$0xff]
        %v5112 = vld [vmem:[#allocation4 + $0x3a8] sm:$0xff]
        %v5113 = vld [vmem:[#allocation4 + $0x3b0] sm:$0xff]
        %v5114 = vld [vmem:[#allocation4 + $0x3b8] sm:$0xff]
        %v5115 = vld [vmem:[#allocation4 + $0x3c0] sm:$0xff]
        %v5116 = vld [vmem:[#allocation4 + $0x3c8] sm:$0xff]
        %v5117 = vld [vmem:[#allocation4 + $0x3d0] sm:$0xff]
        %v5118 = vld [vmem:[#allocation4 + $0x3d8] sm:$0xff]
        %v5119 = vld [vmem:[#allocation4 + $0x3e0] sm:$0xff]
        %v5120 = vld [vmem:[#allocation4 + $0x3e8] sm:$0xff]
        %v5121 = vld [vmem:[#allocation4 + $0x3f0] sm:$0xff]
        %v5122 = vld [vmem:[#allocation4 + $0x3f8] sm:$0xff]
        %v5123 = vld [vmem:[#allocation4 + $0x400] sm:$0xff]
        %v5124 = vld [vmem:[#allocation4 + $0x408] sm:$0xff]
        %v5125 = vld [vmem:[#allocation4 + $0x410] sm:$0xff]
        %v5126 = vld [vmem:[#allocation4 + $0x418] sm:$0xff]
        %v5127 = vld [vmem:[#allocation4 + $0x420] sm:$0xff]
        %v5128 = vld [vmem:[#allocation4 + $0x428] sm:$0xff]
        %v5129 = vld [vmem:[#allocation4 + $0x430] sm:$0xff]
        %v5130 = vld [vmem:[#allocation4 + $0x438] sm:$0xff]
        %v5131 = vld [vmem:[#allocation4 + $0x440] sm:$0xff]
        %v5132 = vld [vmem:[#allocation4 + $0x448] sm:$0xff]
        %v5133 = vld [vmem:[#allocation4 + $0x450] sm:$0xff]
        %v5134 = vld [vmem:[#allocation4 + $0x458] sm:$0xff]
        %v5135 = vld [vmem:[#allocation4 + $0x460] sm:$0xff]
        %v5136 = vld [vmem:[#allocation4 + $0x468] sm:$0xff]
        %v5137 = vld [vmem:[#allocation4 + $0x470] sm:$0xff]
        %v5138 = vld [vmem:[#allocation4 + $0x478] sm:$0xff]
        %v5283 = vunpack.c.l.b16 %v4995
        %v5284 = vunpack.c.h.b16 %v4995
        %v5285 = vunpack.c.l.b16 %v4996
        %v5286 = vunpack.c.h.b16 %v4996
        %v5287 = vunpack.c.l.b16 %v4997
        %v5288 = vunpack.c.h.b16 %v4997
        %v5289 = vunpack.c.l.b16 %v4998
        %v5290 = vunpack.c.h.b16 %v4998
        %v5291 = vunpack.c.l.b16 %v4999
        %v5292 = vunpack.c.h.b16 %v4999
        %v5293 = vunpack.c.l.b16 %v5000
        %v5294 = vunpack.c.h.b16 %v5000
        %v5295 = vunpack.c.l.b16 %v5001
        %v5296 = vunpack.c.h.b16 %v5001
        %v5297 = vunpack.c.l.b16 %v5002
        %v5298 = vunpack.c.h.b16 %v5002
        %v5299 = vunpack.c.l.b16 %v5003
        %v5300 = vunpack.c.h.b16 %v5003
        %v5301 = vunpack.c.l.b16 %v5004
        %v5302 = vunpack.c.h.b16 %v5004
        %v5303 = vunpack.c.l.b16 %v5005
        %v5304 = vunpack.c.h.b16 %v5005
        %v5305 = vunpack.c.l.b16 %v5006
        %v5306 = vunpack.c.h.b16 %v5006
        %v5307 = vunpack.c.l.b16 %v5007
        %v5308 = vunpack.c.h.b16 %v5007
        %v5309 = vunpack.c.l.b16 %v5008
        %v5310 = vunpack.c.h.b16 %v5008
        %v5311 = vunpack.c.l.b16 %v5009
        %v5312 = vunpack.c.h.b16 %v5009
        %v5313 = vunpack.c.l.b16 %v5010
        %v5314 = vunpack.c.h.b16 %v5010
        %v5315 = vunpack.c.l.b16 %v5011
        %v5316 = vunpack.c.h.b16 %v5011
        %v5317 = vunpack.c.l.b16 %v5012
        %v5318 = vunpack.c.h.b16 %v5012
        %v5319 = vunpack.c.l.b16 %v5013
        %v5320 = vunpack.c.h.b16 %v5013
        %v5321 = vunpack.c.l.b16 %v5014
        %v5322 = vunpack.c.h.b16 %v5014
        %v5323 = vunpack.c.l.b16 %v5015
        %v5324 = vunpack.c.h.b16 %v5015
        %v5325 = vunpack.c.l.b16 %v5016
        %v5326 = vunpack.c.h.b16 %v5016
        %v5327 = vunpack.c.l.b16 %v5017
        %v5328 = vunpack.c.h.b16 %v5017
        %v5329 = vunpack.c.l.b16 %v5018
        %v5330 = vunpack.c.h.b16 %v5018
        %v5331 = vunpack.c.l.b16 %v5019
        %v5332 = vunpack.c.h.b16 %v5019
        %v5333 = vunpack.c.l.b16 %v5020
        %v5334 = vunpack.c.h.b16 %v5020
        %v5335 = vunpack.c.l.b16 %v5021
        %v5336 = vunpack.c.h.b16 %v5021
        %v5337 = vunpack.c.l.b16 %v5022
        %v5338 = vunpack.c.h.b16 %v5022
        %v5339 = vunpack.c.l.b16 %v5023
        %v5340 = vunpack.c.h.b16 %v5023
        %v5341 = vunpack.c.l.b16 %v5024
        %v5342 = vunpack.c.h.b16 %v5024
        %v5343 = vunpack.c.l.b16 %v5025
        %v5344 = vunpack.c.h.b16 %v5025
        %v5345 = vunpack.c.l.b16 %v5026
        %v5346 = vunpack.c.h.b16 %v5026
        %v5347 = vunpack.c.l.b16 %v5027
        %v5348 = vunpack.c.h.b16 %v5027
        %v5349 = vunpack.c.l.b16 %v5028
        %v5350 = vunpack.c.h.b16 %v5028
        %v5351 = vunpack.c.l.b16 %v5029
        %v5352 = vunpack.c.h.b16 %v5029
        %v5353 = vunpack.c.l.b16 %v5030
        %v5354 = vunpack.c.h.b16 %v5030
        %v5355 = vunpack.c.l.b16 %v5031
        %v5356 = vunpack.c.h.b16 %v5031
        %v5357 = vunpack.c.l.b16 %v5032
        %v5358 = vunpack.c.h.b16 %v5032
        %v5359 = vunpack.c.l.b16 %v5033
        %v5360 = vunpack.c.h.b16 %v5033
        %v5361 = vunpack.c.l.b16 %v5034
        %v5362 = vunpack.c.h.b16 %v5034
        %v5363 = vunpack.c.l.b16 %v5035
        %v5364 = vunpack.c.h.b16 %v5035
        %v5365 = vunpack.c.l.b16 %v5036
        %v5366 = vunpack.c.h.b16 %v5036
        %v5367 = vunpack.c.l.b16 %v5037
        %v5368 = vunpack.c.h.b16 %v5037
        %v5369 = vunpack.c.l.b16 %v5038
        %v5370 = vunpack.c.h.b16 %v5038
        %v5371 = vunpack.c.l.b16 %v5039
        %v5372 = vunpack.c.h.b16 %v5039
        %v5373 = vunpack.c.l.b16 %v5040
        %v5374 = vunpack.c.h.b16 %v5040
        %v5375 = vunpack.c.l.b16 %v5041
        %v5376 = vunpack.c.h.b16 %v5041
        %v5377 = vunpack.c.l.b16 %v5042
        %v5378 = vunpack.c.h.b16 %v5042
        %v5379 = vunpack.c.l.b16 %v5043
        %v5380 = vunpack.c.h.b16 %v5043
        %v5381 = vunpack.c.l.b16 %v5044
        %v5382 = vunpack.c.h.b16 %v5044
        %v5383 = vunpack.c.l.b16 %v5045
        %v5384 = vunpack.c.h.b16 %v5045
        %v5385 = vunpack.c.l.b16 %v5046
        %v5386 = vunpack.c.h.b16 %v5046
        %v5387 = vunpack.c.l.b16 %v5047
        %v5388 = vunpack.c.h.b16 %v5047
        %v5389 = vunpack.c.l.b16 %v5048
        %v5390 = vunpack.c.h.b16 %v5048
        %v5391 = vunpack.c.l.b16 %v5049
        %v5392 = vunpack.c.h.b16 %v5049
        %v5393 = vunpack.c.l.b16 %v5050
        %v5394 = vunpack.c.h.b16 %v5050
        %v5395 = vunpack.c.l.b16 %v5051
        %v5396 = vunpack.c.h.b16 %v5051
        %v5397 = vunpack.c.l.b16 %v5052
        %v5398 = vunpack.c.h.b16 %v5052
        %v5399 = vunpack.c.l.b16 %v5053
        %v5400 = vunpack.c.h.b16 %v5053
        %v5401 = vunpack.c.l.b16 %v5054
        %v5402 = vunpack.c.h.b16 %v5054
        %v5403 = vunpack.c.l.b16 %v5055
        %v5404 = vunpack.c.h.b16 %v5055
        %v5405 = vunpack.c.l.b16 %v5056
        %v5406 = vunpack.c.h.b16 %v5056
        %v5407 = vunpack.c.l.b16 %v5057
        %v5408 = vunpack.c.h.b16 %v5057
        %v5409 = vunpack.c.l.b16 %v5058
        %v5410 = vunpack.c.h.b16 %v5058
        %v5411 = vunpack.c.l.b16 %v5059
        %v5412 = vunpack.c.h.b16 %v5059
        %v5413 = vunpack.c.l.b16 %v5060
        %v5414 = vunpack.c.h.b16 %v5060
        %v5415 = vunpack.c.l.b16 %v5061
        %v5416 = vunpack.c.h.b16 %v5061
        %v5417 = vunpack.c.l.b16 %v5062
        %v5418 = vunpack.c.h.b16 %v5062
        %v5419 = vunpack.c.l.b16 %v5063
        %v5420 = vunpack.c.h.b16 %v5063
        %v5421 = vunpack.c.l.b16 %v5064
        %v5422 = vunpack.c.h.b16 %v5064
        %v5423 = vunpack.c.l.b16 %v5065
        %v5424 = vunpack.c.h.b16 %v5065
        %v5425 = vunpack.c.l.b16 %v5066
        %v5426 = vunpack.c.h.b16 %v5066
        %v5427 = vunpack.c.l.b16 %v5067
        %v5428 = vunpack.c.h.b16 %v5067
        %v5429 = vunpack.c.l.b16 %v5068
        %v5430 = vunpack.c.h.b16 %v5068
        %v5431 = vunpack.c.l.b16 %v5069
        %v5432 = vunpack.c.h.b16 %v5069
        %v5433 = vunpack.c.l.b16 %v5070
        %v5434 = vunpack.c.h.b16 %v5070
        %v5435 = vunpack.c.l.b16 %v5071
        %v5436 = vunpack.c.h.b16 %v5071
        %v5437 = vunpack.c.l.b16 %v5072
        %v5438 = vunpack.c.h.b16 %v5072
        %v5439 = vunpack.c.l.b16 %v5073
        %v5440 = vunpack.c.h.b16 %v5073
        %v5441 = vunpack.c.l.b16 %v5074
        %v5442 = vunpack.c.h.b16 %v5074
        %v5443 = vunpack.c.l.b16 %v5075
        %v5444 = vunpack.c.h.b16 %v5075
        %v5445 = vunpack.c.l.b16 %v5076
        %v5446 = vunpack.c.h.b16 %v5076
        %v5447 = vunpack.c.l.b16 %v5077
        %v5448 = vunpack.c.h.b16 %v5077
        %v5449 = vunpack.c.l.b16 %v5078
        %v5450 = vunpack.c.h.b16 %v5078
        %v5451 = vunpack.c.l.b16 %v5079
        %v5452 = vunpack.c.h.b16 %v5079
        %v5453 = vunpack.c.l.b16 %v5080
        %v5454 = vunpack.c.h.b16 %v5080
        %v5455 = vunpack.c.l.b16 %v5081
        %v5456 = vunpack.c.h.b16 %v5081
        %v5457 = vunpack.c.l.b16 %v5082
        %v5458 = vunpack.c.h.b16 %v5082
        %v5459 = vunpack.c.l.b16 %v5083
        %v5460 = vunpack.c.h.b16 %v5083
        %v5461 = vunpack.c.l.b16 %v5084
        %v5462 = vunpack.c.h.b16 %v5084
        %v5463 = vunpack.c.l.b16 %v5085
        %v5464 = vunpack.c.h.b16 %v5085
        %v5465 = vunpack.c.l.b16 %v5086
        %v5466 = vunpack.c.h.b16 %v5086
        %v5467 = vunpack.c.l.b16 %v5087
        %v5468 = vunpack.c.h.b16 %v5087
        %v5469 = vunpack.c.l.b16 %v5088
        %v5470 = vunpack.c.h.b16 %v5088
        %v5471 = vunpack.c.l.b16 %v5089
        %v5472 = vunpack.c.h.b16 %v5089
        %v5473 = vunpack.c.l.b16 %v5090
        %v5474 = vunpack.c.h.b16 %v5090
        %v5475 = vunpack.c.l.b16 %v5091
        %v5476 = vunpack.c.h.b16 %v5091
        %v5477 = vunpack.c.l.b16 %v5092
        %v5478 = vunpack.c.h.b16 %v5092
        %v5479 = vunpack.c.l.b16 %v5093
        %v5480 = vunpack.c.h.b16 %v5093
        %v5481 = vunpack.c.l.b16 %v5094
        %v5482 = vunpack.c.h.b16 %v5094
        %v5483 = vunpack.c.l.b16 %v5095
        %v5484 = vunpack.c.h.b16 %v5095
        %v5485 = vunpack.c.l.b16 %v5096
        %v5486 = vunpack.c.h.b16 %v5096
        %v5487 = vunpack.c.l.b16 %v5097
        %v5488 = vunpack.c.h.b16 %v5097
        %v5489 = vunpack.c.l.b16 %v5098
        %v5490 = vunpack.c.h.b16 %v5098
        %v5491 = vunpack.c.l.b16 %v5099
        %v5492 = vunpack.c.h.b16 %v5099
        %v5493 = vunpack.c.l.b16 %v5100
        %v5494 = vunpack.c.h.b16 %v5100
        %v5495 = vunpack.c.l.b16 %v5101
        %v5496 = vunpack.c.h.b16 %v5101
        %v5497 = vunpack.c.l.b16 %v5102
        %v5498 = vunpack.c.h.b16 %v5102
        %v5499 = vunpack.c.l.b16 %v5103
        %v5500 = vunpack.c.h.b16 %v5103
        %v5501 = vunpack.c.l.b16 %v5104
        %v5502 = vunpack.c.h.b16 %v5104
        %v5503 = vunpack.c.l.b16 %v5105
        %v5504 = vunpack.c.h.b16 %v5105
        %v5505 = vunpack.c.l.b16 %v5106
        %v5506 = vunpack.c.h.b16 %v5106
        %v5507 = vunpack.c.l.b16 %v5107
        %v5508 = vunpack.c.h.b16 %v5107
        %v5509 = vunpack.c.l.b16 %v5108
        %v5510 = vunpack.c.h.b16 %v5108
        %v5511 = vunpack.c.l.b16 %v5109
        %v5512 = vunpack.c.h.b16 %v5109
        %v5513 = vunpack.c.l.b16 %v5110
        %v5514 = vunpack.c.h.b16 %v5110
        %v5515 = vunpack.c.l.b16 %v5111
        %v5516 = vunpack.c.h.b16 %v5111
        %v5517 = vunpack.c.l.b16 %v5112
        %v5518 = vunpack.c.h.b16 %v5112
        %v5519 = vunpack.c.l.b16 %v5113
        %v5520 = vunpack.c.h.b16 %v5113
        %v5521 = vunpack.c.l.b16 %v5114
        %v5522 = vunpack.c.h.b16 %v5114
        %v5523 = vunpack.c.l.b16 %v5115
        %v5524 = vunpack.c.h.b16 %v5115
        %v5525 = vunpack.c.l.b16 %v5116
        %v5526 = vunpack.c.h.b16 %v5116
        %v5527 = vunpack.c.l.b16 %v5117
        %v5528 = vunpack.c.h.b16 %v5117
        %v5529 = vunpack.c.l.b16 %v5118
        %v5530 = vunpack.c.h.b16 %v5118
        %v5531 = vunpack.c.l.b16 %v5119
        %v5532 = vunpack.c.h.b16 %v5119
        %v5533 = vunpack.c.l.b16 %v5120
        %v5534 = vunpack.c.h.b16 %v5120
        %v5535 = vunpack.c.l.b16 %v5121
        %v5536 = vunpack.c.h.b16 %v5121
        %v5537 = vunpack.c.l.b16 %v5122
        %v5538 = vunpack.c.h.b16 %v5122
        %v5539 = vunpack.c.l.b16 %v5123
        %v5540 = vunpack.c.h.b16 %v5123
        %v5541 = vunpack.c.l.b16 %v5124
        %v5542 = vunpack.c.h.b16 %v5124
        %v5543 = vunpack.c.l.b16 %v5125
        %v5544 = vunpack.c.h.b16 %v5125
        %v5545 = vunpack.c.l.b16 %v5126
        %v5546 = vunpack.c.h.b16 %v5126
        %v5547 = vunpack.c.l.b16 %v5127
        %v5548 = vunpack.c.h.b16 %v5127
        %v5549 = vunpack.c.l.b16 %v5128
        %v5550 = vunpack.c.h.b16 %v5128
        %v5551 = vunpack.c.l.b16 %v5129
        %v5552 = vunpack.c.h.b16 %v5129
        %v5553 = vunpack.c.l.b16 %v5130
        %v5554 = vunpack.c.h.b16 %v5130
        %v5555 = vunpack.c.l.b16 %v5131
        %v5556 = vunpack.c.h.b16 %v5131
        %v5557 = vunpack.c.l.b16 %v5132
        %v5558 = vunpack.c.h.b16 %v5132
        %v5559 = vunpack.c.l.b16 %v5133
        %v5560 = vunpack.c.h.b16 %v5133
        %v5561 = vunpack.c.l.b16 %v5134
        %v5562 = vunpack.c.h.b16 %v5134
        %v5563 = vunpack.c.l.b16 %v5135
        %v5564 = vunpack.c.h.b16 %v5135
        %v5565 = vunpack.c.l.b16 %v5136
        %v5566 = vunpack.c.h.b16 %v5136
        %v5567 = vunpack.c.l.b16 %v5137
        %v5568 = vunpack.c.h.b16 %v5137
        %v5569 = vunpack.c.l.b16 %v5138
        %v5570 = vunpack.c.h.b16 %v5138
        %v5571 = vpack.c.b16 %v5285, %v5283
        %v5572 = vpack.c.b16 %v5286, %v5284
        %v5573 = vpack.c.b16 %v5289, %v5287
        %v5574 = vpack.c.b16 %v5290, %v5288
        %v5575 = vpack.c.b16 %v5293, %v5291
        %v5576 = vpack.c.b16 %v5294, %v5292
        %v5577 = vpack.c.b16 %v5297, %v5295
        %v5578 = vpack.c.b16 %v5298, %v5296
        %v5579 = vpack.c.b16 %v5301, %v5299
        %v5580 = vpack.c.b16 %v5302, %v5300
        %v5581 = vpack.c.b16 %v5305, %v5303
        %v5582 = vpack.c.b16 %v5306, %v5304
        %v5583 = vpack.c.b16 %v5309, %v5307
        %v5584 = vpack.c.b16 %v5310, %v5308
        %v5585 = vpack.c.b16 %v5313, %v5311
        %v5586 = vpack.c.b16 %v5314, %v5312
        %v5587 = vpack.c.b16 %v5317, %v5315
        %v5588 = vpack.c.b16 %v5318, %v5316
        %v5589 = vpack.c.b16 %v5321, %v5319
        %v5590 = vpack.c.b16 %v5322, %v5320
        %v5591 = vpack.c.b16 %v5325, %v5323
        %v5592 = vpack.c.b16 %v5326, %v5324
        %v5593 = vpack.c.b16 %v5329, %v5327
        %v5594 = vpack.c.b16 %v5330, %v5328
        %v5595 = vpack.c.b16 %v5333, %v5331
        %v5596 = vpack.c.b16 %v5334, %v5332
        %v5597 = vpack.c.b16 %v5337, %v5335
        %v5598 = vpack.c.b16 %v5338, %v5336
        %v5599 = vpack.c.b16 %v5341, %v5339
        %v5600 = vpack.c.b16 %v5342, %v5340
        %v5601 = vpack.c.b16 %v5345, %v5343
        %v5602 = vpack.c.b16 %v5346, %v5344
        %v5603 = vpack.c.b16 %v5349, %v5347
        %v5604 = vpack.c.b16 %v5350, %v5348
        %v5605 = vpack.c.b16 %v5353, %v5351
        %v5606 = vpack.c.b16 %v5354, %v5352
        %v5607 = vpack.c.b16 %v5357, %v5355
        %v5608 = vpack.c.b16 %v5358, %v5356
        %v5609 = vpack.c.b16 %v5361, %v5359
        %v5610 = vpack.c.b16 %v5362, %v5360
        %v5611 = vpack.c.b16 %v5365, %v5363
        %v5612 = vpack.c.b16 %v5366, %v5364
        %v5613 = vpack.c.b16 %v5369, %v5367
        %v5614 = vpack.c.b16 %v5370, %v5368
        %v5615 = vpack.c.b16 %v5373, %v5371
        %v5616 = vpack.c.b16 %v5374, %v5372
        %v5617 = vpack.c.b16 %v5377, %v5375
        %v5618 = vpack.c.b16 %v5378, %v5376
        %v5619 = vpack.c.b16 %v5381, %v5379
        %v5620 = vpack.c.b16 %v5382, %v5380
        %v5621 = vpack.c.b16 %v5385, %v5383
        %v5622 = vpack.c.b16 %v5386, %v5384
        %v5623 = vpack.c.b16 %v5389, %v5387
        %v5624 = vpack.c.b16 %v5390, %v5388
        %v5625 = vpack.c.b16 %v5393, %v5391
        %v5626 = vpack.c.b16 %v5394, %v5392
        %v5627 = vpack.c.b16 %v5397, %v5395
        %v5628 = vpack.c.b16 %v5398, %v5396
        %v5629 = vpack.c.b16 %v5401, %v5399
        %v5630 = vpack.c.b16 %v5402, %v5400
        %v5631 = vpack.c.b16 %v5405, %v5403
        %v5632 = vpack.c.b16 %v5406, %v5404
        %v5633 = vpack.c.b16 %v5409, %v5407
        %v5634 = vpack.c.b16 %v5410, %v5408
        %v5635 = vpack.c.b16 %v5413, %v5411
        %v5636 = vpack.c.b16 %v5414, %v5412
        %v5637 = vpack.c.b16 %v5417, %v5415
        %v5638 = vpack.c.b16 %v5418, %v5416
        %v5639 = vpack.c.b16 %v5421, %v5419
        %v5640 = vpack.c.b16 %v5422, %v5420
        %v5641 = vpack.c.b16 %v5425, %v5423
        %v5642 = vpack.c.b16 %v5426, %v5424
        %v5643 = vpack.c.b16 %v5429, %v5427
        %v5644 = vpack.c.b16 %v5430, %v5428
        %v5645 = vpack.c.b16 %v5433, %v5431
        %v5646 = vpack.c.b16 %v5434, %v5432
        %v5647 = vpack.c.b16 %v5437, %v5435
        %v5648 = vpack.c.b16 %v5438, %v5436
        %v5649 = vpack.c.b16 %v5441, %v5439
        %v5650 = vpack.c.b16 %v5442, %v5440
        %v5651 = vpack.c.b16 %v5445, %v5443
        %v5652 = vpack.c.b16 %v5446, %v5444
        %v5653 = vpack.c.b16 %v5449, %v5447
        %v5654 = vpack.c.b16 %v5450, %v5448
        %v5655 = vpack.c.b16 %v5453, %v5451
        %v5656 = vpack.c.b16 %v5454, %v5452
        %v5657 = vpack.c.b16 %v5457, %v5455
        %v5658 = vpack.c.b16 %v5458, %v5456
        %v5659 = vpack.c.b16 %v5461, %v5459
        %v5660 = vpack.c.b16 %v5462, %v5460
        %v5661 = vpack.c.b16 %v5465, %v5463
        %v5662 = vpack.c.b16 %v5466, %v5464
        %v5663 = vpack.c.b16 %v5469, %v5467
        %v5664 = vpack.c.b16 %v5470, %v5468
        %v5665 = vpack.c.b16 %v5473, %v5471
        %v5666 = vpack.c.b16 %v5474, %v5472
        %v5667 = vpack.c.b16 %v5477, %v5475
        %v5668 = vpack.c.b16 %v5478, %v5476
        %v5669 = vpack.c.b16 %v5481, %v5479
        %v5670 = vpack.c.b16 %v5482, %v5480
        %v5671 = vpack.c.b16 %v5485, %v5483
        %v5672 = vpack.c.b16 %v5486, %v5484
        %v5673 = vpack.c.b16 %v5489, %v5487
        %v5674 = vpack.c.b16 %v5490, %v5488
        %v5675 = vpack.c.b16 %v5493, %v5491
        %v5676 = vpack.c.b16 %v5494, %v5492
        %v5677 = vpack.c.b16 %v5497, %v5495
        %v5678 = vpack.c.b16 %v5498, %v5496
        %v5679 = vpack.c.b16 %v5501, %v5499
        %v5680 = vpack.c.b16 %v5502, %v5500
        %v5681 = vpack.c.b16 %v5505, %v5503
        %v5682 = vpack.c.b16 %v5506, %v5504
        %v5683 = vpack.c.b16 %v5509, %v5507
        %v5684 = vpack.c.b16 %v5510, %v5508
        %v5685 = vpack.c.b16 %v5513, %v5511
        %v5686 = vpack.c.b16 %v5514, %v5512
        %v5687 = vpack.c.b16 %v5517, %v5515
        %v5688 = vpack.c.b16 %v5518, %v5516
        %v5689 = vpack.c.b16 %v5521, %v5519
        %v5690 = vpack.c.b16 %v5522, %v5520
        %v5691 = vpack.c.b16 %v5525, %v5523
        %v5692 = vpack.c.b16 %v5526, %v5524
        %v5693 = vpack.c.b16 %v5529, %v5527
        %v5694 = vpack.c.b16 %v5530, %v5528
        %v5695 = vpack.c.b16 %v5533, %v5531
        %v5696 = vpack.c.b16 %v5534, %v5532
        %v5697 = vpack.c.b16 %v5537, %v5535
        %v5698 = vpack.c.b16 %v5538, %v5536
        %v5699 = vpack.c.b16 %v5541, %v5539
        %v5700 = vpack.c.b16 %v5542, %v5540
        %v5701 = vpack.c.b16 %v5545, %v5543
        %v5702 = vpack.c.b16 %v5546, %v5544
        %v5703 = vpack.c.b16 %v5549, %v5547
        %v5704 = vpack.c.b16 %v5550, %v5548
        %v5705 = vpack.c.b16 %v5553, %v5551
        %v5706 = vpack.c.b16 %v5554, %v5552
        %v5707 = vpack.c.b16 %v5557, %v5555
        %v5708 = vpack.c.b16 %v5558, %v5556
        %v5709 = vpack.c.b16 %v5561, %v5559
        %v5710 = vpack.c.b16 %v5562, %v5560
        %v5711 = vpack.c.b16 %v5565, %v5563
        %v5712 = vpack.c.b16 %v5566, %v5564
        %v5713 = vpack.c.b16 %v5569, %v5567
        %v5714 = vpack.c.b16 %v5570, %v5568
        %5859 = vmatpush.bf16.msra.mxu0 %v5585
        %5860 = vmatpush.bf16.msra.mxu0 %v5583
        %5861 = vmatpush.bf16.msra.mxu0 %v5581
        %5862 = vmatpush.bf16.msra.mxu0 %v5579
        %5863 = vmatpush.bf16.msra.mxu0 %v5577
        %5864 = vmatpush.bf16.msra.mxu0 %v5575
        %5865 = vmatpush.bf16.msra.mxu0 %v5573
        %5866 = vmatpush.bf16.msra.mxu0 %v5571
        %5867 = vmatmul.bf16.gmra.mxu0 %v4907
        %v5868 = vpop.f32.mrf.mxu0
        %v5869 = vadd.f32 0.0, %v5868
        %v5870 = vpop.f32.mrf.mxu0
        %v5871 = vadd.f32 0.0, %v5870
        %5872 = vdwg.mxu0
        %5873 = vmatpush.bf16.msra.mxu0 %v5601
        %5874 = vmatpush.bf16.msra.mxu0 %v5599
        %5875 = vmatpush.bf16.msra.mxu0 %v5597
        %5876 = vmatpush.bf16.msra.mxu0 %v5595
        %5877 = vmatpush.bf16.msra.mxu0 %v5593
        %5878 = vmatpush.bf16.msra.mxu0 %v5591
        %5879 = vmatpush.bf16.msra.mxu0 %v5589
        %5880 = vmatpush.bf16.msra.mxu0 %v5587
        %5881 = vmatmul.bf16.gmra.mxu0 %v4920
        %v5882 = vpop.f32.mrf.mxu0
        %v5883 = vadd.f32 %v5869, %v5882
        %v5884 = vpop.f32.mrf.mxu0
        %v5885 = vadd.f32 %v5871, %v5884
        %5886 = vdwg.mxu0
        %5887 = vmatpush.bf16.msra.mxu0 %v5617
        %5888 = vmatpush.bf16.msra.mxu0 %v5615
        %5889 = vmatpush.bf16.msra.mxu0 %v5613
        %5890 = vmatpush.bf16.msra.mxu0 %v5611
        %5891 = vmatpush.bf16.msra.mxu0 %v5609
        %5892 = vmatpush.bf16.msra.mxu0 %v5607
        %5893 = vmatpush.bf16.msra.mxu0 %v5605
        %5894 = vmatpush.bf16.msra.mxu0 %v5603
        %5895 = vmatmul.bf16.gmra.mxu0 %v4933
        %v5896 = vpop.f32.mrf.mxu0
        %v5897 = vadd.f32 %v5883, %v5896
        %v5898 = vpop.f32.mrf.mxu0
        %v5899 = vadd.f32 %v5885, %v5898
        %5900 = vdwg.mxu0
        %5901 = vmatpush.bf16.msra.mxu0 %v5633
        %5902 = vmatpush.bf16.msra.mxu0 %v5631
        %5903 = vmatpush.bf16.msra.mxu0 %v5629
        %5904 = vmatpush.bf16.msra.mxu0 %v5627
        %5905 = vmatpush.bf16.msra.mxu0 %v5625
        %5906 = vmatpush.bf16.msra.mxu0 %v5623
        %5907 = vmatpush.bf16.msra.mxu0 %v5621
        %5908 = vmatpush.bf16.msra.mxu0 %v5619
        %5909 = vmatmul.bf16.gmra.mxu0 %v4943
        %v5910 = vpop.f32.mrf.mxu0
        %v5911 = vadd.f32 %v5897, %v5910
        %v5912 = vpop.f32.mrf.mxu0
        %v5913 = vadd.f32 %v5899, %v5912
        %5914 = vdwg.mxu0
        %5915 = vmatpush.bf16.msra.mxu0 %v5649
        %5916 = vmatpush.bf16.msra.mxu0 %v5647
        %5917 = vmatpush.bf16.msra.mxu0 %v5645
        %5918 = vmatpush.bf16.msra.mxu0 %v5643
        %5919 = vmatpush.bf16.msra.mxu0 %v5641
        %5920 = vmatpush.bf16.msra.mxu0 %v5639
        %5921 = vmatpush.bf16.msra.mxu0 %v5637
        %5922 = vmatpush.bf16.msra.mxu0 %v5635
        %5923 = vmatmul.bf16.gmra.mxu0 %v4953
        %v5924 = vpop.f32.mrf.mxu0
        %v5925 = vadd.f32 %v5911, %v5924
        %v5926 = vpop.f32.mrf.mxu0
        %v5927 = vadd.f32 %v5913, %v5926
        %5928 = vdwg.mxu0
        %5929 = vmatpush.bf16.msra.mxu0 %v5665
        %5930 = vmatpush.bf16.msra.mxu0 %v5663
        %5931 = vmatpush.bf16.msra.mxu0 %v5661
        %5932 = vmatpush.bf16.msra.mxu0 %v5659
        %5933 = vmatpush.bf16.msra.mxu0 %v5657
        %5934 = vmatpush.bf16.msra.mxu0 %v5655
        %5935 = vmatpush.bf16.msra.mxu0 %v5653
        %5936 = vmatpush.bf16.msra.mxu0 %v5651
        %5937 = vmatmul.bf16.gmra.mxu0 %v4963
        %v5938 = vpop.f32.mrf.mxu0
        %v5939 = vadd.f32 %v5925, %v5938
        %v5940 = vpop.f32.mrf.mxu0
        %v5941 = vadd.f32 %v5927, %v5940
        %5942 = vdwg.mxu0
        %5943 = vmatpush.bf16.msra.mxu0 %v5681
        %5944 = vmatpush.bf16.msra.mxu0 %v5679
        %5945 = vmatpush.bf16.msra.mxu0 %v5677
        %5946 = vmatpush.bf16.msra.mxu0 %v5675
        %5947 = vmatpush.bf16.msra.mxu0 %v5673
        %5948 = vmatpush.bf16.msra.mxu0 %v5671
        %5949 = vmatpush.bf16.msra.mxu0 %v5669
        %5950 = vmatpush.bf16.msra.mxu0 %v5667
        %5951 = vmatmul.bf16.gmra.mxu0 %v4973
        %v5952 = vpop.f32.mrf.mxu0
        %v5953 = vadd.f32 %v5939, %v5952
        %v5954 = vpop.f32.mrf.mxu0
        %v5955 = vadd.f32 %v5941, %v5954
        %5956 = vdwg.mxu0
        %5957 = vmatpush.bf16.msra.mxu0 %v5697
        %5958 = vmatpush.bf16.msra.mxu0 %v5695
        %5959 = vmatpush.bf16.msra.mxu0 %v5693
        %5960 = vmatpush.bf16.msra.mxu0 %v5691
        %5961 = vmatpush.bf16.msra.mxu0 %v5689
        %5962 = vmatpush.bf16.msra.mxu0 %v5687
        %5963 = vmatpush.bf16.msra.mxu0 %v5685
        %5964 = vmatpush.bf16.msra.mxu0 %v5683
        %5965 = vmatmul.bf16.gmra.mxu0 %v4983
        %v5966 = vpop.f32.mrf.mxu0
        %v5967 = vadd.f32 %v5953, %v5966
        %v5968 = vpop.f32.mrf.mxu0
        %v5969 = vadd.f32 %v5955, %v5968
        %5970 = vdwg.mxu0
        %5971 = vmatpush.bf16.msra.mxu0 %v5713
        %5972 = vmatpush.bf16.msra.mxu0 %v5711
        %5973 = vmatpush.bf16.msra.mxu0 %v5709
        %5974 = vmatpush.bf16.msra.mxu0 %v5707
        %5975 = vmatpush.bf16.msra.mxu0 %v5705
        %5976 = vmatpush.bf16.msra.mxu0 %v5703
        %5977 = vmatpush.bf16.msra.mxu0 %v5701
        %5978 = vmatpush.bf16.msra.mxu0 %v5699
        %5979 = vmatmul.bf16.gmra.mxu0 %v4993
        %v5980 = vpop.f32.mrf.mxu0
        %v5981 = vadd.f32 %v5967, %v5980
        %v5982 = vpop.f32.mrf.mxu0
        %v5983 = vadd.f32 %v5969, %v5982
        %5984 = vdwg.mxu0
        %5985 = vmatpush.bf16.msra.mxu0 %v5586
        %5986 = vmatpush.bf16.msra.mxu0 %v5584
        %5987 = vmatpush.bf16.msra.mxu0 %v5582
        %5988 = vmatpush.bf16.msra.mxu0 %v5580
        %5989 = vmatpush.bf16.msra.mxu0 %v5578
        %5990 = vmatpush.bf16.msra.mxu0 %v5576
        %5991 = vmatpush.bf16.msra.mxu0 %v5574
        %5992 = vmatpush.bf16.msra.mxu0 %v5572
        %5993 = vmatmul.bf16.gmra.mxu0 %v4907
        %v5994 = vpop.f32.mrf.mxu0
        %v5995 = vadd.f32 0.0, %v5994
        %v5996 = vpop.f32.mrf.mxu0
        %v5997 = vadd.f32 0.0, %v5996
        %5998 = vdwg.mxu0
        %5999 = vmatpush.bf16.msra.mxu0 %v5602
        %6000 = vmatpush.bf16.msra.mxu0 %v5600
        %6001 = vmatpush.bf16.msra.mxu0 %v5598
        %6002 = vmatpush.bf16.msra.mxu0 %v5596
        %6003 = vmatpush.bf16.msra.mxu0 %v5594
        %6004 = vmatpush.bf16.msra.mxu0 %v5592
        %6005 = vmatpush.bf16.msra.mxu0 %v5590
        %6006 = vmatpush.bf16.msra.mxu0 %v5588
        %6007 = vmatmul.bf16.gmra.mxu0 %v4920
        %v6008 = vpop.f32.mrf.mxu0
        %v6009 = vadd.f32 %v5995, %v6008
        %v6010 = vpop.f32.mrf.mxu0
        %v6011 = vadd.f32 %v5997, %v6010
        %6012 = vdwg.mxu0
        %6013 = vmatpush.bf16.msra.mxu0 %v5618
        %6014 = vmatpush.bf16.msra.mxu0 %v5616
        %6015 = vmatpush.bf16.msra.mxu0 %v5614
        %6016 = vmatpush.bf16.msra.mxu0 %v5612
        %6017 = vmatpush.bf16.msra.mxu0 %v5610
        %6018 = vmatpush.bf16.msra.mxu0 %v5608
        %6019 = vmatpush.bf16.msra.mxu0 %v5606
        %6020 = vmatpush.bf16.msra.mxu0 %v5604
        %6021 = vmatmul.bf16.gmra.mxu0 %v4933
        %v6022 = vpop.f32.mrf.mxu0
        %v6023 = vadd.f32 %v6009, %v6022
        %v6024 = vpop.f32.mrf.mxu0
        %v6025 = vadd.f32 %v6011, %v6024
        %6026 = vdwg.mxu0
        %6027 = vmatpush.bf16.msra.mxu0 %v5634
        %6028 = vmatpush.bf16.msra.mxu0 %v5632
        %6029 = vmatpush.bf16.msra.mxu0 %v5630
        %6030 = vmatpush.bf16.msra.mxu0 %v5628
        %6031 = vmatpush.bf16.msra.mxu0 %v5626
        %6032 = vmatpush.bf16.msra.mxu0 %v5624
        %6033 = vmatpush.bf16.msra.mxu0 %v5622
        %6034 = vmatpush.bf16.msra.mxu0 %v5620
        %6035 = vmatmul.bf16.gmra.mxu0 %v4943
        %v6036 = vpop.f32.mrf.mxu0
        %v6037 = vadd.f32 %v6023, %v6036
        %v6038 = vpop.f32.mrf.mxu0
        %v6039 = vadd.f32 %v6025, %v6038
        %6040 = vdwg.mxu0
        %6041 = vmatpush.bf16.msra.mxu0 %v5650
        %6042 = vmatpush.bf16.msra.mxu0 %v5648
        %6043 = vmatpush.bf16.msra.mxu0 %v5646
        %6044 = vmatpush.bf16.msra.mxu0 %v5644
        %6045 = vmatpush.bf16.msra.mxu0 %v5642
        %6046 = vmatpush.bf16.msra.mxu0 %v5640
        %6047 = vmatpush.bf16.msra.mxu0 %v5638
        %6048 = vmatpush.bf16.msra.mxu0 %v5636
        %6049 = vmatmul.bf16.gmra.mxu0 %v4953
        %v6050 = vpop.f32.mrf.mxu0
        %v6051 = vadd.f32 %v6037, %v6050
        %v6052 = vpop.f32.mrf.mxu0
        %v6053 = vadd.f32 %v6039, %v6052
        %6054 = vdwg.mxu0
        %6055 = vmatpush.bf16.msra.mxu0 %v5666
        %6056 = vmatpush.bf16.msra.mxu0 %v5664
        %6057 = vmatpush.bf16.msra.mxu0 %v5662
        %6058 = vmatpush.bf16.msra.mxu0 %v5660
        %6059 = vmatpush.bf16.msra.mxu0 %v5658
        %6060 = vmatpush.bf16.msra.mxu0 %v5656
        %6061 = vmatpush.bf16.msra.mxu0 %v5654
        %6062 = vmatpush.bf16.msra.mxu0 %v5652
        %6063 = vmatmul.bf16.gmra.mxu0 %v4963
        %v6064 = vpop.f32.mrf.mxu0
        %v6065 = vadd.f32 %v6051, %v6064
        %v6066 = vpop.f32.mrf.mxu0
        %v6067 = vadd.f32 %v6053, %v6066
        %6068 = vdwg.mxu0
        %6069 = vmatpush.bf16.msra.mxu0 %v5682
        %6070 = vmatpush.bf16.msra.mxu0 %v5680
        %6071 = vmatpush.bf16.msra.mxu0 %v5678
        %6072 = vmatpush.bf16.msra.mxu0 %v5676
        %6073 = vmatpush.bf16.msra.mxu0 %v5674
        %6074 = vmatpush.bf16.msra.mxu0 %v5672
        %6075 = vmatpush.bf16.msra.mxu0 %v5670
        %6076 = vmatpush.bf16.msra.mxu0 %v5668
        %6077 = vmatmul.bf16.gmra.mxu0 %v4973
        %v6078 = vpop.f32.mrf.mxu0
        %v6079 = vadd.f32 %v6065, %v6078
        %v6080 = vpop.f32.mrf.mxu0
        %v6081 = vadd.f32 %v6067, %v6080
        %6082 = vdwg.mxu0
        %6083 = vmatpush.bf16.msra.mxu0 %v5698
        %6084 = vmatpush.bf16.msra.mxu0 %v5696
        %6085 = vmatpush.bf16.msra.mxu0 %v5694
        %6086 = vmatpush.bf16.msra.mxu0 %v5692
        %6087 = vmatpush.bf16.msra.mxu0 %v5690
        %6088 = vmatpush.bf16.msra.mxu0 %v5688
        %6089 = vmatpush.bf16.msra.mxu0 %v5686
        %6090 = vmatpush.bf16.msra.mxu0 %v5684
        %6091 = vmatmul.bf16.gmra.mxu0 %v4983
        %v6092 = vpop.f32.mrf.mxu0
        %v6093 = vadd.f32 %v6079, %v6092
        %v6094 = vpop.f32.mrf.mxu0
        %v6095 = vadd.f32 %v6081, %v6094
        %6096 = vdwg.mxu0
        %6097 = vmatpush.bf16.msra.mxu0 %v5714
        %6098 = vmatpush.bf16.msra.mxu0 %v5712
        %6099 = vmatpush.bf16.msra.mxu0 %v5710
        %6100 = vmatpush.bf16.msra.mxu0 %v5708
        %6101 = vmatpush.bf16.msra.mxu0 %v5706
        %6102 = vmatpush.bf16.msra.mxu0 %v5704
        %6103 = vmatpush.bf16.msra.mxu0 %v5702
        %6104 = vmatpush.bf16.msra.mxu0 %v5700
        %6105 = vmatmul.bf16.gmra.mxu0 %v4993
        %v6106 = vpop.f32.mrf.mxu0
        %v6107 = vadd.f32 %v6093, %v6106
        %v6108 = vpop.f32.mrf.mxu0
        %v6109 = vadd.f32 %v6095, %v6108
        %6110 = vdwg.mxu0
        %v6111 = vld [vmem:[%s8] sm:$0x3]
        %v6113 = vperm.slane %v6111, 0
        %v6114 = vperm.slane %v6111, 1
        %v6117 = vmul.f32 %v5981, %v6113
        %v6118 = vmul.f32 %v6107, %v6114
        %v6119 = vmul.f32 %v5983, %v6113
        %v6120 = vmul.f32 %v6109, %v6114
        %v6121 = vld [vmem:[%s9] sm:$0x3]
        %v6123 = vperm.slane %v6121, 0
        %v6124 = vperm.slane %v6121, 1
        %v6127 = vadd.f32 %v6117, %v6123
        %v6128 = vadd.f32 %v6118, %v6124
        %v6129 = vadd.f32 %v6119, %v6123
        %v6130 = vadd.f32 %v6120, %v6124
        %v6131 = vmax.f32 %v6127, 0.0
        %v6132 = vmax.f32 %v6128, 0.0
        %v6133 = vmax.f32 %v6129, 0.0
        %v6134 = vmax.f32 %v6130, 0.0
        %v6135 = vadd.f32 %v6131, %v6133
        %v6136 = vrot.slane %v6135, 4
        %v6137 = vadd.f32 %v6135, %v6136
        %v6138 = vrot.slane %v6137, 2
        %v6139 = vadd.f32 %v6137, %v6138
        %v6140 = vrot.slane %v6139, 1
        %v6141 = vadd.f32 %v6139, %v6140
        %v6142 = vadd.f32 %v6132, %v6134
        %v6143 = vrot.slane %v6142, 4
        %v6144 = vadd.f32 %v6142, %v6143
        %v6145 = vrot.slane %v6144, 2
        %v6146 = vadd.f32 %v6144, %v6145
        %v6147 = vrot.slane %v6146, 1
        %v6148 = vadd.f32 %v6146, %v6147
        %v6149 = vmul.f32 %v6141, 0.0625
        %v6150 = vmul.f32 %v6148, 0.0625
        %v6151 = vld [vmem:[%s10] sm:$0xff]
        %v6152 = vld [vmem:[%s10 + $0x8] sm:$0xff]
        %v6153 = vld [vmem:[%s10 + $0x10] sm:$0xff]
        %v6154 = vld [vmem:[%s10 + $0x18] sm:$0xff]
        %v6155 = vld [vmem:[%s10 + $0x20] sm:$0xff]
        %v6156 = vld [vmem:[%s10 + $0x28] sm:$0xff]
        %v6157 = vld [vmem:[%s10 + $0x30] sm:$0xff]
        %v6158 = vld [vmem:[%s10 + $0x38] sm:$0xff]
        %v6159 = vld [vmem:[%s10 + $0x40] sm:$0xff]
        %v6160 = vld [vmem:[%s10 + $0x48] sm:$0xff]
        %v6161 = vld [vmem:[%s10 + $0x50] sm:$0xff]
        %v6162 = vld [vmem:[%s10 + $0x58] sm:$0xff]
        %v6163 = vld [vmem:[%s10 + $0x60] sm:$0xff]
        %v6164 = vld [vmem:[%s10 + $0x68] sm:$0xff]
        %v6165 = vld [vmem:[%s10 + $0x70] sm:$0xff]
        %v6166 = vld [vmem:[%s10 + $0x78] sm:$0xff]
        %v6167 = vld [vmem:[%s10 + $0x80] sm:$0xff]
        %v6168 = vld [vmem:[%s10 + $0x88] sm:$0xff]
        %v6169 = vld [vmem:[%s10 + $0x90] sm:$0xff]
        %v6170 = vld [vmem:[%s10 + $0x98] sm:$0xff]
        %v6171 = vld [vmem:[%s10 + $0xa0] sm:$0xff]
        %v6172 = vld [vmem:[%s10 + $0xa8] sm:$0xff]
        %v6173 = vld [vmem:[%s10 + $0xb0] sm:$0xff]
        %v6174 = vld [vmem:[%s10 + $0xb8] sm:$0xff]
        %v6175 = vld [vmem:[%s10 + $0xc0] sm:$0xff]
        %v6176 = vld [vmem:[%s10 + $0xc8] sm:$0xff]
        %v6177 = vld [vmem:[%s10 + $0xd0] sm:$0xff]
        %v6178 = vld [vmem:[%s10 + $0xd8] sm:$0xff]
        %v6179 = vld [vmem:[%s10 + $0xe0] sm:$0xff]
        %v6180 = vld [vmem:[%s10 + $0xe8] sm:$0xff]
        %v6181 = vld [vmem:[%s10 + $0xf0] sm:$0xff]
        %v6182 = vld [vmem:[%s10 + $0xf8] sm:$0xff]
        %v6183 = vld [vmem:[%s11] sm:$0x1]
        %6184 = vmatpush.msra.mxu0 %v6166
        %6185 = vmatpush.msra.mxu0 %v6165
        %6186 = vmatpush.msra.mxu0 %v6164
        %6187 = vmatpush.msra.mxu0 %v6163
        %6188 = vmatpush.msra.mxu0 %v6162
        %6189 = vmatpush.msra.mxu0 %v6161
        %6190 = vmatpush.msra.mxu0 %v6160
        %6191 = vmatpush.msra.mxu0 %v6159
        %6192 = vmatpush.msra.mxu0 %v6158
        %6193 = vmatpush.msra.mxu0 %v6157
        %6194 = vmatpush.msra.mxu0 %v6156
        %6195 = vmatpush.msra.mxu0 %v6155
        %6196 = vmatpush.msra.mxu0 %v6154
        %6197 = vmatpush.msra.mxu0 %v6153
        %6198 = vmatpush.msra.mxu0 %v6152
        %6199 = vmatpush.msra.mxu0 %v6151
        %6200 = vmatmul.f32.gmra.mxu0 %v6149
        %v6201 = vpop.f32.mrf.mxu0
        %v6202 = vadd.f32 %v6183, %v6201
        %6203 = vdwg.mxu0
        %6204 = vmatpush.msra.mxu0 %v6182
        %6205 = vmatpush.msra.mxu0 %v6181
        %6206 = vmatpush.msra.mxu0 %v6180
        %6207 = vmatpush.msra.mxu0 %v6179
        %6208 = vmatpush.msra.mxu0 %v6178
        %6209 = vmatpush.msra.mxu0 %v6177
        %6210 = vmatpush.msra.mxu0 %v6176
        %6211 = vmatpush.msra.mxu0 %v6175
        %6212 = vmatpush.msra.mxu0 %v6174
        %6213 = vmatpush.msra.mxu0 %v6173
        %6214 = vmatpush.msra.mxu0 %v6172
        %6215 = vmatpush.msra.mxu0 %v6171
        %6216 = vmatpush.msra.mxu0 %v6170
        %6217 = vmatpush.msra.mxu0 %v6169
        %6218 = vmatpush.msra.mxu0 %v6168
        %6219 = vmatpush.msra.mxu0 %v6167
        %6220 = vmatmul.f32.gmra.mxu0 %v6150
        %v6221 = vpop.f32.mrf.mxu0
        %v6222 = vadd.f32 %v6202, %v6221
        %6223 = vdwg.mxu0
        %vm6224 = vcmask 73728
        %6225 = vst.msk [vmem:[%s422] sm:$0x1] %vm6224, %v6222
        %s6226 = sand.u32 %s292, 1
        %s6227 = scalar_lea.sflag [#allocation6], %s6226
        %s6228 = sand.u32 %s292, 1
        %s6229 = scalar_lea.vmem [#allocation7], %s6228
        // Predicated region
        $region73: #{student_forward.1} parent=67 // pred_check
          %p6230 = pneg %p302
        $region74: #{student_forward.1} parent=67 // pred_check_branch
          %6232 = sbr.rel (%p6230) target = $region76
        $region75: #{student_forward.1} parent=67 // pred_region
          %6234 = vsyncadd %s6227, 0
          %s6235 = scalar_lea.hbm %s12, %s27
          %s6237 = sshll.u32 %s6229, 4
          %s6238 = int_to_ptr.vmem [resolvable:$true] %s6237
          %s6239 = sshll.u32 %s6235, 4
          %s6240 = int_to_ptr.hbm [resolvable:$true] %s6239
          %6242 = dma.vmem_to_hbm [thread:$0]  %s6238, 16, %s6240, %s6227
        $region76: #{student_forward.1} parent=67 // pred_fallthru
          _
      $region68: #{student_forward.1} parent=5 // pred_fallthru
        _
      %p6243 = scmp.le.s32.totalorder 2, %s22
      // Predicated region
      $region77: #{student_forward.1} parent=5 // pred_check
        %p6244 = pneg %p6243
      $region78: #{student_forward.1} parent=5 // pred_check_branch
        %6246 = sbr.rel (%p6244) target = $region80
      $region79: #{student_forward.1} parent=5 // pred_region
        %s6247 = ssub.s32 %s22, 2
        // Predicated region
        $region81: #{student_forward.1} parent=79 // pred_check
          %p6248 = pneg %p308
        $region82: #{student_forward.1} parent=79 // pred_check_branch
          %6250 = sbr.rel (%p6248) target = $region84
        $region83: #{student_forward.1} parent=79 // pred_region
          %s6251 = sand.u32 %s293, 1
          %s6252 = scalar_lea.sflag [#allocation6], %s6251
          %s6253 = sand.u32 %s293, 1
          %s6254 = scalar_lea.vmem [#allocation7], %s6253
          %6256 = dma.done %s6252, 16
        $region84: #{student_forward.1} parent=79 // pred_fallthru
          _
      $region80: #{student_forward.1} parent=5 // pred_fallthru
        _
    $region6: #{student_forward.1} parent=1 // loop_footer
      %s26 = sadd.s32 1, %s22
    $region7: #{student_forward.1} parent=1 // loop_footer_branch
      %21 = sbr.rel target = $region3
    $region8: #{student_forward.1} parent=1 // loop_exit
      _
    %6257 = vsyncpa [#allocation5], 1
    %s6258 = scalar_lea.sflag [#allocation5], 1
    %6259 = vsyncpa %s6258, 1
    %6260 = vsyncpa [#allocation6], 1
    %s6261 = scalar_lea.sflag [#allocation6], 1
    %6262 = vsyncpa %s6261, 1

</llo_original>
